<compile_context>
chip_gen: v7x
topology: tpu7x:2x2x1
jax: 0.10.0
libtpu: 0.0.40
codegen_flags: <defaults>
</compile_context>

<pallas_src>
import functools
import numpy as np
import jax
import jax.numpy as jnp
from jax.experimental import pallas as pl
from jax.experimental.pallas import tpu as pltpu

N_NODES = 127      # fixed by the module signature
D = 512            # embedding dim (Linear: 1024 -> 512)


def _ceil8(x):
    return max(8, -(-int(x) // 8) * 8)


def _build_schedule(left, right, is_leaf, root):
    """Bottom-up wavefronts of internal nodes reachable from `root`.

    levels[k] holds internal nodes whose children all live in levels < k
    (leaves count as already available).  Returns (levels, reachable_leaves).
    """
    depth = {}

    def d(n):
        n = int(n)
        if n in depth:
            return depth[n]
        if bool(is_leaf[n]):
            depth[n] = 0
        else:
            depth[n] = 1 + max(d(left[n]), d(right[n]))
        return depth[n]

    top = d(int(root))
    levels = [[] for _ in range(top)]
    leaves = []
    for n in sorted(depth):
        if depth[n] == 0:
            leaves.append(n)
        else:
            levels[depth[n] - 1].append(n)
    # the root is necessarily the unique node of the top wavefront
    assert levels[-1] == [int(root)]
    return levels, leaves


@functools.lru_cache(maxsize=None)
def _get_rae_fn(n_leaf_pad, ps, offs, buf_rows):
    """Build & cache (per tree structure) the compiled single-shot kernel.

    ps[l]   : padded row count of wavefront l (multiple of 8)
    offs[l] : first buffer row of wavefront l's output region (multiple of 8)
    """
    n_levels = len(ps)

    def kernel(*refs):
        leaf_ref, w1_ref, w2_ref, bias_ref = refs[:4]
        sel_refs = refs[4:4 + n_levels]
        out_ref = refs[4 + n_levels]
        emb_ref = refs[5 + n_levels]          # (buf_rows, 512) f32 VMEM scratch

        # leaf init: one contiguous, aligned bulk copy into the buffer prefix
        emb_ref[0:n_leaf_pad, :] = leaf_ref[...]

        w1 = w1_ref[...]                       # (512, 512) bf16
        w2 = w2_ref[...]                       # (512, 512) bf16
        bias = bias_ref[...]                   # (1, 512)   f32

        for l in range(n_levels):              # static trip count, unrolled
            p, off = ps[l], offs[l]
            # Stacked one-hot gather of [left; right] children in ONE matmul.
            # Only rows [0, off) can be children at this level, so contract
            # over that (already fully written) prefix.
            src = emb_ref[0:off, :].astype(jnp.bfloat16)
            ab = jnp.dot(sel_refs[l][...], src,
                         preferred_element_type=jnp.float32)      # (2p, 512)
            a = ab[0:p, :].astype(jnp.bfloat16)
            b = ab[p:2 * p, :].astype(jnp.bfloat16)
            # Encoder: bf16 operands, f32 accumulation on the MXU.
            h = jnp.dot(a, w1, preferred_element_type=jnp.float32)
            h = h + jnp.dot(b, w2, preferred_element_type=jnp.float32)
            e = jnp.tanh(h + bias)                                  # (p, 512) f32
            if l + 1 < n_levels:
                # static, 8-aligned slice store of just this wavefront's rows
                emb_ref[off:off + p, :] = e
            else:
                # root is the unique (first) node of the last wavefront
                out_ref[...] = e[0:1, :]

    flops = 0
    trans = 0
    bytes_accessed = 4 * (n_leaf_pad * D) + 2 * (2 * D * D) + 4 * (2 * D)
    for p, off in zip(ps, offs):
        flops += 2 * (2 * p) * off * D        # stacked gather matmul
        flops += 2 * 2 * p * D * D            # two encoder matmuls
        trans += p * D                        # tanh
        bytes_accessed += 2 * (2 * p) * off   # bf16 selector

    vmem = pl.BlockSpec(memory_space=pltpu.MemorySpace.VMEM)
    fn = pl.pallas_call(
        kernel,
        out_shape=jax.ShapeDtypeStruct((1, D), jnp.float32),
        in_specs=[vmem] * (4 + n_levels),
        out_specs=vmem,
        scratch_shapes=[pltpu.VMEM((buf_rows, D), jnp.float32)],
        cost_estimate=pl.CostEstimate(flops=int(flops),
                                      transcendentals=int(trans),
                                      bytes_accessed=int(bytes_accessed)),
    )
    return jax.jit(fn)


def rae_forward(left, right, is_leaf, inp, root, W, bias):
    """left/right: (127,) int, is_leaf: (127,) bool, inp: (127, 512) f32,
    root: python int, W: (512, 1024) f32 (nn.Linear.weight), bias: (512,) f32
    -> (512,) f32."""
    left_np = np.asarray(left).astype(np.int64)
    right_np = np.asarray(right).astype(np.int64)
    leaf_np = np.asarray(is_leaf).astype(bool)
    root = int(root)
    inp = jnp.asarray(inp, jnp.float32)

    if leaf_np[root]:                 # trivial case: exact leaf bypass (as torch)
        return inp[root]

    # ---- host-side schedule glue: topology -> row layout + selectors ----
    levels, leaves = _build_schedule(left_np, right_np, leaf_np, root)

    n_leaf_pad = _ceil8(len(leaves))
    slot = {int(n): i for i, n in enumerate(leaves)}     # node -> buffer row
    ps, offs = [], []
    off = n_leaf_pad
    for nodes in levels:
        p = _ceil8(len(nodes))
        ps.append(p)
        offs.append(off)
        for j, n in enumerate(nodes):
            slot[int(n)] = off + j
        off += p
    buf_rows = off

    # stacked one-hot selectors: rows [0,p) pick left children, [p,2p) right
    sels = []
    for nodes, p, koff in zip(levels, ps, offs):
        s = np.zeros((2 * p, koff), np.float32)
        for j, n in enumerate(nodes):
            s[j, slot[int(left_np[n])]] = 1.0
            s[p + j, slot[int(right_np[n])]] = 1.0
        sels.append(jnp.asarray(s, jnp.bfloat16))

    # leaf rows permuted into their buffer slots (plain-JAX glue, exact f32)
    leaf_rows = inp[np.asarray(leaves, np.int32)]
    leaf_init = jnp.zeros((n_leaf_pad, D), jnp.float32).at[:len(leaves)].set(leaf_rows)

    # split encoder weight: tanh(W @ cat(a,b) + c) == tanh(a @ W1 + b @ W2 + c)
    Wf = jnp.asarray(W, jnp.float32)
    w1 = Wf[:, :D].T.astype(jnp.bfloat16)
    w2 = Wf[:, D:].T.astype(jnp.bfloat16)
    bias_row = jnp.asarray(bias, jnp.float32).reshape(1, D)

    fn = _get_rae_fn(int(n_leaf_pad),
                     tuple(int(p) for p in ps),
                     tuple(int(o) for o in offs),
                     int(buf_rows))
    out = fn(leaf_init, w1, w2, bias_row, *sels)
    return out.reshape(D)


if __name__ == "__main__":
    key = jax.random.PRNGKey(0)
    k_inp, k_w, k_b = jax.random.split(key, 3)

    # complete binary tree with 127 nodes (heap layout): internal 0..62, leaves 63..126
    idx = np.arange(N_NODES)
    left = np.where(idx < 63, 2 * idx + 1, -1).astype(np.int64)
    right = np.where(idx < 63, 2 * idx + 2, -1).astype(np.int64)
    is_leaf = (idx >= 63)
    root = 0

    inp = jax.random.normal(k_inp, (N_NODES, D), jnp.float32)
    W = jax.random.normal(k_w, (D, 2 * D), jnp.float32) * 0.02   # nn.Linear(1024,512).weight
    bias = jax.random.normal(k_b, (D,), jnp.float32) * 0.02      # nn.Linear(1024,512).bias

    out = rae_forward(left, right, is_leaf, inp, root, W, bias)
    out = jax.block_until_ready(out)

    # numpy reference of the original recursion (f32)
    inp_np, W_np, b_np = np.asarray(inp), np.asarray(W), np.asarray(bias)

    def ref(n):
        if is_leaf[n]:
            return inp_np[n]
        a = ref(int(left[n]))
        b = ref(int(right[n]))
        return np.tanh(W_np @ np.concatenate([a, b]) + b_np)

    # bf16 MXU operands -> loosened tolerance (per review's correctness note)
    np.testing.assert_allclose(np.asarray(out), ref(root), rtol=2e-2, atol=2e-2)
    print("KERNEL_OK")
</pallas_src>

<mosaic_0001>
module attributes {stable_mosaic.version = 11 : i64} {
  func.func @kernel(%arg0: memref<64x512xf32, #tpu.memory_space<vmem>>, %arg1: memref<512x512xbf16, #tpu.memory_space<vmem>>, %arg2: memref<512x512xbf16, #tpu.memory_space<vmem>>, %arg3: memref<1x512xf32, #tpu.memory_space<vmem>>, %arg4: memref<64x64xbf16, #tpu.memory_space<vmem>>, %arg5: memref<32x96xbf16, #tpu.memory_space<vmem>>, %arg6: memref<16x112xbf16, #tpu.memory_space<vmem>>, %arg7: memref<16x120xbf16, #tpu.memory_space<vmem>>, %arg8: memref<16x128xbf16, #tpu.memory_space<vmem>>, %arg9: memref<16x136xbf16, #tpu.memory_space<vmem>>, %arg10: memref<1x512xf32, #tpu.memory_space<vmem>>, %arg11: memref<144x512xf32, #tpu.memory_space<vmem>>) attributes {dimension_semantics = [], scalar_prefetch = 0 : i64, scratch_operands = 1 : i64, tpu.core_type = #tpu.core_type<tc>} {
    %c0 = arith.constant 0 : index
    %c0_0 = arith.constant 0 : index
    %0 = vector.load %arg0[%c0, %c0_0] : memref<64x512xf32, #tpu.memory_space<vmem>>, vector<64x512xf32>
    %c0_1 = arith.constant 0 : index
    %c0_2 = arith.constant 0 : index
    %1 = vector.load %arg11[%c0_1, %c0_2] : memref<144x512xf32, #tpu.memory_space<vmem>>, vector<64x512xf32>
    tpu.vector_store %arg11[%c0_1, %c0_2], %0 {strides = array<i32>} : memref<144x512xf32, #tpu.memory_space<vmem>>, vector<64x512xf32>,
    %c0_3 = arith.constant 0 : index
    %c0_4 = arith.constant 0 : index
    %2 = vector.load %arg1[%c0_3, %c0_4] : memref<512x512xbf16, #tpu.memory_space<vmem>>, vector<512x512xbf16>
    %c0_5 = arith.constant 0 : index
    %c0_6 = arith.constant 0 : index
    %3 = vector.load %arg2[%c0_5, %c0_6] : memref<512x512xbf16, #tpu.memory_space<vmem>>, vector<512x512xbf16>
    %c0_7 = arith.constant 0 : index
    %c0_8 = arith.constant 0 : index
    %4 = vector.load %arg3[%c0_7, %c0_8] : memref<1x512xf32, #tpu.memory_space<vmem>>, vector<1x512xf32>
    %c0_9 = arith.constant 0 : index
    %c0_10 = arith.constant 0 : index
    %5 = vector.load %arg11[%c0_9, %c0_10] : memref<144x512xf32, #tpu.memory_space<vmem>>, vector<64x512xf32>
    %6 = arith.truncf %5 : vector<64x512xf32> to vector<64x512xbf16>
    %c0_11 = arith.constant 0 : index
    %c0_12 = arith.constant 0 : index
    %7 = vector.load %arg4[%c0_11, %c0_12] : memref<64x64xbf16, #tpu.memory_space<vmem>>, vector<64x64xbf16>
    %cst = arith.constant dense<0.000000e+00> : vector<64x512xf32>
    %8 = tpu.matmul %7, %6, %cst {dimension_numbers = #tpu.dot_dimension_numbers<[1], [0], [0], [1], [0, 0, 1, 1], [], []>} : vector<64x64xbf16>, vector<64x512xbf16>, vector<64x512xf32> -> vector<64x512xf32>
    %9 = vector.extract_strided_slice %8 {offsets = [0, 0], sizes = [32, 512], strides = [1, 1]} : vector<64x512xf32> to vector<32x512xf32>
    %10 = arith.truncf %9 : vector<32x512xf32> to vector<32x512xbf16>
    %11 = vector.extract_strided_slice %8 {offsets = [32, 0], sizes = [32, 512], strides = [1, 1]} : vector<64x512xf32> to vector<32x512xf32>
    %12 = arith.truncf %11 : vector<32x512xf32> to vector<32x512xbf16>
    %cst_13 = arith.constant dense<0.000000e+00> : vector<32x512xf32>
    %13 = tpu.matmul %10, %2, %cst_13 {dimension_numbers = #tpu.dot_dimension_numbers<[1], [0], [0], [1], [0, 0, 1, 1], [], []>} : vector<32x512xbf16>, vector<512x512xbf16>, vector<32x512xf32> -> vector<32x512xf32>
    %cst_14 = arith.constant dense<0.000000e+00> : vector<32x512xf32>
    %14 = tpu.matmul %12, %3, %cst_14 {dimension_numbers = #tpu.dot_dimension_numbers<[1], [0], [0], [1], [0, 0, 1, 1], [], []>} : vector<32x512xbf16>, vector<512x512xbf16>, vector<32x512xf32> -> vector<32x512xf32>
    %15 = arith.addf %13, %14 : vector<32x512xf32>
    %16 = vector.broadcast %4 : vector<1x512xf32> to vector<32x512xf32>
    %17 = arith.addf %15, %16 : vector<32x512xf32>
    %18 = math.tanh %17 : vector<32x512xf32>
    %c64 = arith.constant 64 : index
    %c0_15 = arith.constant 0 : index
    %19 = vector.load %arg11[%c64, %c0_15] : memref<144x512xf32, #tpu.memory_space<vmem>>, vector<32x512xf32>
    tpu.vector_store %arg11[%c64, %c0_15], %18 {strides = array<i32>} : memref<144x512xf32, #tpu.memory_space<vmem>>, vector<32x512xf32>,
    %c0_16 = arith.constant 0 : index
    %c0_17 = arith.constant 0 : index
    %20 = vector.load %arg11[%c0_16, %c0_17] : memref<144x512xf32, #tpu.memory_space<vmem>>, vector<96x512xf32>
    %21 = arith.truncf %20 : vector<96x512xf32> to vector<96x512xbf16>
    %c0_18 = arith.constant 0 : index
    %c0_19 = arith.constant 0 : index
    %22 = vector.load %arg5[%c0_18, %c0_19] : memref<32x96xbf16, #tpu.memory_space<vmem>>, vector<32x96xbf16>
    %cst_20 = arith.constant dense<0.000000e+00> : vector<32x512xf32>
    %23 = tpu.matmul %22, %21, %cst_20 {dimension_numbers = #tpu.dot_dimension_numbers<[1], [0], [0], [1], [0, 0, 1, 1], [], []>} : vector<32x96xbf16>, vector<96x512xbf16>, vector<32x512xf32> -> vector<32x512xf32>
    %24 = vector.extract_strided_slice %23 {offsets = [0, 0], sizes = [16, 512], strides = [1, 1]} : vector<32x512xf32> to vector<16x512xf32>
    %25 = arith.truncf %24 : vector<16x512xf32> to vector<16x512xbf16>
    %26 = vector.extract_strided_slice %23 {offsets = [16, 0], sizes = [16, 512], strides = [1, 1]} : vector<32x512xf32> to vector<16x512xf32>
    %27 = arith.truncf %26 : vector<16x512xf32> to vector<16x512xbf16>
    %cst_21 = arith.constant dense<0.000000e+00> : vector<16x512xf32>
    %28 = tpu.matmul %25, %2, %cst_21 {dimension_numbers = #tpu.dot_dimension_numbers<[1], [0], [0], [1], [0, 0, 1, 1], [], []>} : vector<16x512xbf16>, vector<512x512xbf16>, vector<16x512xf32> -> vector<16x512xf32>
    %cst_22 = arith.constant dense<0.000000e+00> : vector<16x512xf32>
    %29 = tpu.matmul %27, %3, %cst_22 {dimension_numbers = #tpu.dot_dimension_numbers<[1], [0], [0], [1], [0, 0, 1, 1], [], []>} : vector<16x512xbf16>, vector<512x512xbf16>, vector<16x512xf32> -> vector<16x512xf32>
    %30 = arith.addf %28, %29 : vector<16x512xf32>
    %31 = vector.broadcast %4 : vector<1x512xf32> to vector<16x512xf32>
    %32 = arith.addf %30, %31 : vector<16x512xf32>
    %33 = math.tanh %32 : vector<16x512xf32>
    %c96 = arith.constant 96 : index
    %c0_23 = arith.constant 0 : index
    %34 = vector.load %arg11[%c96, %c0_23] : memref<144x512xf32, #tpu.memory_space<vmem>>, vector<16x512xf32>
    tpu.vector_store %arg11[%c96, %c0_23], %33 {strides = array<i32>} : memref<144x512xf32, #tpu.memory_space<vmem>>, vector<16x512xf32>,
    %c0_24 = arith.constant 0 : index
    %c0_25 = arith.constant 0 : index
    %35 = vector.load %arg11[%c0_24, %c0_25] : memref<144x512xf32, #tpu.memory_space<vmem>>, vector<112x512xf32>
    %36 = arith.truncf %35 : vector<112x512xf32> to vector<112x512xbf16>
    %c0_26 = arith.constant 0 : index
    %c0_27 = arith.constant 0 : index
    %37 = vector.load %arg6[%c0_26, %c0_27] : memref<16x112xbf16, #tpu.memory_space<vmem>>, vector<16x112xbf16>
    %cst_28 = arith.constant dense<0.000000e+00> : vector<16x512xf32>
    %38 = tpu.matmul %37, %36, %cst_28 {dimension_numbers = #tpu.dot_dimension_numbers<[1], [0], [0], [1], [0, 0, 1, 1], [], []>} : vector<16x112xbf16>, vector<112x512xbf16>, vector<16x512xf32> -> vector<16x512xf32>
    %39 = vector.extract_strided_slice %38 {offsets = [0, 0], sizes = [8, 512], strides = [1, 1]} : vector<16x512xf32> to vector<8x512xf32>
    %40 = arith.truncf %39 : vector<8x512xf32> to vector<8x512xbf16>
    %41 = vector.extract_strided_slice %38 {offsets = [8, 0], sizes = [8, 512], strides = [1, 1]} : vector<16x512xf32> to vector<8x512xf32>
    %42 = arith.truncf %41 : vector<8x512xf32> to vector<8x512xbf16>
    %cst_29 = arith.constant dense<0.000000e+00> : vector<8x512xf32>
    %43 = tpu.matmul %40, %2, %cst_29 {dimension_numbers = #tpu.dot_dimension_numbers<[1], [0], [0], [1], [0, 0, 1, 1], [], []>} : vector<8x512xbf16>, vector<512x512xbf16>, vector<8x512xf32> -> vector<8x512xf32>
    %cst_30 = arith.constant dense<0.000000e+00> : vector<8x512xf32>
    %44 = tpu.matmul %42, %3, %cst_30 {dimension_numbers = #tpu.dot_dimension_numbers<[1], [0], [0], [1], [0, 0, 1, 1], [], []>} : vector<8x512xbf16>, vector<512x512xbf16>, vector<8x512xf32> -> vector<8x512xf32>
    %45 = arith.addf %43, %44 : vector<8x512xf32>
    %46 = vector.broadcast %4 : vector<1x512xf32> to vector<8x512xf32>
    %47 = arith.addf %45, %46 : vector<8x512xf32>
    %48 = math.tanh %47 : vector<8x512xf32>
    %c112 = arith.constant 112 : index
    %c0_31 = arith.constant 0 : index
    %49 = vector.load %arg11[%c112, %c0_31] : memref<144x512xf32, #tpu.memory_space<vmem>>, vector<8x512xf32>
    tpu.vector_store %arg11[%c112, %c0_31], %48 {strides = array<i32>} : memref<144x512xf32, #tpu.memory_space<vmem>>, vector<8x512xf32>,
    %c0_32 = arith.constant 0 : index
    %c0_33 = arith.constant 0 : index
    %50 = vector.load %arg11[%c0_32, %c0_33] : memref<144x512xf32, #tpu.memory_space<vmem>>, vector<120x512xf32>
    %51 = arith.truncf %50 : vector<120x512xf32> to vector<120x512xbf16>
    %c0_34 = arith.constant 0 : index
    %c0_35 = arith.constant 0 : index
    %52 = vector.load %arg7[%c0_34, %c0_35] : memref<16x120xbf16, #tpu.memory_space<vmem>>, vector<16x120xbf16>
    %cst_36 = arith.constant dense<0.000000e+00> : vector<16x512xf32>
    %53 = tpu.matmul %52, %51, %cst_36 {dimension_numbers = #tpu.dot_dimension_numbers<[1], [0], [0], [1], [0, 0, 1, 1], [], []>} : vector<16x120xbf16>, vector<120x512xbf16>, vector<16x512xf32> -> vector<16x512xf32>
    %54 = vector.extract_strided_slice %53 {offsets = [0, 0], sizes = [8, 512], strides = [1, 1]} : vector<16x512xf32> to vector<8x512xf32>
    %55 = arith.truncf %54 : vector<8x512xf32> to vector<8x512xbf16>
    %56 = vector.extract_strided_slice %53 {offsets = [8, 0], sizes = [8, 512], strides = [1, 1]} : vector<16x512xf32> to vector<8x512xf32>
    %57 = arith.truncf %56 : vector<8x512xf32> to vector<8x512xbf16>
    %cst_37 = arith.constant dense<0.000000e+00> : vector<8x512xf32>
    %58 = tpu.matmul %55, %2, %cst_37 {dimension_numbers = #tpu.dot_dimension_numbers<[1], [0], [0], [1], [0, 0, 1, 1], [], []>} : vector<8x512xbf16>, vector<512x512xbf16>, vector<8x512xf32> -> vector<8x512xf32>
    %cst_38 = arith.constant dense<0.000000e+00> : vector<8x512xf32>
    %59 = tpu.matmul %57, %3, %cst_38 {dimension_numbers = #tpu.dot_dimension_numbers<[1], [0], [0], [1], [0, 0, 1, 1], [], []>} : vector<8x512xbf16>, vector<512x512xbf16>, vector<8x512xf32> -> vector<8x512xf32>
    %60 = arith.addf %58, %59 : vector<8x512xf32>
    %61 = vector.broadcast %4 : vector<1x512xf32> to vector<8x512xf32>
    %62 = arith.addf %60, %61 : vector<8x512xf32>
    %63 = math.tanh %62 : vector<8x512xf32>
    %c120 = arith.constant 120 : index
    %c0_39 = arith.constant 0 : index
    %64 = vector.load %arg11[%c120, %c0_39] : memref<144x512xf32, #tpu.memory_space<vmem>>, vector<8x512xf32>
    tpu.vector_store %arg11[%c120, %c0_39], %63 {strides = array<i32>} : memref<144x512xf32, #tpu.memory_space<vmem>>, vector<8x512xf32>,
    %c0_40 = arith.constant 0 : index
    %c0_41 = arith.constant 0 : index
    %65 = vector.load %arg11[%c0_40, %c0_41] : memref<144x512xf32, #tpu.memory_space<vmem>>, vector<128x512xf32>
    %66 = arith.truncf %65 : vector<128x512xf32> to vector<128x512xbf16>
    %c0_42 = arith.constant 0 : index
    %c0_43 = arith.constant 0 : index
    %67 = vector.load %arg8[%c0_42, %c0_43] : memref<16x128xbf16, #tpu.memory_space<vmem>>, vector<16x128xbf16>
    %cst_44 = arith.constant dense<0.000000e+00> : vector<16x512xf32>
    %68 = tpu.matmul %67, %66, %cst_44 {dimension_numbers = #tpu.dot_dimension_numbers<[1], [0], [0], [1], [0, 0, 1, 1], [], []>} : vector<16x128xbf16>, vector<128x512xbf16>, vector<16x512xf32> -> vector<16x512xf32>
    %69 = vector.extract_strided_slice %68 {offsets = [0, 0], sizes = [8, 512], strides = [1, 1]} : vector<16x512xf32> to vector<8x512xf32>
    %70 = arith.truncf %69 : vector<8x512xf32> to vector<8x512xbf16>
    %71 = vector.extract_strided_slice %68 {offsets = [8, 0], sizes = [8, 512], strides = [1, 1]} : vector<16x512xf32> to vector<8x512xf32>
    %72 = arith.truncf %71 : vector<8x512xf32> to vector<8x512xbf16>
    %cst_45 = arith.constant dense<0.000000e+00> : vector<8x512xf32>
    %73 = tpu.matmul %70, %2, %cst_45 {dimension_numbers = #tpu.dot_dimension_numbers<[1], [0], [0], [1], [0, 0, 1, 1], [], []>} : vector<8x512xbf16>, vector<512x512xbf16>, vector<8x512xf32> -> vector<8x512xf32>
    %cst_46 = arith.constant dense<0.000000e+00> : vector<8x512xf32>
    %74 = tpu.matmul %72, %3, %cst_46 {dimension_numbers = #tpu.dot_dimension_numbers<[1], [0], [0], [1], [0, 0, 1, 1], [], []>} : vector<8x512xbf16>, vector<512x512xbf16>, vector<8x512xf32> -> vector<8x512xf32>
    %75 = arith.addf %73, %74 : vector<8x512xf32>
    %76 = vector.broadcast %4 : vector<1x512xf32> to vector<8x512xf32>
    %77 = arith.addf %75, %76 : vector<8x512xf32>
    %78 = math.tanh %77 : vector<8x512xf32>
    %c128 = arith.constant 128 : index
    %c0_47 = arith.constant 0 : index
    %79 = vector.load %arg11[%c128, %c0_47] : memref<144x512xf32, #tpu.memory_space<vmem>>, vector<8x512xf32>
    tpu.vector_store %arg11[%c128, %c0_47], %78 {strides = array<i32>} : memref<144x512xf32, #tpu.memory_space<vmem>>, vector<8x512xf32>,
    %c0_48 = arith.constant 0 : index
    %c0_49 = arith.constant 0 : index
    %80 = vector.load %arg11[%c0_48, %c0_49] : memref<144x512xf32, #tpu.memory_space<vmem>>, vector<136x512xf32>
    %81 = arith.truncf %80 : vector<136x512xf32> to vector<136x512xbf16>
    %c0_50 = arith.constant 0 : index
    %c0_51 = arith.constant 0 : index
    %82 = vector.load %arg9[%c0_50, %c0_51] : memref<16x136xbf16, #tpu.memory_space<vmem>>, vector<16x136xbf16>
    %cst_52 = arith.constant dense<0.000000e+00> : vector<16x512xf32>
    %83 = tpu.matmul %82, %81, %cst_52 {dimension_numbers = #tpu.dot_dimension_numbers<[1], [0], [0], [1], [0, 0, 1, 1], [], []>} : vector<16x136xbf16>, vector<136x512xbf16>, vector<16x512xf32> -> vector<16x512xf32>
    %84 = vector.extract_strided_slice %83 {offsets = [0, 0], sizes = [8, 512], strides = [1, 1]} : vector<16x512xf32> to vector<8x512xf32>
    %85 = arith.truncf %84 : vector<8x512xf32> to vector<8x512xbf16>
    %86 = vector.extract_strided_slice %83 {offsets = [8, 0], sizes = [8, 512], strides = [1, 1]} : vector<16x512xf32> to vector<8x512xf32>
    %87 = arith.truncf %86 : vector<8x512xf32> to vector<8x512xbf16>
    %cst_53 = arith.constant dense<0.000000e+00> : vector<8x512xf32>
    %88 = tpu.matmul %85, %2, %cst_53 {dimension_numbers = #tpu.dot_dimension_numbers<[1], [0], [0], [1], [0, 0, 1, 1], [], []>} : vector<8x512xbf16>, vector<512x512xbf16>, vector<8x512xf32> -> vector<8x512xf32>
    %cst_54 = arith.constant dense<0.000000e+00> : vector<8x512xf32>
    %89 = tpu.matmul %87, %3, %cst_54 {dimension_numbers = #tpu.dot_dimension_numbers<[1], [0], [0], [1], [0, 0, 1, 1], [], []>} : vector<8x512xbf16>, vector<512x512xbf16>, vector<8x512xf32> -> vector<8x512xf32>
    %90 = arith.addf %88, %89 : vector<8x512xf32>
    %91 = vector.broadcast %4 : vector<1x512xf32> to vector<8x512xf32>
    %92 = arith.addf %90, %91 : vector<8x512xf32>
    %93 = math.tanh %92 : vector<8x512xf32>
    %94 = vector.extract_strided_slice %93 {offsets = [0, 0], sizes = [1, 512], strides = [1, 1]} : vector<8x512xf32> to vector<1x512xf32>
    %c0_55 = arith.constant 0 : index
    %c0_56 = arith.constant 0 : index
    %95 = vector.load %arg10[%c0_55, %c0_56] : memref<1x512xf32, #tpu.memory_space<vmem>>, vector<1x512xf32>
    tpu.vector_store %arg10[%c0_55, %c0_56], %94 {strides = array<i32>} : memref<1x512xf32, #tpu.memory_space<vmem>>, vector<1x512xf32>,
    return
  }
}

</mosaic_0001>

<llo_original>
// kernel: tpu_custom_call.1
$region0: #{tpu_custom_call.1}
  #allocation0 [shape = 'u32[]', space=smem, size = 0x4, offset = 0x4, fixed_abs, tag = 'smem constant byte address 0x4 - core index']
  #allocation1 [shape = 'u32[144,128]{1,0:T(1,128)}', space=vmem, size = 0x12000, scoped, tag = 'internal scratch']
  #allocation2 [shape = 'f32[144,512]{1,0:T(8,128)}', space=vmem, size = 0x48000, scoped, tag = 'scratch operand']
  %s0 = inlined_call_operand.hbm [shape: f32[64,512], index: 0, kind: input, shape index: {}]
  %s1 = inlined_call_operand.hbm [shape: bf16[512,512], index: 1, kind: input, shape index: {}]
  %s2 = inlined_call_operand.hbm [shape: bf16[512,512], index: 2, kind: input, shape index: {}]
  %s3 = inlined_call_operand.hbm [shape: f32[1,512], index: 3, kind: input, shape index: {}]
  %s4 = inlined_call_operand.hbm [shape: bf16[64,64], index: 4, kind: input, shape index: {}]
  %s5 = inlined_call_operand.vmem [shape: bf16[32,96], index: 5, kind: input, shape index: {}]
  %s6 = inlined_call_operand.hbm [shape: bf16[16,112], index: 6, kind: input, shape index: {}]
  %s7 = inlined_call_operand.hbm [shape: bf16[16,120], index: 7, kind: input, shape index: {}]
  %s8 = inlined_call_operand.hbm [shape: bf16[16,128], index: 8, kind: input, shape index: {}]
  %s9 = inlined_call_operand.vmem [shape: bf16[16,136], index: 9, kind: input, shape index: {}]
  %s10 = inlined_call_operand.hbm [shape: f32[1,512], index: 10, kind: output, shape index: {}]
  %s11 = sld [smem:[#allocation0]]
  $region82: #{tpu_custom_call.1} parent=0
    _
  %s13 = ssub.s32 1, %s11
  %s14 = scalar_select 0, %s13, %s11
  $region1: #{tpu_custom_call.1} parent=0
    #allocation3 [shape = 'u8[131072]{0}', space=vmem, size = 0x20000, scoped, tag = 'input window, operand 0, single buffered']
    #allocation4 [shape = 's32[1]{0}', space=sflag, size = 0x4, scoped, tag = 'scoped memory for tpu_custom_call.1']
    #allocation5 [shape = 's32[1]{0}', space=sflag, size = 0x4, scoped, tag = 'scoped memory for tpu_custom_call.1']
    #allocation6 [shape = 'u8[524288]{0}', space=vmem, size = 0x80000, scoped, tag = 'input window, operand 1, single buffered']
    #allocation7 [shape = 's32[1]{0}', space=sflag, size = 0x4, scoped, tag = 'scoped memory for tpu_custom_call.1']
    #allocation8 [shape = 'u8[524288]{0}', space=vmem, size = 0x80000, scoped, tag = 'input window, operand 2, single buffered']
    #allocation9 [shape = 'u8[2048]{0}', space=vmem, size = 0x800, scoped, tag = 'input window, operand 3, single buffered']
    #allocation10 [shape = 's32[1]{0}', space=sflag, size = 0x4, scoped, tag = 'scoped memory for tpu_custom_call.1']
    #allocation11 [shape = 'u8[16384]{0}', space=vmem, size = 0x4000, scoped, tag = 'input window, operand 4, single buffered']
    #allocation12 [shape = 'u8[4096]{0}', space=vmem, size = 0x1000, scoped, tag = 'input window, operand 6, single buffered']
    #allocation13 [shape = 's32[1]{0}', space=sflag, size = 0x4, scoped, tag = 'scoped memory for tpu_custom_call.1']
    #allocation14 [shape = 'u8[4096]{0}', space=vmem, size = 0x1000, scoped, tag = 'input window, operand 7, single buffered']
    #allocation15 [shape = 'u8[4096]{0}', space=vmem, size = 0x1000, scoped, tag = 'input window, operand 8, single buffered']
    #allocation16 [shape = 's32[1]{0}', space=sflag, size = 0x4, scoped, tag = 'scoped memory for tpu_custom_call.1']
    #allocation17 [shape = 'u8[2048]{0}', space=vmem, size = 0x800, scoped, tag = 'output window, operand 0, single buffered']
    %15 = vsyncpa [#allocation4], 0
    %16 = vsyncpa [#allocation7], 0
    %17 = vsyncpa [#allocation10], 0
    %18 = vsyncpa [#allocation13], 0
    %19 = vsyncpa [#allocation16], 0
    %20 = vsyncpa [#allocation5], 0
    // Predicated region
    $region2: #{tpu_custom_call.1} parent=1 // pred_check
      _
    $region3: #{tpu_custom_call.1} parent=1 // pred_check_branch
      %22 = sbr.rel (0) target = $region5
    $region4: #{tpu_custom_call.1} parent=1 // pred_region
      %s24 = ssub.s32 4096, 4096
      %25 = vsyncadd [#allocation4], %s24
      %s26 = sshll.u32 [#allocation3], 4
      %s27 = int_to_ptr.vmem [resolvable:$true] %s26
      %32 = dma.hbm_to_vmem [thread:$0]  %s0, 4096, %s27, [#allocation4], 512, 512, 32
    $region5: #{tpu_custom_call.1} parent=1 // pred_fallthru
      _
    // Predicated region
    $region6: #{tpu_custom_call.1} parent=1 // pred_check
      _
    $region7: #{tpu_custom_call.1} parent=1 // pred_check_branch
      %34 = sbr.rel (0) target = $region9
    $region8: #{tpu_custom_call.1} parent=1 // pred_region
      %s36 = ssub.s32 16384, 16384
      %37 = vsyncadd [#allocation7], %s36
      %s38 = sshll.u32 [#allocation6], 4
      %s39 = int_to_ptr.vmem [resolvable:$true] %s38
      %44 = dma.hbm_to_vmem [thread:$0]  %s1, 16384, %s39, [#allocation7], 256, 256, 16
    $region9: #{tpu_custom_call.1} parent=1 // pred_fallthru
      _
    // Predicated region
    $region10: #{tpu_custom_call.1} parent=1 // pred_check
      _
    $region11: #{tpu_custom_call.1} parent=1 // pred_check_branch
      %46 = sbr.rel (0) target = $region13
    $region12: #{tpu_custom_call.1} parent=1 // pred_region
      %s48 = ssub.s32 16384, 16384
      %49 = vsyncadd [#allocation7], %s48
      %s50 = sshll.u32 [#allocation8], 4
      %s51 = int_to_ptr.vmem [resolvable:$true] %s50
      %56 = dma.hbm_to_vmem [thread:$0]  %s2, 16384, %s51, [#allocation7], 256, 256, 16
    $region13: #{tpu_custom_call.1} parent=1 // pred_fallthru
      _
    // Predicated region
    $region14: #{tpu_custom_call.1} parent=1 // pred_check
      _
    $region15: #{tpu_custom_call.1} parent=1 // pred_check_branch
      %58 = sbr.rel (0) target = $region17
    $region16: #{tpu_custom_call.1} parent=1 // pred_region
      %s60 = ssub.s32 64, 64
      %61 = vsyncadd [#allocation10], %s60
      %s63 = sshll.u32 [#allocation9], 4
      %s64 = int_to_ptr.vmem [resolvable:$true] %s63
      %66 = dma.hbm_to_vmem [thread:$0]  %s3, 64, %s64, [#allocation10]
    $region17: #{tpu_custom_call.1} parent=1 // pred_fallthru
      _
    // Predicated region
    $region18: #{tpu_custom_call.1} parent=1 // pred_check
      _
    $region19: #{tpu_custom_call.1} parent=1 // pred_check_branch
      %68 = sbr.rel (0) target = $region21
    $region20: #{tpu_custom_call.1} parent=1 // pred_region
      %s70 = ssub.s32 512, 512
      %71 = vsyncadd [#allocation10], %s70
      %s72 = sshll.u32 [#allocation11], 4
      %s73 = int_to_ptr.vmem [resolvable:$true] %s72
      %78 = dma.hbm_to_vmem [thread:$0]  %s4, 512, %s73, [#allocation10], 64, 64, 4
    $region21: #{tpu_custom_call.1} parent=1 // pred_fallthru
      _
    // Predicated region
    $region22: #{tpu_custom_call.1} parent=1 // pred_check
      _
    $region23: #{tpu_custom_call.1} parent=1 // pred_check_branch
      %80 = sbr.rel (0) target = $region25
    $region24: #{tpu_custom_call.1} parent=1 // pred_region
      _
    $region25: #{tpu_custom_call.1} parent=1 // pred_fallthru
      _
    // Predicated region
    $region26: #{tpu_custom_call.1} parent=1 // pred_check
      _
    $region27: #{tpu_custom_call.1} parent=1 // pred_check_branch
      %82 = sbr.rel (0) target = $region29
    $region28: #{tpu_custom_call.1} parent=1 // pred_region
      %s84 = ssub.s32 128, 128
      %85 = vsyncadd [#allocation13], %s84
      %s86 = sshll.u32 [#allocation12], 4
      %s87 = int_to_ptr.vmem [resolvable:$true] %s86
      %92 = dma.hbm_to_vmem [thread:$0]  %s6, 128, %s87, [#allocation13], 64, 64, 4
    $region29: #{tpu_custom_call.1} parent=1 // pred_fallthru
      _
    // Predicated region
    $region30: #{tpu_custom_call.1} parent=1 // pred_check
      _
    $region31: #{tpu_custom_call.1} parent=1 // pred_check_branch
      %94 = sbr.rel (0) target = $region33
    $region32: #{tpu_custom_call.1} parent=1 // pred_region
      %s96 = ssub.s32 128, 128
      %97 = vsyncadd [#allocation13], %s96
      %s98 = sshll.u32 [#allocation14], 4
      %s99 = int_to_ptr.vmem [resolvable:$true] %s98
      %104 = dma.hbm_to_vmem [thread:$0]  %s7, 128, %s99, [#allocation13], 64, 64, 4
    $region33: #{tpu_custom_call.1} parent=1 // pred_fallthru
      _
    // Predicated region
    $region34: #{tpu_custom_call.1} parent=1 // pred_check
      _
    $region35: #{tpu_custom_call.1} parent=1 // pred_check_branch
      %106 = sbr.rel (0) target = $region37
    $region36: #{tpu_custom_call.1} parent=1 // pred_region
      %s108 = ssub.s32 128, 128
      %109 = vsyncadd [#allocation16], %s108
      %s110 = sshll.u32 [#allocation15], 4
      %s111 = int_to_ptr.vmem [resolvable:$true] %s110
      %116 = dma.hbm_to_vmem [thread:$0]  %s8, 128, %s111, [#allocation16], 64, 64, 4
    $region37: #{tpu_custom_call.1} parent=1 // pred_fallthru
      _
    // Predicated region
    $region38: #{tpu_custom_call.1} parent=1 // pred_check
      _
    $region39: #{tpu_custom_call.1} parent=1 // pred_check_branch
      %118 = sbr.rel (0) target = $region41
    $region40: #{tpu_custom_call.1} parent=1 // pred_region
      _
    $region41: #{tpu_custom_call.1} parent=1 // pred_fallthru
      _
    // Predicated region
    $region42: #{tpu_custom_call.1} parent=1 // pred_check
      _
    $region43: #{tpu_custom_call.1} parent=1 // pred_check_branch
      %120 = sbr.rel (0) target = $region45
    $region44: #{tpu_custom_call.1} parent=1 // pred_region
      %121 = dma.done [#allocation4], 4096
    $region45: #{tpu_custom_call.1} parent=1 // pred_fallthru
      _
    // Predicated region
    $region46: #{tpu_custom_call.1} parent=1 // pred_check
      _
    $region47: #{tpu_custom_call.1} parent=1 // pred_check_branch
      %123 = sbr.rel (0) target = $region49
    $region48: #{tpu_custom_call.1} parent=1 // pred_region
      %124 = dma.done [#allocation7], 16384
    $region49: #{tpu_custom_call.1} parent=1 // pred_fallthru
      _
    // Predicated region
    $region50: #{tpu_custom_call.1} parent=1 // pred_check
      _
    $region51: #{tpu_custom_call.1} parent=1 // pred_check_branch
      %126 = sbr.rel (0) target = $region53
    $region52: #{tpu_custom_call.1} parent=1 // pred_region
      %127 = dma.done [#allocation7], 16384
    $region53: #{tpu_custom_call.1} parent=1 // pred_fallthru
      _
    // Predicated region
    $region54: #{tpu_custom_call.1} parent=1 // pred_check
      _
    $region55: #{tpu_custom_call.1} parent=1 // pred_check_branch
      %129 = sbr.rel (0) target = $region57
    $region56: #{tpu_custom_call.1} parent=1 // pred_region
      %130 = dma.done [#allocation10], 64
    $region57: #{tpu_custom_call.1} parent=1 // pred_fallthru
      _
    // Predicated region
    $region58: #{tpu_custom_call.1} parent=1 // pred_check
      _
    $region59: #{tpu_custom_call.1} parent=1 // pred_check_branch
      %132 = sbr.rel (0) target = $region61
    $region60: #{tpu_custom_call.1} parent=1 // pred_region
      %133 = dma.done [#allocation10], 512
    $region61: #{tpu_custom_call.1} parent=1 // pred_fallthru
      _
    // Predicated region
    $region62: #{tpu_custom_call.1} parent=1 // pred_check
      _
    $region63: #{tpu_custom_call.1} parent=1 // pred_check_branch
      %135 = sbr.rel (0) target = $region65
    $region64: #{tpu_custom_call.1} parent=1 // pred_region
      %136 = dma.done [#allocation13], 128
    $region65: #{tpu_custom_call.1} parent=1 // pred_fallthru
      _
    // Predicated region
    $region66: #{tpu_custom_call.1} parent=1 // pred_check
      _
    $region67: #{tpu_custom_call.1} parent=1 // pred_check_branch
      %138 = sbr.rel (0) target = $region69
    $region68: #{tpu_custom_call.1} parent=1 // pred_region
      %139 = dma.done [#allocation13], 128
    $region69: #{tpu_custom_call.1} parent=1 // pred_fallthru
      _
    // Predicated region
    $region70: #{tpu_custom_call.1} parent=1 // pred_check
      _
    $region71: #{tpu_custom_call.1} parent=1 // pred_check_branch
      %141 = sbr.rel (0) target = $region73
    $region72: #{tpu_custom_call.1} parent=1 // pred_region
      %142 = dma.done [#allocation16], 128
    $region73: #{tpu_custom_call.1} parent=1 // pred_fallthru
      _
    %v144 = vld [vmem:[#allocation3] sm:$0xff]
    %v145 = vld [vmem:[#allocation3 + $0x8] sm:$0xff]
    %v146 = vld [vmem:[#allocation3 + $0x10] sm:$0xff]
    %v147 = vld [vmem:[#allocation3 + $0x18] sm:$0xff]
    %v148 = vld [vmem:[#allocation3 + $0x20] sm:$0xff]
    %v149 = vld [vmem:[#allocation3 + $0x28] sm:$0xff]
    %v150 = vld [vmem:[#allocation3 + $0x30] sm:$0xff]
    %v151 = vld [vmem:[#allocation3 + $0x38] sm:$0xff]
    %v152 = vld [vmem:[#allocation3 + $0x40] sm:$0xff]
    %v153 = vld [vmem:[#allocation3 + $0x48] sm:$0xff]
    %v154 = vld [vmem:[#allocation3 + $0x50] sm:$0xff]
    %v155 = vld [vmem:[#allocation3 + $0x58] sm:$0xff]
    %v156 = vld [vmem:[#allocation3 + $0x60] sm:$0xff]
    %v157 = vld [vmem:[#allocation3 + $0x68] sm:$0xff]
    %v158 = vld [vmem:[#allocation3 + $0x70] sm:$0xff]
    %v159 = vld [vmem:[#allocation3 + $0x78] sm:$0xff]
    %v160 = vld [vmem:[#allocation3 + $0x80] sm:$0xff]
    %v161 = vld [vmem:[#allocation3 + $0x88] sm:$0xff]
    %v162 = vld [vmem:[#allocation3 + $0x90] sm:$0xff]
    %v163 = vld [vmem:[#allocation3 + $0x98] sm:$0xff]
    %v164 = vld [vmem:[#allocation3 + $0xa0] sm:$0xff]
    %v165 = vld [vmem:[#allocation3 + $0xa8] sm:$0xff]
    %v166 = vld [vmem:[#allocation3 + $0xb0] sm:$0xff]
    %v167 = vld [vmem:[#allocation3 + $0xb8] sm:$0xff]
    %v168 = vld [vmem:[#allocation3 + $0xc0] sm:$0xff]
    %v169 = vld [vmem:[#allocation3 + $0xc8] sm:$0xff]
    %v170 = vld [vmem:[#allocation3 + $0xd0] sm:$0xff]
    %v171 = vld [vmem:[#allocation3 + $0xd8] sm:$0xff]
    %v172 = vld [vmem:[#allocation3 + $0xe0] sm:$0xff]
    %v173 = vld [vmem:[#allocation3 + $0xe8] sm:$0xff]
    %v174 = vld [vmem:[#allocation3 + $0xf0] sm:$0xff]
    %v175 = vld [vmem:[#allocation3 + $0xf8] sm:$0xff]
    %176 = vst [vmem:[#allocation2] sm:$0xff] %v144
    %177 = vst [vmem:[#allocation2 + $0x8] sm:$0xff] %v145
    %178 = vst [vmem:[#allocation2 + $0x10] sm:$0xff] %v146
    %179 = vst [vmem:[#allocation2 + $0x18] sm:$0xff] %v147
    %180 = vst [vmem:[#allocation2 + $0x20] sm:$0xff] %v148
    %181 = vst [vmem:[#allocation2 + $0x28] sm:$0xff] %v149
    %182 = vst [vmem:[#allocation2 + $0x30] sm:$0xff] %v150
    %183 = vst [vmem:[#allocation2 + $0x38] sm:$0xff] %v151
    %184 = vst [vmem:[#allocation2 + $0x40] sm:$0xff] %v152
    %185 = vst [vmem:[#allocation2 + $0x48] sm:$0xff] %v153
    %186 = vst [vmem:[#allocation2 + $0x50] sm:$0xff] %v154
    %187 = vst [vmem:[#allocation2 + $0x58] sm:$0xff] %v155
    %188 = vst [vmem:[#allocation2 + $0x60] sm:$0xff] %v156
    %189 = vst [vmem:[#allocation2 + $0x68] sm:$0xff] %v157
    %190 = vst [vmem:[#allocation2 + $0x70] sm:$0xff] %v158
    %191 = vst [vmem:[#allocation2 + $0x78] sm:$0xff] %v159
    %192 = vst [vmem:[#allocation2 + $0x80] sm:$0xff] %v160
    %193 = vst [vmem:[#allocation2 + $0x88] sm:$0xff] %v161
    %194 = vst [vmem:[#allocation2 + $0x90] sm:$0xff] %v162
    %195 = vst [vmem:[#allocation2 + $0x98] sm:$0xff] %v163
    %196 = vst [vmem:[#allocation2 + $0xa0] sm:$0xff] %v164
    %197 = vst [vmem:[#allocation2 + $0xa8] sm:$0xff] %v165
    %198 = vst [vmem:[#allocation2 + $0xb0] sm:$0xff] %v166
    %199 = vst [vmem:[#allocation2 + $0xb8] sm:$0xff] %v167
    %200 = vst [vmem:[#allocation2 + $0xc0] sm:$0xff] %v168
    %201 = vst [vmem:[#allocation2 + $0xc8] sm:$0xff] %v169
    %202 = vst [vmem:[#allocation2 + $0xd0] sm:$0xff] %v170
    %203 = vst [vmem:[#allocation2 + $0xd8] sm:$0xff] %v171
    %204 = vst [vmem:[#allocation2 + $0xe0] sm:$0xff] %v172
    %205 = vst [vmem:[#allocation2 + $0xe8] sm:$0xff] %v173
    %206 = vst [vmem:[#allocation2 + $0xf0] sm:$0xff] %v174
    %207 = vst [vmem:[#allocation2 + $0xf8] sm:$0xff] %v175
    %v208 = vld [vmem:[#allocation6] sm:$0xff]
    %v209 = vld [vmem:[#allocation6 + $0x8] sm:$0xff]
    %v210 = vld [vmem:[#allocation6 + $0x10] sm:$0xff]
    %v211 = vld [vmem:[#allocation6 + $0x18] sm:$0xff]
    %v212 = vld [vmem:[#allocation6 + $0x20] sm:$0xff]
    %v213 = vld [vmem:[#allocation6 + $0x28] sm:$0xff]
    %v214 = vld [vmem:[#allocation6 + $0x30] sm:$0xff]
    %v215 = vld [vmem:[#allocation6 + $0x38] sm:$0xff]
    %v216 = vld [vmem:[#allocation6 + $0x40] sm:$0xff]
    %v217 = vld [vmem:[#allocation6 + $0x48] sm:$0xff]
    %v218 = vld [vmem:[#allocation6 + $0x50] sm:$0xff]
    %v219 = vld [vmem:[#allocation6 + $0x58] sm:$0xff]
    %v220 = vld [vmem:[#allocation6 + $0x60] sm:$0xff]
    %v221 = vld [vmem:[#allocation6 + $0x68] sm:$0xff]
    %v222 = vld [vmem:[#allocation6 + $0x70] sm:$0xff]
    %v223 = vld [vmem:[#allocation6 + $0x78] sm:$0xff]
    %v224 = vld [vmem:[#allocation6 + $0x80] sm:$0xff]
    %v225 = vld [vmem:[#allocation6 + $0x88] sm:$0xff]
    %v226 = vld [vmem:[#allocation6 + $0x90] sm:$0xff]
    %v227 = vld [vmem:[#allocation6 + $0x98] sm:$0xff]
    %v228 = vld [vmem:[#allocation6 + $0xa0] sm:$0xff]
    %v229 = vld [vmem:[#allocation6 + $0xa8] sm:$0xff]
    %v230 = vld [vmem:[#allocation6 + $0xb0] sm:$0xff]
    %v231 = vld [vmem:[#allocation6 + $0xb8] sm:$0xff]
    %v232 = vld [vmem:[#allocation6 + $0xc0] sm:$0xff]
    %v233 = vld [vmem:[#allocation6 + $0xc8] sm:$0xff]
    %v234 = vld [vmem:[#allocation6 + $0xd0] sm:$0xff]
    %v235 = vld [vmem:[#allocation6 + $0xd8] sm:$0xff]
    %v236 = vld [vmem:[#allocation6 + $0xe0] sm:$0xff]
    %v237 = vld [vmem:[#allocation6 + $0xe8] sm:$0xff]
    %v238 = vld [vmem:[#allocation6 + $0xf0] sm:$0xff]
    %v239 = vld [vmem:[#allocation6 + $0xf8] sm:$0xff]
    %v240 = vld [vmem:[#allocation6 + $0x100] sm:$0xff]
    %v241 = vld [vmem:[#allocation6 + $0x108] sm:$0xff]
    %v242 = vld [vmem:[#allocation6 + $0x110] sm:$0xff]
    %v243 = vld [vmem:[#allocation6 + $0x118] sm:$0xff]
    %v244 = vld [vmem:[#allocation6 + $0x120] sm:$0xff]
    %v245 = vld [vmem:[#allocation6 + $0x128] sm:$0xff]
    %v246 = vld [vmem:[#allocation6 + $0x130] sm:$0xff]
    %v247 = vld [vmem:[#allocation6 + $0x138] sm:$0xff]
    %v248 = vld [vmem:[#allocation6 + $0x140] sm:$0xff]
    %v249 = vld [vmem:[#allocation6 + $0x148] sm:$0xff]
    %v250 = vld [vmem:[#allocation6 + $0x150] sm:$0xff]
    %v251 = vld [vmem:[#allocation6 + $0x158] sm:$0xff]
    %v252 = vld [vmem:[#allocation6 + $0x160] sm:$0xff]
    %v253 = vld [vmem:[#allocation6 + $0x168] sm:$0xff]
    %v254 = vld [vmem:[#allocation6 + $0x170] sm:$0xff]
    %v255 = vld [vmem:[#allocation6 + $0x178] sm:$0xff]
    %v256 = vld [vmem:[#allocation6 + $0x180] sm:$0xff]
    %v257 = vld [vmem:[#allocation6 + $0x188] sm:$0xff]
    %v258 = vld [vmem:[#allocation6 + $0x190] sm:$0xff]
    %v259 = vld [vmem:[#allocation6 + $0x198] sm:$0xff]
    %v260 = vld [vmem:[#allocation6 + $0x1a0] sm:$0xff]
    %v261 = vld [vmem:[#allocation6 + $0x1a8] sm:$0xff]
    %v262 = vld [vmem:[#allocation6 + $0x1b0] sm:$0xff]
    %v263 = vld [vmem:[#allocation6 + $0x1b8] sm:$0xff]
    %v264 = vld [vmem:[#allocation6 + $0x1c0] sm:$0xff]
    %v265 = vld [vmem:[#allocation6 + $0x1c8] sm:$0xff]
    %v266 = vld [vmem:[#allocation6 + $0x1d0] sm:$0xff]
    %v267 = vld [vmem:[#allocation6 + $0x1d8] sm:$0xff]
    %v268 = vld [vmem:[#allocation6 + $0x1e0] sm:$0xff]
    %v269 = vld [vmem:[#allocation6 + $0x1e8] sm:$0xff]
    %v270 = vld [vmem:[#allocation6 + $0x1f0] sm:$0xff]
    %v271 = vld [vmem:[#allocation6 + $0x1f8] sm:$0xff]
    %v272 = vld [vmem:[#allocation6 + $0x200] sm:$0xff]
    %v273 = vld [vmem:[#allocation6 + $0x208] sm:$0xff]
    %v274 = vld [vmem:[#allocation6 + $0x210] sm:$0xff]
    %v275 = vld [vmem:[#allocation6 + $0x218] sm:$0xff]
    %v276 = vld [vmem:[#allocation6 + $0x220] sm:$0xff]
    %v277 = vld [vmem:[#allocation6 + $0x228] sm:$0xff]
    %v278 = vld [vmem:[#allocation6 + $0x230] sm:$0xff]
    %v279 = vld [vmem:[#allocation6 + $0x238] sm:$0xff]
    %v280 = vld [vmem:[#allocation6 + $0x240] sm:$0xff]
    %v281 = vld [vmem:[#allocation6 + $0x248] sm:$0xff]
    %v282 = vld [vmem:[#allocation6 + $0x250] sm:$0xff]
    %v283 = vld [vmem:[#allocation6 + $0x258] sm:$0xff]
    %v284 = vld [vmem:[#allocation6 + $0x260] sm:$0xff]
    %v285 = vld [vmem:[#allocation6 + $0x268] sm:$0xff]
    %v286 = vld [vmem:[#allocation6 + $0x270] sm:$0xff]
    %v287 = vld [vmem:[#allocation6 + $0x278] sm:$0xff]
    %v288 = vld [vmem:[#allocation6 + $0x280] sm:$0xff]
    %v289 = vld [vmem:[#allocation6 + $0x288] sm:$0xff]
    %v290 = vld [vmem:[#allocation6 + $0x290] sm:$0xff]
    %v291 = vld [vmem:[#allocation6 + $0x298] sm:$0xff]
    %v292 = vld [vmem:[#allocation6 + $0x2a0] sm:$0xff]
    %v293 = vld [vmem:[#allocation6 + $0x2a8] sm:$0xff]
    %v294 = vld [vmem:[#allocation6 + $0x2b0] sm:$0xff]
    %v295 = vld [vmem:[#allocation6 + $0x2b8] sm:$0xff]
    %v296 = vld [vmem:[#allocation6 + $0x2c0] sm:$0xff]
    %v297 = vld [vmem:[#allocation6 + $0x2c8] sm:$0xff]
    %v298 = vld [vmem:[#allocation6 + $0x2d0] sm:$0xff]
    %v299 = vld [vmem:[#allocation6 + $0x2d8] sm:$0xff]
    %v300 = vld [vmem:[#allocation6 + $0x2e0] sm:$0xff]
    %v301 = vld [vmem:[#allocation6 + $0x2e8] sm:$0xff]
    %v302 = vld [vmem:[#allocation6 + $0x2f0] sm:$0xff]
    %v303 = vld [vmem:[#allocation6 + $0x2f8] sm:$0xff]
    %v304 = vld [vmem:[#allocation6 + $0x300] sm:$0xff]
    %v305 = vld [vmem:[#allocation6 + $0x308] sm:$0xff]
    %v306 = vld [vmem:[#allocation6 + $0x310] sm:$0xff]
    %v307 = vld [vmem:[#allocation6 + $0x318] sm:$0xff]
    %v308 = vld [vmem:[#allocation6 + $0x320] sm:$0xff]
    %v309 = vld [vmem:[#allocation6 + $0x328] sm:$0xff]
    %v310 = vld [vmem:[#allocation6 + $0x330] sm:$0xff]
    %v311 = vld [vmem:[#allocation6 + $0x338] sm:$0xff]
    %v312 = vld [vmem:[#allocation6 + $0x340] sm:$0xff]
    %v313 = vld [vmem:[#allocation6 + $0x348] sm:$0xff]
    %v314 = vld [vmem:[#allocation6 + $0x350] sm:$0xff]
    %v315 = vld [vmem:[#allocation6 + $0x358] sm:$0xff]
    %v316 = vld [vmem:[#allocation6 + $0x360] sm:$0xff]
    %v317 = vld [vmem:[#allocation6 + $0x368] sm:$0xff]
    %v318 = vld [vmem:[#allocation6 + $0x370] sm:$0xff]
    %v319 = vld [vmem:[#allocation6 + $0x378] sm:$0xff]
    %v320 = vld [vmem:[#allocation6 + $0x380] sm:$0xff]
    %v321 = vld [vmem:[#allocation6 + $0x388] sm:$0xff]
    %v322 = vld [vmem:[#allocation6 + $0x390] sm:$0xff]
    %v323 = vld [vmem:[#allocation6 + $0x398] sm:$0xff]
    %v324 = vld [vmem:[#allocation6 + $0x3a0] sm:$0xff]
    %v325 = vld [vmem:[#allocation6 + $0x3a8] sm:$0xff]
    %v326 = vld [vmem:[#allocation6 + $0x3b0] sm:$0xff]
    %v327 = vld [vmem:[#allocation6 + $0x3b8] sm:$0xff]
    %v328 = vld [vmem:[#allocation6 + $0x3c0] sm:$0xff]
    %v329 = vld [vmem:[#allocation6 + $0x3c8] sm:$0xff]
    %v330 = vld [vmem:[#allocation6 + $0x3d0] sm:$0xff]
    %v331 = vld [vmem:[#allocation6 + $0x3d8] sm:$0xff]
    %v332 = vld [vmem:[#allocation6 + $0x3e0] sm:$0xff]
    %v333 = vld [vmem:[#allocation6 + $0x3e8] sm:$0xff]
    %v334 = vld [vmem:[#allocation6 + $0x3f0] sm:$0xff]
    %v335 = vld [vmem:[#allocation6 + $0x3f8] sm:$0xff]
    %v336 = vld [vmem:[#allocation8] sm:$0xff]
    %v337 = vld [vmem:[#allocation8 + $0x8] sm:$0xff]
    %v338 = vld [vmem:[#allocation8 + $0x10] sm:$0xff]
    %v339 = vld [vmem:[#allocation8 + $0x18] sm:$0xff]
    %v340 = vld [vmem:[#allocation8 + $0x20] sm:$0xff]
    %v341 = vld [vmem:[#allocation8 + $0x28] sm:$0xff]
    %v342 = vld [vmem:[#allocation8 + $0x30] sm:$0xff]
    %v343 = vld [vmem:[#allocation8 + $0x38] sm:$0xff]
    %v344 = vld [vmem:[#allocation8 + $0x40] sm:$0xff]
    %v345 = vld [vmem:[#allocation8 + $0x48] sm:$0xff]
    %v346 = vld [vmem:[#allocation8 + $0x50] sm:$0xff]
    %v347 = vld [vmem:[#allocation8 + $0x58] sm:$0xff]
    %v348 = vld [vmem:[#allocation8 + $0x60] sm:$0xff]
    %v349 = vld [vmem:[#allocation8 + $0x68] sm:$0xff]
    %v350 = vld [vmem:[#allocation8 + $0x70] sm:$0xff]
    %v351 = vld [vmem:[#allocation8 + $0x78] sm:$0xff]
    %v352 = vld [vmem:[#allocation8 + $0x80] sm:$0xff]
    %v353 = vld [vmem:[#allocation8 + $0x88] sm:$0xff]
    %v354 = vld [vmem:[#allocation8 + $0x90] sm:$0xff]
    %v355 = vld [vmem:[#allocation8 + $0x98] sm:$0xff]
    %v356 = vld [vmem:[#allocation8 + $0xa0] sm:$0xff]
    %v357 = vld [vmem:[#allocation8 + $0xa8] sm:$0xff]
    %v358 = vld [vmem:[#allocation8 + $0xb0] sm:$0xff]
    %v359 = vld [vmem:[#allocation8 + $0xb8] sm:$0xff]
    %v360 = vld [vmem:[#allocation8 + $0xc0] sm:$0xff]
    %v361 = vld [vmem:[#allocation8 + $0xc8] sm:$0xff]
    %v362 = vld [vmem:[#allocation8 + $0xd0] sm:$0xff]
    %v363 = vld [vmem:[#allocation8 + $0xd8] sm:$0xff]
    %v364 = vld [vmem:[#allocation8 + $0xe0] sm:$0xff]
    %v365 = vld [vmem:[#allocation8 + $0xe8] sm:$0xff]
    %v366 = vld [vmem:[#allocation8 + $0xf0] sm:$0xff]
    %v367 = vld [vmem:[#allocation8 + $0xf8] sm:$0xff]
    %v368 = vld [vmem:[#allocation8 + $0x100] sm:$0xff]
    %v369 = vld [vmem:[#allocation8 + $0x108] sm:$0xff]
    %v370 = vld [vmem:[#allocation8 + $0x110] sm:$0xff]
    %v371 = vld [vmem:[#allocation8 + $0x118] sm:$0xff]
    %v372 = vld [vmem:[#allocation8 + $0x120] sm:$0xff]
    %v373 = vld [vmem:[#allocation8 + $0x128] sm:$0xff]
    %v374 = vld [vmem:[#allocation8 + $0x130] sm:$0xff]
    %v375 = vld [vmem:[#allocation8 + $0x138] sm:$0xff]
    %v376 = vld [vmem:[#allocation8 + $0x140] sm:$0xff]
    %v377 = vld [vmem:[#allocation8 + $0x148] sm:$0xff]
    %v378 = vld [vmem:[#allocation8 + $0x150] sm:$0xff]
    %v379 = vld [vmem:[#allocation8 + $0x158] sm:$0xff]
    %v380 = vld [vmem:[#allocation8 + $0x160] sm:$0xff]
    %v381 = vld [vmem:[#allocation8 + $0x168] sm:$0xff]
    %v382 = vld [vmem:[#allocation8 + $0x170] sm:$0xff]
    %v383 = vld [vmem:[#allocation8 + $0x178] sm:$0xff]
    %v384 = vld [vmem:[#allocation8 + $0x180] sm:$0xff]
    %v385 = vld [vmem:[#allocation8 + $0x188] sm:$0xff]
    %v386 = vld [vmem:[#allocation8 + $0x190] sm:$0xff]
    %v387 = vld [vmem:[#allocation8 + $0x198] sm:$0xff]
    %v388 = vld [vmem:[#allocation8 + $0x1a0] sm:$0xff]
    %v389 = vld [vmem:[#allocation8 + $0x1a8] sm:$0xff]
    %v390 = vld [vmem:[#allocation8 + $0x1b0] sm:$0xff]
    %v391 = vld [vmem:[#allocation8 + $0x1b8] sm:$0xff]
    %v392 = vld [vmem:[#allocation8 + $0x1c0] sm:$0xff]
    %v393 = vld [vmem:[#allocation8 + $0x1c8] sm:$0xff]
    %v394 = vld [vmem:[#allocation8 + $0x1d0] sm:$0xff]
    %v395 = vld [vmem:[#allocation8 + $0x1d8] sm:$0xff]
    %v396 = vld [vmem:[#allocation8 + $0x1e0] sm:$0xff]
    %v397 = vld [vmem:[#allocation8 + $0x1e8] sm:$0xff]
    %v398 = vld [vmem:[#allocation8 + $0x1f0] sm:$0xff]
    %v399 = vld [vmem:[#allocation8 + $0x1f8] sm:$0xff]
    %v400 = vld [vmem:[#allocation8 + $0x200] sm:$0xff]
    %v401 = vld [vmem:[#allocation8 + $0x208] sm:$0xff]
    %v402 = vld [vmem:[#allocation8 + $0x210] sm:$0xff]
    %v403 = vld [vmem:[#allocation8 + $0x218] sm:$0xff]
    %v404 = vld [vmem:[#allocation8 + $0x220] sm:$0xff]
    %v405 = vld [vmem:[#allocation8 + $0x228] sm:$0xff]
    %v406 = vld [vmem:[#allocation8 + $0x230] sm:$0xff]
    %v407 = vld [vmem:[#allocation8 + $0x238] sm:$0xff]
    %v408 = vld [vmem:[#allocation8 + $0x240] sm:$0xff]
    %v409 = vld [vmem:[#allocation8 + $0x248] sm:$0xff]
    %v410 = vld [vmem:[#allocation8 + $0x250] sm:$0xff]
    %v411 = vld [vmem:[#allocation8 + $0x258] sm:$0xff]
    %v412 = vld [vmem:[#allocation8 + $0x260] sm:$0xff]
    %v413 = vld [vmem:[#allocation8 + $0x268] sm:$0xff]
    %v414 = vld [vmem:[#allocation8 + $0x270] sm:$0xff]
    %v415 = vld [vmem:[#allocation8 + $0x278] sm:$0xff]
    %v416 = vld [vmem:[#allocation8 + $0x280] sm:$0xff]
    %v417 = vld [vmem:[#allocation8 + $0x288] sm:$0xff]
    %v418 = vld [vmem:[#allocation8 + $0x290] sm:$0xff]
    %v419 = vld [vmem:[#allocation8 + $0x298] sm:$0xff]
    %v420 = vld [vmem:[#allocation8 + $0x2a0] sm:$0xff]
    %v421 = vld [vmem:[#allocation8 + $0x2a8] sm:$0xff]
    %v422 = vld [vmem:[#allocation8 + $0x2b0] sm:$0xff]
    %v423 = vld [vmem:[#allocation8 + $0x2b8] sm:$0xff]
    %v424 = vld [vmem:[#allocation8 + $0x2c0] sm:$0xff]
    %v425 = vld [vmem:[#allocation8 + $0x2c8] sm:$0xff]
    %v426 = vld [vmem:[#allocation8 + $0x2d0] sm:$0xff]
    %v427 = vld [vmem:[#allocation8 + $0x2d8] sm:$0xff]
    %v428 = vld [vmem:[#allocation8 + $0x2e0] sm:$0xff]
    %v429 = vld [vmem:[#allocation8 + $0x2e8] sm:$0xff]
    %v430 = vld [vmem:[#allocation8 + $0x2f0] sm:$0xff]
    %v431 = vld [vmem:[#allocation8 + $0x2f8] sm:$0xff]
    %v432 = vld [vmem:[#allocation8 + $0x300] sm:$0xff]
    %v433 = vld [vmem:[#allocation8 + $0x308] sm:$0xff]
    %v434 = vld [vmem:[#allocation8 + $0x310] sm:$0xff]
    %v435 = vld [vmem:[#allocation8 + $0x318] sm:$0xff]
    %v436 = vld [vmem:[#allocation8 + $0x320] sm:$0xff]
    %v437 = vld [vmem:[#allocation8 + $0x328] sm:$0xff]
    %v438 = vld [vmem:[#allocation8 + $0x330] sm:$0xff]
    %v439 = vld [vmem:[#allocation8 + $0x338] sm:$0xff]
    %v440 = vld [vmem:[#allocation8 + $0x340] sm:$0xff]
    %v441 = vld [vmem:[#allocation8 + $0x348] sm:$0xff]
    %v442 = vld [vmem:[#allocation8 + $0x350] sm:$0xff]
    %v443 = vld [vmem:[#allocation8 + $0x358] sm:$0xff]
    %v444 = vld [vmem:[#allocation8 + $0x360] sm:$0xff]
    %v445 = vld [vmem:[#allocation8 + $0x368] sm:$0xff]
    %v446 = vld [vmem:[#allocation8 + $0x370] sm:$0xff]
    %v447 = vld [vmem:[#allocation8 + $0x378] sm:$0xff]
    %v448 = vld [vmem:[#allocation8 + $0x380] sm:$0xff]
    %v449 = vld [vmem:[#allocation8 + $0x388] sm:$0xff]
    %v450 = vld [vmem:[#allocation8 + $0x390] sm:$0xff]
    %v451 = vld [vmem:[#allocation8 + $0x398] sm:$0xff]
    %v452 = vld [vmem:[#allocation8 + $0x3a0] sm:$0xff]
    %v453 = vld [vmem:[#allocation8 + $0x3a8] sm:$0xff]
    %v454 = vld [vmem:[#allocation8 + $0x3b0] sm:$0xff]
    %v455 = vld [vmem:[#allocation8 + $0x3b8] sm:$0xff]
    %v456 = vld [vmem:[#allocation8 + $0x3c0] sm:$0xff]
    %v457 = vld [vmem:[#allocation8 + $0x3c8] sm:$0xff]
    %v458 = vld [vmem:[#allocation8 + $0x3d0] sm:$0xff]
    %v459 = vld [vmem:[#allocation8 + $0x3d8] sm:$0xff]
    %v460 = vld [vmem:[#allocation8 + $0x3e0] sm:$0xff]
    %v461 = vld [vmem:[#allocation8 + $0x3e8] sm:$0xff]
    %v462 = vld [vmem:[#allocation8 + $0x3f0] sm:$0xff]
    %v463 = vld [vmem:[#allocation8 + $0x3f8] sm:$0xff]
    %v464 = vld [vmem:[#allocation9] sm:$0xf]
    %v465 = vld [vmem:[#allocation2] sm:$0xff]
    %v466 = vld [vmem:[#allocation2 + $0x8] sm:$0xff]
    %v467 = vld [vmem:[#allocation2 + $0x10] sm:$0xff]
    %v468 = vld [vmem:[#allocation2 + $0x18] sm:$0xff]
    %v469 = vld [vmem:[#allocation2 + $0x20] sm:$0xff]
    %v470 = vld [vmem:[#allocation2 + $0x28] sm:$0xff]
    %v471 = vld [vmem:[#allocation2 + $0x30] sm:$0xff]
    %v472 = vld [vmem:[#allocation2 + $0x38] sm:$0xff]
    %v473 = vld [vmem:[#allocation2 + $0x40] sm:$0xff]
    %v474 = vld [vmem:[#allocation2 + $0x48] sm:$0xff]
    %v475 = vld [vmem:[#allocation2 + $0x50] sm:$0xff]
    %v476 = vld [vmem:[#allocation2 + $0x58] sm:$0xff]
    %v477 = vld [vmem:[#allocation2 + $0x60] sm:$0xff]
    %v478 = vld [vmem:[#allocation2 + $0x68] sm:$0xff]
    %v479 = vld [vmem:[#allocation2 + $0x70] sm:$0xff]
    %v480 = vld [vmem:[#allocation2 + $0x78] sm:$0xff]
    %v481 = vld [vmem:[#allocation2 + $0x80] sm:$0xff]
    %v482 = vld [vmem:[#allocation2 + $0x88] sm:$0xff]
    %v483 = vld [vmem:[#allocation2 + $0x90] sm:$0xff]
    %v484 = vld [vmem:[#allocation2 + $0x98] sm:$0xff]
    %v485 = vld [vmem:[#allocation2 + $0xa0] sm:$0xff]
    %v486 = vld [vmem:[#allocation2 + $0xa8] sm:$0xff]
    %v487 = vld [vmem:[#allocation2 + $0xb0] sm:$0xff]
    %v488 = vld [vmem:[#allocation2 + $0xb8] sm:$0xff]
    %v489 = vld [vmem:[#allocation2 + $0xc0] sm:$0xff]
    %v490 = vld [vmem:[#allocation2 + $0xc8] sm:$0xff]
    %v491 = vld [vmem:[#allocation2 + $0xd0] sm:$0xff]
    %v492 = vld [vmem:[#allocation2 + $0xd8] sm:$0xff]
    %v493 = vld [vmem:[#allocation2 + $0xe0] sm:$0xff]
    %v494 = vld [vmem:[#allocation2 + $0xe8] sm:$0xff]
    %v495 = vld [vmem:[#allocation2 + $0xf0] sm:$0xff]
    %v496 = vld [vmem:[#allocation2 + $0xf8] sm:$0xff]
    %v497 = vpack.c.bf16 %v469, %v465
    %v498 = vpack.c.bf16 %v470, %v466
    %v499 = vpack.c.bf16 %v471, %v467
    %v500 = vpack.c.bf16 %v472, %v468
    %v501 = vpack.c.bf16 %v477, %v473
    %v502 = vpack.c.bf16 %v478, %v474
    %v503 = vpack.c.bf16 %v479, %v475
    %v504 = vpack.c.bf16 %v480, %v476
    %v505 = vpack.c.bf16 %v485, %v481
    %v506 = vpack.c.bf16 %v486, %v482
    %v507 = vpack.c.bf16 %v487, %v483
    %v508 = vpack.c.bf16 %v488, %v484
    %v509 = vpack.c.bf16 %v493, %v489
    %v510 = vpack.c.bf16 %v494, %v490
    %v511 = vpack.c.bf16 %v495, %v491
    %v512 = vpack.c.bf16 %v496, %v492
    %v513 = vld [vmem:[#allocation11] sm:$0xf]
    %v514 = vld [vmem:[#allocation11 + $0x4] sm:$0xf]
    %v515 = vld [vmem:[#allocation11 + $0x8] sm:$0xf]
    %v516 = vld [vmem:[#allocation11 + $0xc] sm:$0xf]
    %v517 = vld [vmem:[#allocation11 + $0x10] sm:$0xf]
    %v518 = vld [vmem:[#allocation11 + $0x14] sm:$0xf]
    %v519 = vld [vmem:[#allocation11 + $0x18] sm:$0xf]
    %v520 = vld [vmem:[#allocation11 + $0x1c] sm:$0xf]
    %v529 = vunpack.c.l.b16 %v513
    %v530 = vunpack.c.l.b16 %v514
    %v531 = vunpack.c.l.b16 %v515
    %v532 = vunpack.c.l.b16 %v516
    %v533 = vunpack.c.l.b16 %v517
    %v534 = vunpack.c.l.b16 %v518
    %v535 = vunpack.c.l.b16 %v519
    %v536 = vunpack.c.l.b16 %v520
    %v537 = vpack.c.b16 %v530, %v529
    %v538 = vpack.c.b16 %v532, %v531
    %v539 = vpack.c.b16 %v534, %v533
    %v540 = vpack.c.b16 %v536, %v535
    %vm541 = vcmask 523264
    %v543 = vsel %vm541, %v537, 0
    %v546 = vsel %vm541, %v538, 0
    %v549 = vsel %vm541, %v539, 0
    %v552 = vsel %vm541, %v540, 0
    %554 = vmatprep.subr.bf16.mxu0 %v498
    %555 = vmatpush1.bf16.msra.mxu0 %v497
    %556 = vmatprep.subr.bf16.mxu0 %v502
    %557 = vmatpush1.bf16.msra.mxu0 %v501
    %558 = vmatprep.subr.bf16.mxu0 %v506
    %559 = vmatpush1.bf16.msra.mxu0 %v505
    %560 = vmatprep.subr.bf16.mxu0 %v510
    %561 = vmatpush1.bf16.msra.mxu0 %v509
    %562 = vmatprep.subr.bf16.mxu0 0
    %563 = vmatpush1.bf16.msra.mxu0 0
    %564 = vmatprep.subr.bf16.mxu0 0
    %565 = vmatpush1.bf16.msra.mxu0 0
    %566 = vmatprep.subr.bf16.mxu0 0
    %567 = vmatpush1.bf16.msra.mxu0 0
    %568 = vmatprep.subr.bf16.mxu0 0
    %569 = vmatpush1.bf16.msra.mxu0 0
    %570 = vmatprep.subr.bf16.mxu0 0
    %571 = vmatpush1.bf16.msra.mxu0 0
    %572 = vmatprep.subr.bf16.mxu0 0
    %573 = vmatpush1.bf16.msra.mxu0 0
    %574 = vmatprep.subr.bf16.mxu0 0
    %575 = vmatpush1.bf16.msra.mxu0 0
    %576 = vmatprep.subr.bf16.mxu0 0
    %577 = vmatpush1.bf16.msra.mxu0 0
    %578 = vmatprep.subr.bf16.mxu0 0
    %579 = vmatpush1.bf16.msra.mxu0 0
    %580 = vmatprep.subr.bf16.mxu0 0
    %581 = vmatpush1.bf16.msra.mxu0 0
    %582 = vmatprep.subr.bf16.mxu0 0
    %583 = vmatpush1.bf16.msra.mxu0 0
    %584 = vmatprep.subr.bf16.mxu0 0
    %585 = vmatpush1.bf16.msra.mxu0 0
    %586 = vmatprep.mubr.bf16.mxu0 0
    %587 = vmatmul.mubr.bf16.gmra.mrb[0].mxu0 %v543
    %v588 = vpop.f32.mrb[0].mxu0
    %v589 = vadd.f32 0.0, %v588
    %v590 = vpop.f32.mrb[0].mxu0
    %v591 = vadd.f32 0.0, %v590
    %v592 = vpop.f32.mrb[0].mxu0
    %v593 = vadd.f32 0.0, %v592
    %v594 = vpop.f32.mrb[0].mxu0
    %v595 = vadd.f32 0.0, %v594
    %596 = vmatprep.mubr.bf16.mxu0 0
    %597 = vmatmul.mubr.bf16.gmra.mrb[0].mxu0 %v546
    %v598 = vpop.f32.mrb[0].mxu0
    %v599 = vadd.f32 0.0, %v598
    %v600 = vpop.f32.mrb[0].mxu0
    %v601 = vadd.f32 0.0, %v600
    %v602 = vpop.f32.mrb[0].mxu0
    %v603 = vadd.f32 0.0, %v602
    %v604 = vpop.f32.mrb[0].mxu0
    %v605 = vadd.f32 0.0, %v604
    %606 = vmatprep.mubr.bf16.mxu0 0
    %607 = vmatmul.mubr.bf16.gmra.mrb[0].mxu0 %v549
    %v608 = vpop.f32.mrb[0].mxu0
    %v609 = vadd.f32 0.0, %v608
    %v610 = vpop.f32.mrb[0].mxu0
    %v611 = vadd.f32 0.0, %v610
    %v612 = vpop.f32.mrb[0].mxu0
    %v613 = vadd.f32 0.0, %v612
    %v614 = vpop.f32.mrb[0].mxu0
    %v615 = vadd.f32 0.0, %v614
    %616 = vmatprep.mubr.bf16.mxu0 0
    %617 = vmatmul.mubr.bf16.gmra.mrb[0].mxu0 %v552
    %v618 = vpop.f32.mrb[0].mxu0
    %v619 = vadd.f32 0.0, %v618
    %v620 = vpop.f32.mrb[0].mxu0
    %v621 = vadd.f32 0.0, %v620
    %v622 = vpop.f32.mrb[0].mxu0
    %v623 = vadd.f32 0.0, %v622
    %v624 = vpop.f32.mrb[0].mxu0
    %v625 = vadd.f32 0.0, %v624
    %626 = vdwg.mxu0
    %627 = vmatprep.subr.bf16.mxu0 %v500
    %628 = vmatpush1.bf16.msra.mxu0 %v499
    %629 = vmatprep.subr.bf16.mxu0 %v504
    %630 = vmatpush1.bf16.msra.mxu0 %v503
    %631 = vmatprep.subr.bf16.mxu0 %v508
    %632 = vmatpush1.bf16.msra.mxu0 %v507
    %633 = vmatprep.subr.bf16.mxu0 %v512
    %634 = vmatpush1.bf16.msra.mxu0 %v511
    %635 = vmatprep.subr.bf16.mxu0 0
    %636 = vmatpush1.bf16.msra.mxu0 0
    %637 = vmatprep.subr.bf16.mxu0 0
    %638 = vmatpush1.bf16.msra.mxu0 0
    %639 = vmatprep.subr.bf16.mxu0 0
    %640 = vmatpush1.bf16.msra.mxu0 0
    %641 = vmatprep.subr.bf16.mxu0 0
    %642 = vmatpush1.bf16.msra.mxu0 0
    %643 = vmatprep.subr.bf16.mxu0 0
    %644 = vmatpush1.bf16.msra.mxu0 0
    %645 = vmatprep.subr.bf16.mxu0 0
    %646 = vmatpush1.bf16.msra.mxu0 0
    %647 = vmatprep.subr.bf16.mxu0 0
    %648 = vmatpush1.bf16.msra.mxu0 0
    %649 = vmatprep.subr.bf16.mxu0 0
    %650 = vmatpush1.bf16.msra.mxu0 0
    %651 = vmatprep.subr.bf16.mxu0 0
    %652 = vmatpush1.bf16.msra.mxu0 0
    %653 = vmatprep.subr.bf16.mxu0 0
    %654 = vmatpush1.bf16.msra.mxu0 0
    %655 = vmatprep.subr.bf16.mxu0 0
    %656 = vmatpush1.bf16.msra.mxu0 0
    %657 = vmatprep.subr.bf16.mxu0 0
    %658 = vmatpush1.bf16.msra.mxu0 0
    %659 = vmatprep.mubr.bf16.mxu0 0
    %660 = vmatmul.mubr.bf16.gmra.mrb[0].mxu0 %v543
    %v661 = vpop.f32.mrb[0].mxu0
    %v662 = vadd.f32 0.0, %v661
    %v663 = vpop.f32.mrb[0].mxu0
    %v664 = vadd.f32 0.0, %v663
    %v665 = vpop.f32.mrb[0].mxu0
    %v666 = vadd.f32 0.0, %v665
    %v667 = vpop.f32.mrb[0].mxu0
    %v668 = vadd.f32 0.0, %v667
    %669 = vmatprep.mubr.bf16.mxu0 0
    %670 = vmatmul.mubr.bf16.gmra.mrb[0].mxu0 %v546
    %v671 = vpop.f32.mrb[0].mxu0
    %v672 = vadd.f32 0.0, %v671
    %v673 = vpop.f32.mrb[0].mxu0
    %v674 = vadd.f32 0.0, %v673
    %v675 = vpop.f32.mrb[0].mxu0
    %v676 = vadd.f32 0.0, %v675
    %v677 = vpop.f32.mrb[0].mxu0
    %v678 = vadd.f32 0.0, %v677
    %679 = vmatprep.mubr.bf16.mxu0 0
    %680 = vmatmul.mubr.bf16.gmra.mrb[0].mxu0 %v549
    %v681 = vpop.f32.mrb[0].mxu0
    %v682 = vadd.f32 0.0, %v681
    %v683 = vpop.f32.mrb[0].mxu0
    %v684 = vadd.f32 0.0, %v683
    %v685 = vpop.f32.mrb[0].mxu0
    %v686 = vadd.f32 0.0, %v685
    %v687 = vpop.f32.mrb[0].mxu0
    %v688 = vadd.f32 0.0, %v687
    %689 = vmatprep.mubr.bf16.mxu0 0
    %690 = vmatmul.mubr.bf16.gmra.mrb[0].mxu0 %v552
    %v691 = vpop.f32.mrb[0].mxu0
    %v692 = vadd.f32 0.0, %v691
    %v693 = vpop.f32.mrb[0].mxu0
    %v694 = vadd.f32 0.0, %v693
    %v695 = vpop.f32.mrb[0].mxu0
    %v696 = vadd.f32 0.0, %v695
    %v697 = vpop.f32.mrb[0].mxu0
    %v698 = vadd.f32 0.0, %v697
    %699 = vdwg.mxu0
    %v700 = vpack.c.bf16 %v593, %v589
    %v701 = vpack.c.bf16 %v595, %v591
    %v702 = vpack.c.bf16 %v666, %v662
    %v703 = vpack.c.bf16 %v668, %v664
    %v704 = vpack.c.bf16 %v603, %v599
    %v705 = vpack.c.bf16 %v605, %v601
    %v706 = vpack.c.bf16 %v676, %v672
    %v707 = vpack.c.bf16 %v678, %v674
    %v708 = vpack.c.bf16 %v613, %v609
    %v709 = vpack.c.bf16 %v615, %v611
    %v710 = vpack.c.bf16 %v686, %v682
    %v711 = vpack.c.bf16 %v688, %v684
    %v712 = vpack.c.bf16 %v623, %v619
    %v713 = vpack.c.bf16 %v625, %v621
    %v714 = vpack.c.bf16 %v696, %v692
    %v715 = vpack.c.bf16 %v698, %v694
    %v844 = vunpack.c.l.b16 %v336
    %v845 = vunpack.c.h.b16 %v336
    %v846 = vunpack.c.l.b16 %v337
    %v847 = vunpack.c.h.b16 %v337
    %v848 = vunpack.c.l.b16 %v338
    %v849 = vunpack.c.h.b16 %v338
    %v850 = vunpack.c.l.b16 %v339
    %v851 = vunpack.c.h.b16 %v339
    %v852 = vunpack.c.l.b16 %v340
    %v853 = vunpack.c.h.b16 %v340
    %v854 = vunpack.c.l.b16 %v341
    %v855 = vunpack.c.h.b16 %v341
    %v856 = vunpack.c.l.b16 %v342
    %v857 = vunpack.c.h.b16 %v342
    %v858 = vunpack.c.l.b16 %v343
    %v859 = vunpack.c.h.b16 %v343
    %v860 = vunpack.c.l.b16 %v344
    %v861 = vunpack.c.h.b16 %v344
    %v862 = vunpack.c.l.b16 %v345
    %v863 = vunpack.c.h.b16 %v345
    %v864 = vunpack.c.l.b16 %v346
    %v865 = vunpack.c.h.b16 %v346
    %v866 = vunpack.c.l.b16 %v347
    %v867 = vunpack.c.h.b16 %v347
    %v868 = vunpack.c.l.b16 %v348
    %v869 = vunpack.c.h.b16 %v348
    %v870 = vunpack.c.l.b16 %v349
    %v871 = vunpack.c.h.b16 %v349
    %v872 = vunpack.c.l.b16 %v350
    %v873 = vunpack.c.h.b16 %v350
    %v874 = vunpack.c.l.b16 %v351
    %v875 = vunpack.c.h.b16 %v351
    %v876 = vunpack.c.l.b16 %v352
    %v877 = vunpack.c.h.b16 %v352
    %v878 = vunpack.c.l.b16 %v353
    %v879 = vunpack.c.h.b16 %v353
    %v880 = vunpack.c.l.b16 %v354
    %v881 = vunpack.c.h.b16 %v354
    %v882 = vunpack.c.l.b16 %v355
    %v883 = vunpack.c.h.b16 %v355
    %v884 = vunpack.c.l.b16 %v356
    %v885 = vunpack.c.h.b16 %v356
    %v886 = vunpack.c.l.b16 %v357
    %v887 = vunpack.c.h.b16 %v357
    %v888 = vunpack.c.l.b16 %v358
    %v889 = vunpack.c.h.b16 %v358
    %v890 = vunpack.c.l.b16 %v359
    %v891 = vunpack.c.h.b16 %v359
    %v892 = vunpack.c.l.b16 %v360
    %v893 = vunpack.c.h.b16 %v360
    %v894 = vunpack.c.l.b16 %v361
    %v895 = vunpack.c.h.b16 %v361
    %v896 = vunpack.c.l.b16 %v362
    %v897 = vunpack.c.h.b16 %v362
    %v898 = vunpack.c.l.b16 %v363
    %v899 = vunpack.c.h.b16 %v363
    %v900 = vunpack.c.l.b16 %v364
    %v901 = vunpack.c.h.b16 %v364
    %v902 = vunpack.c.l.b16 %v365
    %v903 = vunpack.c.h.b16 %v365
    %v904 = vunpack.c.l.b16 %v366
    %v905 = vunpack.c.h.b16 %v366
    %v906 = vunpack.c.l.b16 %v367
    %v907 = vunpack.c.h.b16 %v367
    %v908 = vunpack.c.l.b16 %v368
    %v909 = vunpack.c.h.b16 %v368
    %v910 = vunpack.c.l.b16 %v369
    %v911 = vunpack.c.h.b16 %v369
    %v912 = vunpack.c.l.b16 %v370
    %v913 = vunpack.c.h.b16 %v370
    %v914 = vunpack.c.l.b16 %v371
    %v915 = vunpack.c.h.b16 %v371
    %v916 = vunpack.c.l.b16 %v372
    %v917 = vunpack.c.h.b16 %v372
    %v918 = vunpack.c.l.b16 %v373
    %v919 = vunpack.c.h.b16 %v373
    %v920 = vunpack.c.l.b16 %v374
    %v921 = vunpack.c.h.b16 %v374
    %v922 = vunpack.c.l.b16 %v375
    %v923 = vunpack.c.h.b16 %v375
    %v924 = vunpack.c.l.b16 %v376
    %v925 = vunpack.c.h.b16 %v376
    %v926 = vunpack.c.l.b16 %v377
    %v927 = vunpack.c.h.b16 %v377
    %v928 = vunpack.c.l.b16 %v378
    %v929 = vunpack.c.h.b16 %v378
    %v930 = vunpack.c.l.b16 %v379
    %v931 = vunpack.c.h.b16 %v379
    %v932 = vunpack.c.l.b16 %v380
    %v933 = vunpack.c.h.b16 %v380
    %v934 = vunpack.c.l.b16 %v381
    %v935 = vunpack.c.h.b16 %v381
    %v936 = vunpack.c.l.b16 %v382
    %v937 = vunpack.c.h.b16 %v382
    %v938 = vunpack.c.l.b16 %v383
    %v939 = vunpack.c.h.b16 %v383
    %v940 = vunpack.c.l.b16 %v384
    %v941 = vunpack.c.h.b16 %v384
    %v942 = vunpack.c.l.b16 %v385
    %v943 = vunpack.c.h.b16 %v385
    %v944 = vunpack.c.l.b16 %v386
    %v945 = vunpack.c.h.b16 %v386
    %v946 = vunpack.c.l.b16 %v387
    %v947 = vunpack.c.h.b16 %v387
    %v948 = vunpack.c.l.b16 %v388
    %v949 = vunpack.c.h.b16 %v388
    %v950 = vunpack.c.l.b16 %v389
    %v951 = vunpack.c.h.b16 %v389
    %v952 = vunpack.c.l.b16 %v390
    %v953 = vunpack.c.h.b16 %v390
    %v954 = vunpack.c.l.b16 %v391
    %v955 = vunpack.c.h.b16 %v391
    %v956 = vunpack.c.l.b16 %v392
    %v957 = vunpack.c.h.b16 %v392
    %v958 = vunpack.c.l.b16 %v393
    %v959 = vunpack.c.h.b16 %v393
    %v960 = vunpack.c.l.b16 %v394
    %v961 = vunpack.c.h.b16 %v394
    %v962 = vunpack.c.l.b16 %v395
    %v963 = vunpack.c.h.b16 %v395
    %v964 = vunpack.c.l.b16 %v396
    %v965 = vunpack.c.h.b16 %v396
    %v966 = vunpack.c.l.b16 %v397
    %v967 = vunpack.c.h.b16 %v397
    %v968 = vunpack.c.l.b16 %v398
    %v969 = vunpack.c.h.b16 %v398
    %v970 = vunpack.c.l.b16 %v399
    %v971 = vunpack.c.h.b16 %v399
    %v972 = vunpack.c.l.b16 %v400
    %v973 = vunpack.c.h.b16 %v400
    %v974 = vunpack.c.l.b16 %v401
    %v975 = vunpack.c.h.b16 %v401
    %v976 = vunpack.c.l.b16 %v402
    %v977 = vunpack.c.h.b16 %v402
    %v978 = vunpack.c.l.b16 %v403
    %v979 = vunpack.c.h.b16 %v403
    %v980 = vunpack.c.l.b16 %v404
    %v981 = vunpack.c.h.b16 %v404
    %v982 = vunpack.c.l.b16 %v405
    %v983 = vunpack.c.h.b16 %v405
    %v984 = vunpack.c.l.b16 %v406
    %v985 = vunpack.c.h.b16 %v406
    %v986 = vunpack.c.l.b16 %v407
    %v987 = vunpack.c.h.b16 %v407
    %v988 = vunpack.c.l.b16 %v408
    %v989 = vunpack.c.h.b16 %v408
    %v990 = vunpack.c.l.b16 %v409
    %v991 = vunpack.c.h.b16 %v409
    %v992 = vunpack.c.l.b16 %v410
    %v993 = vunpack.c.h.b16 %v410
    %v994 = vunpack.c.l.b16 %v411
    %v995 = vunpack.c.h.b16 %v411
    %v996 = vunpack.c.l.b16 %v412
    %v997 = vunpack.c.h.b16 %v412
    %v998 = vunpack.c.l.b16 %v413
    %v999 = vunpack.c.h.b16 %v413
    %v1000 = vunpack.c.l.b16 %v414
    %v1001 = vunpack.c.h.b16 %v414
    %v1002 = vunpack.c.l.b16 %v415
    %v1003 = vunpack.c.h.b16 %v415
    %v1004 = vunpack.c.l.b16 %v416
    %v1005 = vunpack.c.h.b16 %v416
    %v1006 = vunpack.c.l.b16 %v417
    %v1007 = vunpack.c.h.b16 %v417
    %v1008 = vunpack.c.l.b16 %v418
    %v1009 = vunpack.c.h.b16 %v418
    %v1010 = vunpack.c.l.b16 %v419
    %v1011 = vunpack.c.h.b16 %v419
    %v1012 = vunpack.c.l.b16 %v420
    %v1013 = vunpack.c.h.b16 %v420
    %v1014 = vunpack.c.l.b16 %v421
    %v1015 = vunpack.c.h.b16 %v421
    %v1016 = vunpack.c.l.b16 %v422
    %v1017 = vunpack.c.h.b16 %v422
    %v1018 = vunpack.c.l.b16 %v423
    %v1019 = vunpack.c.h.b16 %v423
    %v1020 = vunpack.c.l.b16 %v424
    %v1021 = vunpack.c.h.b16 %v424
    %v1022 = vunpack.c.l.b16 %v425
    %v1023 = vunpack.c.h.b16 %v425
    %v1024 = vunpack.c.l.b16 %v426
    %v1025 = vunpack.c.h.b16 %v426
    %v1026 = vunpack.c.l.b16 %v427
    %v1027 = vunpack.c.h.b16 %v427
    %v1028 = vunpack.c.l.b16 %v428
    %v1029 = vunpack.c.h.b16 %v428
    %v1030 = vunpack.c.l.b16 %v429
    %v1031 = vunpack.c.h.b16 %v429
    %v1032 = vunpack.c.l.b16 %v430
    %v1033 = vunpack.c.h.b16 %v430
    %v1034 = vunpack.c.l.b16 %v431
    %v1035 = vunpack.c.h.b16 %v431
    %v1036 = vunpack.c.l.b16 %v432
    %v1037 = vunpack.c.h.b16 %v432
    %v1038 = vunpack.c.l.b16 %v433
    %v1039 = vunpack.c.h.b16 %v433
    %v1040 = vunpack.c.l.b16 %v434
    %v1041 = vunpack.c.h.b16 %v434
    %v1042 = vunpack.c.l.b16 %v435
    %v1043 = vunpack.c.h.b16 %v435
    %v1044 = vunpack.c.l.b16 %v436
    %v1045 = vunpack.c.h.b16 %v436
    %v1046 = vunpack.c.l.b16 %v437
    %v1047 = vunpack.c.h.b16 %v437
    %v1048 = vunpack.c.l.b16 %v438
    %v1049 = vunpack.c.h.b16 %v438
    %v1050 = vunpack.c.l.b16 %v439
    %v1051 = vunpack.c.h.b16 %v439
    %v1052 = vunpack.c.l.b16 %v440
    %v1053 = vunpack.c.h.b16 %v440
    %v1054 = vunpack.c.l.b16 %v441
    %v1055 = vunpack.c.h.b16 %v441
    %v1056 = vunpack.c.l.b16 %v442
    %v1057 = vunpack.c.h.b16 %v442
    %v1058 = vunpack.c.l.b16 %v443
    %v1059 = vunpack.c.h.b16 %v443
    %v1060 = vunpack.c.l.b16 %v444
    %v1061 = vunpack.c.h.b16 %v444
    %v1062 = vunpack.c.l.b16 %v445
    %v1063 = vunpack.c.h.b16 %v445
    %v1064 = vunpack.c.l.b16 %v446
    %v1065 = vunpack.c.h.b16 %v446
    %v1066 = vunpack.c.l.b16 %v447
    %v1067 = vunpack.c.h.b16 %v447
    %v1068 = vunpack.c.l.b16 %v448
    %v1069 = vunpack.c.h.b16 %v448
    %v1070 = vunpack.c.l.b16 %v449
    %v1071 = vunpack.c.h.b16 %v449
    %v1072 = vunpack.c.l.b16 %v450
    %v1073 = vunpack.c.h.b16 %v450
    %v1074 = vunpack.c.l.b16 %v451
    %v1075 = vunpack.c.h.b16 %v451
    %v1076 = vunpack.c.l.b16 %v452
    %v1077 = vunpack.c.h.b16 %v452
    %v1078 = vunpack.c.l.b16 %v453
    %v1079 = vunpack.c.h.b16 %v453
    %v1080 = vunpack.c.l.b16 %v454
    %v1081 = vunpack.c.h.b16 %v454
    %v1082 = vunpack.c.l.b16 %v455
    %v1083 = vunpack.c.h.b16 %v455
    %v1084 = vunpack.c.l.b16 %v456
    %v1085 = vunpack.c.h.b16 %v456
    %v1086 = vunpack.c.l.b16 %v457
    %v1087 = vunpack.c.h.b16 %v457
    %v1088 = vunpack.c.l.b16 %v458
    %v1089 = vunpack.c.h.b16 %v458
    %v1090 = vunpack.c.l.b16 %v459
    %v1091 = vunpack.c.h.b16 %v459
    %v1092 = vunpack.c.l.b16 %v460
    %v1093 = vunpack.c.h.b16 %v460
    %v1094 = vunpack.c.l.b16 %v461
    %v1095 = vunpack.c.h.b16 %v461
    %v1096 = vunpack.c.l.b16 %v462
    %v1097 = vunpack.c.h.b16 %v462
    %v1098 = vunpack.c.l.b16 %v463
    %v1099 = vunpack.c.h.b16 %v463
    %v1100 = vpack.c.b16 %v848, %v844
    %v1101 = vpack.c.b16 %v849, %v845
    %v1102 = vpack.c.b16 %v850, %v846
    %v1103 = vpack.c.b16 %v851, %v847
    %v1104 = vpack.c.b16 %v856, %v852
    %v1105 = vpack.c.b16 %v857, %v853
    %v1106 = vpack.c.b16 %v858, %v854
    %v1107 = vpack.c.b16 %v859, %v855
    %v1108 = vpack.c.b16 %v864, %v860
    %v1109 = vpack.c.b16 %v865, %v861
    %v1110 = vpack.c.b16 %v866, %v862
    %v1111 = vpack.c.b16 %v867, %v863
    %v1112 = vpack.c.b16 %v872, %v868
    %v1113 = vpack.c.b16 %v873, %v869
    %v1114 = vpack.c.b16 %v874, %v870
    %v1115 = vpack.c.b16 %v875, %v871
    %v1116 = vpack.c.b16 %v880, %v876
    %v1117 = vpack.c.b16 %v881, %v877
    %v1118 = vpack.c.b16 %v882, %v878
    %v1119 = vpack.c.b16 %v883, %v879
    %v1120 = vpack.c.b16 %v888, %v884
    %v1121 = vpack.c.b16 %v889, %v885
    %v1122 = vpack.c.b16 %v890, %v886
    %v1123 = vpack.c.b16 %v891, %v887
    %v1124 = vpack.c.b16 %v896, %v892
    %v1125 = vpack.c.b16 %v897, %v893
    %v1126 = vpack.c.b16 %v898, %v894
    %v1127 = vpack.c.b16 %v899, %v895
    %v1128 = vpack.c.b16 %v904, %v900
    %v1129 = vpack.c.b16 %v905, %v901
    %v1130 = vpack.c.b16 %v906, %v902
    %v1131 = vpack.c.b16 %v907, %v903
    %v1132 = vpack.c.b16 %v912, %v908
    %v1133 = vpack.c.b16 %v913, %v909
    %v1134 = vpack.c.b16 %v914, %v910
    %v1135 = vpack.c.b16 %v915, %v911
    %v1136 = vpack.c.b16 %v920, %v916
    %v1137 = vpack.c.b16 %v921, %v917
    %v1138 = vpack.c.b16 %v922, %v918
    %v1139 = vpack.c.b16 %v923, %v919
    %v1140 = vpack.c.b16 %v928, %v924
    %v1141 = vpack.c.b16 %v929, %v925
    %v1142 = vpack.c.b16 %v930, %v926
    %v1143 = vpack.c.b16 %v931, %v927
    %v1144 = vpack.c.b16 %v936, %v932
    %v1145 = vpack.c.b16 %v937, %v933
    %v1146 = vpack.c.b16 %v938, %v934
    %v1147 = vpack.c.b16 %v939, %v935
    %v1148 = vpack.c.b16 %v944, %v940
    %v1149 = vpack.c.b16 %v945, %v941
    %v1150 = vpack.c.b16 %v946, %v942
    %v1151 = vpack.c.b16 %v947, %v943
    %v1152 = vpack.c.b16 %v952, %v948
    %v1153 = vpack.c.b16 %v953, %v949
    %v1154 = vpack.c.b16 %v954, %v950
    %v1155 = vpack.c.b16 %v955, %v951
    %v1156 = vpack.c.b16 %v960, %v956
    %v1157 = vpack.c.b16 %v961, %v957
    %v1158 = vpack.c.b16 %v962, %v958
    %v1159 = vpack.c.b16 %v963, %v959
    %v1160 = vpack.c.b16 %v968, %v964
    %v1161 = vpack.c.b16 %v969, %v965
    %v1162 = vpack.c.b16 %v970, %v966
    %v1163 = vpack.c.b16 %v971, %v967
    %v1164 = vpack.c.b16 %v976, %v972
    %v1165 = vpack.c.b16 %v977, %v973
    %v1166 = vpack.c.b16 %v978, %v974
    %v1167 = vpack.c.b16 %v979, %v975
    %v1168 = vpack.c.b16 %v984, %v980
    %v1169 = vpack.c.b16 %v985, %v981
    %v1170 = vpack.c.b16 %v986, %v982
    %v1171 = vpack.c.b16 %v987, %v983
    %v1172 = vpack.c.b16 %v992, %v988
    %v1173 = vpack.c.b16 %v993, %v989
    %v1174 = vpack.c.b16 %v994, %v990
    %v1175 = vpack.c.b16 %v995, %v991
    %v1176 = vpack.c.b16 %v1000, %v996
    %v1177 = vpack.c.b16 %v1001, %v997
    %v1178 = vpack.c.b16 %v1002, %v998
    %v1179 = vpack.c.b16 %v1003, %v999
    %v1180 = vpack.c.b16 %v1008, %v1004
    %v1181 = vpack.c.b16 %v1009, %v1005
    %v1182 = vpack.c.b16 %v1010, %v1006
    %v1183 = vpack.c.b16 %v1011, %v1007
    %v1184 = vpack.c.b16 %v1016, %v1012
    %v1185 = vpack.c.b16 %v1017, %v1013
    %v1186 = vpack.c.b16 %v1018, %v1014
    %v1187 = vpack.c.b16 %v1019, %v1015
    %v1188 = vpack.c.b16 %v1024, %v1020
    %v1189 = vpack.c.b16 %v1025, %v1021
    %v1190 = vpack.c.b16 %v1026, %v1022
    %v1191 = vpack.c.b16 %v1027, %v1023
    %v1192 = vpack.c.b16 %v1032, %v1028
    %v1193 = vpack.c.b16 %v1033, %v1029
    %v1194 = vpack.c.b16 %v1034, %v1030
    %v1195 = vpack.c.b16 %v1035, %v1031
    %v1196 = vpack.c.b16 %v1040, %v1036
    %v1197 = vpack.c.b16 %v1041, %v1037
    %v1198 = vpack.c.b16 %v1042, %v1038
    %v1199 = vpack.c.b16 %v1043, %v1039
    %v1200 = vpack.c.b16 %v1048, %v1044
    %v1201 = vpack.c.b16 %v1049, %v1045
    %v1202 = vpack.c.b16 %v1050, %v1046
    %v1203 = vpack.c.b16 %v1051, %v1047
    %v1204 = vpack.c.b16 %v1056, %v1052
    %v1205 = vpack.c.b16 %v1057, %v1053
    %v1206 = vpack.c.b16 %v1058, %v1054
    %v1207 = vpack.c.b16 %v1059, %v1055
    %v1208 = vpack.c.b16 %v1064, %v1060
    %v1209 = vpack.c.b16 %v1065, %v1061
    %v1210 = vpack.c.b16 %v1066, %v1062
    %v1211 = vpack.c.b16 %v1067, %v1063
    %v1212 = vpack.c.b16 %v1072, %v1068
    %v1213 = vpack.c.b16 %v1073, %v1069
    %v1214 = vpack.c.b16 %v1074, %v1070
    %v1215 = vpack.c.b16 %v1075, %v1071
    %v1216 = vpack.c.b16 %v1080, %v1076
    %v1217 = vpack.c.b16 %v1081, %v1077
    %v1218 = vpack.c.b16 %v1082, %v1078
    %v1219 = vpack.c.b16 %v1083, %v1079
    %v1220 = vpack.c.b16 %v1088, %v1084
    %v1221 = vpack.c.b16 %v1089, %v1085
    %v1222 = vpack.c.b16 %v1090, %v1086
    %v1223 = vpack.c.b16 %v1091, %v1087
    %v1224 = vpack.c.b16 %v1096, %v1092
    %v1225 = vpack.c.b16 %v1097, %v1093
    %v1226 = vpack.c.b16 %v1098, %v1094
    %v1227 = vpack.c.b16 %v1099, %v1095
    %1356 = vmatprep.subr.bf16.mxu0 %v1101
    %1357 = vmatpush1.bf16.msra.mxu0 %v1100
    %1358 = vmatprep.subr.bf16.mxu0 %v1105
    %1359 = vmatpush1.bf16.msra.mxu0 %v1104
    %1360 = vmatprep.subr.bf16.mxu0 %v1109
    %1361 = vmatpush1.bf16.msra.mxu0 %v1108
    %1362 = vmatprep.subr.bf16.mxu0 %v1113
    %1363 = vmatpush1.bf16.msra.mxu0 %v1112
    %1364 = vmatprep.subr.bf16.mxu0 %v1117
    %1365 = vmatpush1.bf16.msra.mxu0 %v1116
    %1366 = vmatprep.subr.bf16.mxu0 %v1121
    %1367 = vmatpush1.bf16.msra.mxu0 %v1120
    %1368 = vmatprep.subr.bf16.mxu0 %v1125
    %1369 = vmatpush1.bf16.msra.mxu0 %v1124
    %1370 = vmatprep.subr.bf16.mxu0 %v1129
    %1371 = vmatpush1.bf16.msra.mxu0 %v1128
    %1372 = vmatprep.subr.bf16.mxu0 %v1133
    %1373 = vmatpush1.bf16.msra.mxu0 %v1132
    %1374 = vmatprep.subr.bf16.mxu0 %v1137
    %1375 = vmatpush1.bf16.msra.mxu0 %v1136
    %1376 = vmatprep.subr.bf16.mxu0 %v1141
    %1377 = vmatpush1.bf16.msra.mxu0 %v1140
    %1378 = vmatprep.subr.bf16.mxu0 %v1145
    %1379 = vmatpush1.bf16.msra.mxu0 %v1144
    %1380 = vmatprep.subr.bf16.mxu0 %v1149
    %1381 = vmatpush1.bf16.msra.mxu0 %v1148
    %1382 = vmatprep.subr.bf16.mxu0 %v1153
    %1383 = vmatpush1.bf16.msra.mxu0 %v1152
    %1384 = vmatprep.subr.bf16.mxu0 %v1157
    %1385 = vmatpush1.bf16.msra.mxu0 %v1156
    %1386 = vmatprep.subr.bf16.mxu0 %v1161
    %1387 = vmatpush1.bf16.msra.mxu0 %v1160
    %1388 = vmatprep.mubr.bf16.mxu0 %v709
    %1389 = vmatmul.mubr.bf16.gmra.mrb[0].mxu0 %v708
    %v1390 = vpop.f32.mrb[0].mxu0
    %v1391 = vadd.f32 0.0, %v1390
    %v1392 = vpop.f32.mrb[0].mxu0
    %v1393 = vadd.f32 0.0, %v1392
    %v1394 = vpop.f32.mrb[0].mxu0
    %v1395 = vadd.f32 0.0, %v1394
    %v1396 = vpop.f32.mrb[0].mxu0
    %v1397 = vadd.f32 0.0, %v1396
    %1398 = vmatprep.mubr.bf16.mxu0 %v713
    %1399 = vmatmul.mubr.bf16.gmra.mrb[0].mxu0 %v712
    %v1400 = vpop.f32.mrb[0].mxu0
    %v1401 = vadd.f32 0.0, %v1400
    %v1402 = vpop.f32.mrb[0].mxu0
    %v1403 = vadd.f32 0.0, %v1402
    %v1404 = vpop.f32.mrb[0].mxu0
    %v1405 = vadd.f32 0.0, %v1404
    %v1406 = vpop.f32.mrb[0].mxu0
    %v1407 = vadd.f32 0.0, %v1406
    %1408 = vdwg.mxu0
    %1409 = vmatprep.subr.bf16.mxu0 %v1165
    %1410 = vmatpush1.bf16.msra.mxu0 %v1164
    %1411 = vmatprep.subr.bf16.mxu0 %v1169
    %1412 = vmatpush1.bf16.msra.mxu0 %v1168
    %1413 = vmatprep.subr.bf16.mxu0 %v1173
    %1414 = vmatpush1.bf16.msra.mxu0 %v1172
    %1415 = vmatprep.subr.bf16.mxu0 %v1177
    %1416 = vmatpush1.bf16.msra.mxu0 %v1176
    %1417 = vmatprep.subr.bf16.mxu0 %v1181
    %1418 = vmatpush1.bf16.msra.mxu0 %v1180
    %1419 = vmatprep.subr.bf16.mxu0 %v1185
    %1420 = vmatpush1.bf16.msra.mxu0 %v1184
    %1421 = vmatprep.subr.bf16.mxu0 %v1189
    %1422 = vmatpush1.bf16.msra.mxu0 %v1188
    %1423 = vmatprep.subr.bf16.mxu0 %v1193
    %1424 = vmatpush1.bf16.msra.mxu0 %v1192
    %1425 = vmatprep.subr.bf16.mxu0 %v1197
    %1426 = vmatpush1.bf16.msra.mxu0 %v1196
    %1427 = vmatprep.subr.bf16.mxu0 %v1201
    %1428 = vmatpush1.bf16.msra.mxu0 %v1200
    %1429 = vmatprep.subr.bf16.mxu0 %v1205
    %1430 = vmatpush1.bf16.msra.mxu0 %v1204
    %1431 = vmatprep.subr.bf16.mxu0 %v1209
    %1432 = vmatpush1.bf16.msra.mxu0 %v1208
    %1433 = vmatprep.subr.bf16.mxu0 %v1213
    %1434 = vmatpush1.bf16.msra.mxu0 %v1212
    %1435 = vmatprep.subr.bf16.mxu0 %v1217
    %1436 = vmatpush1.bf16.msra.mxu0 %v1216
    %1437 = vmatprep.subr.bf16.mxu0 %v1221
    %1438 = vmatpush1.bf16.msra.mxu0 %v1220
    %1439 = vmatprep.subr.bf16.mxu0 %v1225
    %1440 = vmatpush1.bf16.msra.mxu0 %v1224
    %1441 = vmatprep.mubr.bf16.mxu0 %v711
    %1442 = vmatmul.mubr.bf16.gmra.mrb[0].mxu0 %v710
    %v1443 = vpop.f32.mrb[0].mxu0
    %v1444 = vadd.f32 %v1391, %v1443
    %v1445 = vpop.f32.mrb[0].mxu0
    %v1446 = vadd.f32 %v1393, %v1445
    %v1447 = vpop.f32.mrb[0].mxu0
    %v1448 = vadd.f32 %v1395, %v1447
    %v1449 = vpop.f32.mrb[0].mxu0
    %v1450 = vadd.f32 %v1397, %v1449
    %1451 = vmatprep.mubr.bf16.mxu0 %v715
    %1452 = vmatmul.mubr.bf16.gmra.mrb[0].mxu0 %v714
    %v1453 = vpop.f32.mrb[0].mxu0
    %v1454 = vadd.f32 %v1401, %v1453
    %v1455 = vpop.f32.mrb[0].mxu0
    %v1456 = vadd.f32 %v1403, %v1455
    %v1457 = vpop.f32.mrb[0].mxu0
    %v1458 = vadd.f32 %v1405, %v1457
    %v1459 = vpop.f32.mrb[0].mxu0
    %v1460 = vadd.f32 %v1407, %v1459
    %1461 = vdwg.mxu0
    %1462 = vmatprep.subr.bf16.mxu0 %v1103
    %1463 = vmatpush1.bf16.msra.mxu0 %v1102
    %1464 = vmatprep.subr.bf16.mxu0 %v1107
    %1465 = vmatpush1.bf16.msra.mxu0 %v1106
    %1466 = vmatprep.subr.bf16.mxu0 %v1111
    %1467 = vmatpush1.bf16.msra.mxu0 %v1110
    %1468 = vmatprep.subr.bf16.mxu0 %v1115
    %1469 = vmatpush1.bf16.msra.mxu0 %v1114
    %1470 = vmatprep.subr.bf16.mxu0 %v1119
    %1471 = vmatpush1.bf16.msra.mxu0 %v1118
    %1472 = vmatprep.subr.bf16.mxu0 %v1123
    %1473 = vmatpush1.bf16.msra.mxu0 %v1122
    %1474 = vmatprep.subr.bf16.mxu0 %v1127
    %1475 = vmatpush1.bf16.msra.mxu0 %v1126
    %1476 = vmatprep.subr.bf16.mxu0 %v1131
    %1477 = vmatpush1.bf16.msra.mxu0 %v1130
    %1478 = vmatprep.subr.bf16.mxu0 %v1135
    %1479 = vmatpush1.bf16.msra.mxu0 %v1134
    %1480 = vmatprep.subr.bf16.mxu0 %v1139
    %1481 = vmatpush1.bf16.msra.mxu0 %v1138
    %1482 = vmatprep.subr.bf16.mxu0 %v1143
    %1483 = vmatpush1.bf16.msra.mxu0 %v1142
    %1484 = vmatprep.subr.bf16.mxu0 %v1147
    %1485 = vmatpush1.bf16.msra.mxu0 %v1146
    %1486 = vmatprep.subr.bf16.mxu0 %v1151
    %1487 = vmatpush1.bf16.msra.mxu0 %v1150
    %1488 = vmatprep.subr.bf16.mxu0 %v1155
    %1489 = vmatpush1.bf16.msra.mxu0 %v1154
    %1490 = vmatprep.subr.bf16.mxu0 %v1159
    %1491 = vmatpush1.bf16.msra.mxu0 %v1158
    %1492 = vmatprep.subr.bf16.mxu0 %v1163
    %1493 = vmatpush1.bf16.msra.mxu0 %v1162
    %1494 = vmatprep.mubr.bf16.mxu0 %v709
    %1495 = vmatmul.mubr.bf16.gmra.mrb[0].mxu0 %v708
    %v1496 = vpop.f32.mrb[0].mxu0
    %v1497 = vadd.f32 0.0, %v1496
    %v1498 = vpop.f32.mrb[0].mxu0
    %v1499 = vadd.f32 0.0, %v1498
    %v1500 = vpop.f32.mrb[0].mxu0
    %v1501 = vadd.f32 0.0, %v1500
    %v1502 = vpop.f32.mrb[0].mxu0
    %v1503 = vadd.f32 0.0, %v1502
    %1504 = vmatprep.mubr.bf16.mxu0 %v713
    %1505 = vmatmul.mubr.bf16.gmra.mrb[0].mxu0 %v712
    %v1506 = vpop.f32.mrb[0].mxu0
    %v1507 = vadd.f32 0.0, %v1506
    %v1508 = vpop.f32.mrb[0].mxu0
    %v1509 = vadd.f32 0.0, %v1508
    %v1510 = vpop.f32.mrb[0].mxu0
    %v1511 = vadd.f32 0.0, %v1510
    %v1512 = vpop.f32.mrb[0].mxu0
    %v1513 = vadd.f32 0.0, %v1512
    %1514 = vdwg.mxu0
    %1515 = vmatprep.subr.bf16.mxu0 %v1167
    %1516 = vmatpush1.bf16.msra.mxu0 %v1166
    %1517 = vmatprep.subr.bf16.mxu0 %v1171
    %1518 = vmatpush1.bf16.msra.mxu0 %v1170
    %1519 = vmatprep.subr.bf16.mxu0 %v1175
    %1520 = vmatpush1.bf16.msra.mxu0 %v1174
    %1521 = vmatprep.subr.bf16.mxu0 %v1179
    %1522 = vmatpush1.bf16.msra.mxu0 %v1178
    %1523 = vmatprep.subr.bf16.mxu0 %v1183
    %1524 = vmatpush1.bf16.msra.mxu0 %v1182
    %1525 = vmatprep.subr.bf16.mxu0 %v1187
    %1526 = vmatpush1.bf16.msra.mxu0 %v1186
    %1527 = vmatprep.subr.bf16.mxu0 %v1191
    %1528 = vmatpush1.bf16.msra.mxu0 %v1190
    %1529 = vmatprep.subr.bf16.mxu0 %v1195
    %1530 = vmatpush1.bf16.msra.mxu0 %v1194
    %1531 = vmatprep.subr.bf16.mxu0 %v1199
    %1532 = vmatpush1.bf16.msra.mxu0 %v1198
    %1533 = vmatprep.subr.bf16.mxu0 %v1203
    %1534 = vmatpush1.bf16.msra.mxu0 %v1202
    %1535 = vmatprep.subr.bf16.mxu0 %v1207
    %1536 = vmatpush1.bf16.msra.mxu0 %v1206
    %1537 = vmatprep.subr.bf16.mxu0 %v1211
    %1538 = vmatpush1.bf16.msra.mxu0 %v1210
    %1539 = vmatprep.subr.bf16.mxu0 %v1215
    %1540 = vmatpush1.bf16.msra.mxu0 %v1214
    %1541 = vmatprep.subr.bf16.mxu0 %v1219
    %1542 = vmatpush1.bf16.msra.mxu0 %v1218
    %1543 = vmatprep.subr.bf16.mxu0 %v1223
    %1544 = vmatpush1.bf16.msra.mxu0 %v1222
    %1545 = vmatprep.subr.bf16.mxu0 %v1227
    %1546 = vmatpush1.bf16.msra.mxu0 %v1226
    %1547 = vmatprep.mubr.bf16.mxu0 %v711
    %1548 = vmatmul.mubr.bf16.gmra.mrb[0].mxu0 %v710
    %v1549 = vpop.f32.mrb[0].mxu0
    %v1550 = vadd.f32 %v1497, %v1549
    %v1551 = vpop.f32.mrb[0].mxu0
    %v1552 = vadd.f32 %v1499, %v1551
    %v1553 = vpop.f32.mrb[0].mxu0
    %v1554 = vadd.f32 %v1501, %v1553
    %v1555 = vpop.f32.mrb[0].mxu0
    %v1556 = vadd.f32 %v1503, %v1555
    %1557 = vmatprep.mubr.bf16.mxu0 %v715
    %1558 = vmatmul.mubr.bf16.gmra.mrb[0].mxu0 %v714
    %v1559 = vpop.f32.mrb[0].mxu0
    %v1560 = vadd.f32 %v1507, %v1559
    %v1561 = vpop.f32.mrb[0].mxu0
    %v1562 = vadd.f32 %v1509, %v1561
    %v1563 = vpop.f32.mrb[0].mxu0
    %v1564 = vadd.f32 %v1511, %v1563
    %v1565 = vpop.f32.mrb[0].mxu0
    %v1566 = vadd.f32 %v1513, %v1565
    %1567 = vdwg.mxu0
    %v1696 = vunpack.c.l.b16 %v208
    %v1697 = vunpack.c.h.b16 %v208
    %v1698 = vunpack.c.l.b16 %v209
    %v1699 = vunpack.c.h.b16 %v209
    %v1700 = vunpack.c.l.b16 %v210
    %v1701 = vunpack.c.h.b16 %v210
    %v1702 = vunpack.c.l.b16 %v211
    %v1703 = vunpack.c.h.b16 %v211
    %v1704 = vunpack.c.l.b16 %v212
    %v1705 = vunpack.c.h.b16 %v212
    %v1706 = vunpack.c.l.b16 %v213
    %v1707 = vunpack.c.h.b16 %v213
    %v1708 = vunpack.c.l.b16 %v214
    %v1709 = vunpack.c.h.b16 %v214
    %v1710 = vunpack.c.l.b16 %v215
    %v1711 = vunpack.c.h.b16 %v215
    %v1712 = vunpack.c.l.b16 %v216
    %v1713 = vunpack.c.h.b16 %v216
    %v1714 = vunpack.c.l.b16 %v217
    %v1715 = vunpack.c.h.b16 %v217
    %v1716 = vunpack.c.l.b16 %v218
    %v1717 = vunpack.c.h.b16 %v218
    %v1718 = vunpack.c.l.b16 %v219
    %v1719 = vunpack.c.h.b16 %v219
    %v1720 = vunpack.c.l.b16 %v220
    %v1721 = vunpack.c.h.b16 %v220
    %v1722 = vunpack.c.l.b16 %v221
    %v1723 = vunpack.c.h.b16 %v221
    %v1724 = vunpack.c.l.b16 %v222
    %v1725 = vunpack.c.h.b16 %v222
    %v1726 = vunpack.c.l.b16 %v223
    %v1727 = vunpack.c.h.b16 %v223
    %v1728 = vunpack.c.l.b16 %v224
    %v1729 = vunpack.c.h.b16 %v224
    %v1730 = vunpack.c.l.b16 %v225
    %v1731 = vunpack.c.h.b16 %v225
    %v1732 = vunpack.c.l.b16 %v226
    %v1733 = vunpack.c.h.b16 %v226
    %v1734 = vunpack.c.l.b16 %v227
    %v1735 = vunpack.c.h.b16 %v227
    %v1736 = vunpack.c.l.b16 %v228
    %v1737 = vunpack.c.h.b16 %v228
    %v1738 = vunpack.c.l.b16 %v229
    %v1739 = vunpack.c.h.b16 %v229
    %v1740 = vunpack.c.l.b16 %v230
    %v1741 = vunpack.c.h.b16 %v230
    %v1742 = vunpack.c.l.b16 %v231
    %v1743 = vunpack.c.h.b16 %v231
    %v1744 = vunpack.c.l.b16 %v232
    %v1745 = vunpack.c.h.b16 %v232
    %v1746 = vunpack.c.l.b16 %v233
    %v1747 = vunpack.c.h.b16 %v233
    %v1748 = vunpack.c.l.b16 %v234
    %v1749 = vunpack.c.h.b16 %v234
    %v1750 = vunpack.c.l.b16 %v235
    %v1751 = vunpack.c.h.b16 %v235
    %v1752 = vunpack.c.l.b16 %v236
    %v1753 = vunpack.c.h.b16 %v236
    %v1754 = vunpack.c.l.b16 %v237
    %v1755 = vunpack.c.h.b16 %v237
    %v1756 = vunpack.c.l.b16 %v238
    %v1757 = vunpack.c.h.b16 %v238
    %v1758 = vunpack.c.l.b16 %v239
    %v1759 = vunpack.c.h.b16 %v239
    %v1760 = vunpack.c.l.b16 %v240
    %v1761 = vunpack.c.h.b16 %v240
    %v1762 = vunpack.c.l.b16 %v241
    %v1763 = vunpack.c.h.b16 %v241
    %v1764 = vunpack.c.l.b16 %v242
    %v1765 = vunpack.c.h.b16 %v242
    %v1766 = vunpack.c.l.b16 %v243
    %v1767 = vunpack.c.h.b16 %v243
    %v1768 = vunpack.c.l.b16 %v244
    %v1769 = vunpack.c.h.b16 %v244
    %v1770 = vunpack.c.l.b16 %v245
    %v1771 = vunpack.c.h.b16 %v245
    %v1772 = vunpack.c.l.b16 %v246
    %v1773 = vunpack.c.h.b16 %v246
    %v1774 = vunpack.c.l.b16 %v247
    %v1775 = vunpack.c.h.b16 %v247
    %v1776 = vunpack.c.l.b16 %v248
    %v1777 = vunpack.c.h.b16 %v248
    %v1778 = vunpack.c.l.b16 %v249
    %v1779 = vunpack.c.h.b16 %v249
    %v1780 = vunpack.c.l.b16 %v250
    %v1781 = vunpack.c.h.b16 %v250
    %v1782 = vunpack.c.l.b16 %v251
    %v1783 = vunpack.c.h.b16 %v251
    %v1784 = vunpack.c.l.b16 %v252
    %v1785 = vunpack.c.h.b16 %v252
    %v1786 = vunpack.c.l.b16 %v253
    %v1787 = vunpack.c.h.b16 %v253
    %v1788 = vunpack.c.l.b16 %v254
    %v1789 = vunpack.c.h.b16 %v254
    %v1790 = vunpack.c.l.b16 %v255
    %v1791 = vunpack.c.h.b16 %v255
    %v1792 = vunpack.c.l.b16 %v256
    %v1793 = vunpack.c.h.b16 %v256
    %v1794 = vunpack.c.l.b16 %v257
    %v1795 = vunpack.c.h.b16 %v257
    %v1796 = vunpack.c.l.b16 %v258
    %v1797 = vunpack.c.h.b16 %v258
    %v1798 = vunpack.c.l.b16 %v259
    %v1799 = vunpack.c.h.b16 %v259
    %v1800 = vunpack.c.l.b16 %v260
    %v1801 = vunpack.c.h.b16 %v260
    %v1802 = vunpack.c.l.b16 %v261
    %v1803 = vunpack.c.h.b16 %v261
    %v1804 = vunpack.c.l.b16 %v262
    %v1805 = vunpack.c.h.b16 %v262
    %v1806 = vunpack.c.l.b16 %v263
    %v1807 = vunpack.c.h.b16 %v263
    %v1808 = vunpack.c.l.b16 %v264
    %v1809 = vunpack.c.h.b16 %v264
    %v1810 = vunpack.c.l.b16 %v265
    %v1811 = vunpack.c.h.b16 %v265
    %v1812 = vunpack.c.l.b16 %v266
    %v1813 = vunpack.c.h.b16 %v266
    %v1814 = vunpack.c.l.b16 %v267
    %v1815 = vunpack.c.h.b16 %v267
    %v1816 = vunpack.c.l.b16 %v268
    %v1817 = vunpack.c.h.b16 %v268
    %v1818 = vunpack.c.l.b16 %v269
    %v1819 = vunpack.c.h.b16 %v269
    %v1820 = vunpack.c.l.b16 %v270
    %v1821 = vunpack.c.h.b16 %v270
    %v1822 = vunpack.c.l.b16 %v271
    %v1823 = vunpack.c.h.b16 %v271
    %v1824 = vunpack.c.l.b16 %v272
    %v1825 = vunpack.c.h.b16 %v272
    %v1826 = vunpack.c.l.b16 %v273
    %v1827 = vunpack.c.h.b16 %v273
    %v1828 = vunpack.c.l.b16 %v274
    %v1829 = vunpack.c.h.b16 %v274
    %v1830 = vunpack.c.l.b16 %v275
    %v1831 = vunpack.c.h.b16 %v275
    %v1832 = vunpack.c.l.b16 %v276
    %v1833 = vunpack.c.h.b16 %v276
    %v1834 = vunpack.c.l.b16 %v277
    %v1835 = vunpack.c.h.b16 %v277
    %v1836 = vunpack.c.l.b16 %v278
    %v1837 = vunpack.c.h.b16 %v278
    %v1838 = vunpack.c.l.b16 %v279
    %v1839 = vunpack.c.h.b16 %v279
    %v1840 = vunpack.c.l.b16 %v280
    %v1841 = vunpack.c.h.b16 %v280
    %v1842 = vunpack.c.l.b16 %v281
    %v1843 = vunpack.c.h.b16 %v281
    %v1844 = vunpack.c.l.b16 %v282
    %v1845 = vunpack.c.h.b16 %v282
    %v1846 = vunpack.c.l.b16 %v283
    %v1847 = vunpack.c.h.b16 %v283
    %v1848 = vunpack.c.l.b16 %v284
    %v1849 = vunpack.c.h.b16 %v284
    %v1850 = vunpack.c.l.b16 %v285
    %v1851 = vunpack.c.h.b16 %v285
    %v1852 = vunpack.c.l.b16 %v286
    %v1853 = vunpack.c.h.b16 %v286
    %v1854 = vunpack.c.l.b16 %v287
    %v1855 = vunpack.c.h.b16 %v287
    %v1856 = vunpack.c.l.b16 %v288
    %v1857 = vunpack.c.h.b16 %v288
    %v1858 = vunpack.c.l.b16 %v289
    %v1859 = vunpack.c.h.b16 %v289
    %v1860 = vunpack.c.l.b16 %v290
    %v1861 = vunpack.c.h.b16 %v290
    %v1862 = vunpack.c.l.b16 %v291
    %v1863 = vunpack.c.h.b16 %v291
    %v1864 = vunpack.c.l.b16 %v292
    %v1865 = vunpack.c.h.b16 %v292
    %v1866 = vunpack.c.l.b16 %v293
    %v1867 = vunpack.c.h.b16 %v293
    %v1868 = vunpack.c.l.b16 %v294
    %v1869 = vunpack.c.h.b16 %v294
    %v1870 = vunpack.c.l.b16 %v295
    %v1871 = vunpack.c.h.b16 %v295
    %v1872 = vunpack.c.l.b16 %v296
    %v1873 = vunpack.c.h.b16 %v296
    %v1874 = vunpack.c.l.b16 %v297
    %v1875 = vunpack.c.h.b16 %v297
    %v1876 = vunpack.c.l.b16 %v298
    %v1877 = vunpack.c.h.b16 %v298
    %v1878 = vunpack.c.l.b16 %v299
    %v1879 = vunpack.c.h.b16 %v299
    %v1880 = vunpack.c.l.b16 %v300
    %v1881 = vunpack.c.h.b16 %v300
    %v1882 = vunpack.c.l.b16 %v301
    %v1883 = vunpack.c.h.b16 %v301
    %v1884 = vunpack.c.l.b16 %v302
    %v1885 = vunpack.c.h.b16 %v302
    %v1886 = vunpack.c.l.b16 %v303
    %v1887 = vunpack.c.h.b16 %v303
    %v1888 = vunpack.c.l.b16 %v304
    %v1889 = vunpack.c.h.b16 %v304
    %v1890 = vunpack.c.l.b16 %v305
    %v1891 = vunpack.c.h.b16 %v305
    %v1892 = vunpack.c.l.b16 %v306
    %v1893 = vunpack.c.h.b16 %v306
    %v1894 = vunpack.c.l.b16 %v307
    %v1895 = vunpack.c.h.b16 %v307
    %v1896 = vunpack.c.l.b16 %v308
    %v1897 = vunpack.c.h.b16 %v308
    %v1898 = vunpack.c.l.b16 %v309
    %v1899 = vunpack.c.h.b16 %v309
    %v1900 = vunpack.c.l.b16 %v310
    %v1901 = vunpack.c.h.b16 %v310
    %v1902 = vunpack.c.l.b16 %v311
    %v1903 = vunpack.c.h.b16 %v311
    %v1904 = vunpack.c.l.b16 %v312
    %v1905 = vunpack.c.h.b16 %v312
    %v1906 = vunpack.c.l.b16 %v313
    %v1907 = vunpack.c.h.b16 %v313
    %v1908 = vunpack.c.l.b16 %v314
    %v1909 = vunpack.c.h.b16 %v314
    %v1910 = vunpack.c.l.b16 %v315
    %v1911 = vunpack.c.h.b16 %v315
    %v1912 = vunpack.c.l.b16 %v316
    %v1913 = vunpack.c.h.b16 %v316
    %v1914 = vunpack.c.l.b16 %v317
    %v1915 = vunpack.c.h.b16 %v317
    %v1916 = vunpack.c.l.b16 %v318
    %v1917 = vunpack.c.h.b16 %v318
    %v1918 = vunpack.c.l.b16 %v319
    %v1919 = vunpack.c.h.b16 %v319
    %v1920 = vunpack.c.l.b16 %v320
    %v1921 = vunpack.c.h.b16 %v320
    %v1922 = vunpack.c.l.b16 %v321
    %v1923 = vunpack.c.h.b16 %v321
    %v1924 = vunpack.c.l.b16 %v322
    %v1925 = vunpack.c.h.b16 %v322
    %v1926 = vunpack.c.l.b16 %v323
    %v1927 = vunpack.c.h.b16 %v323
    %v1928 = vunpack.c.l.b16 %v324
    %v1929 = vunpack.c.h.b16 %v324
    %v1930 = vunpack.c.l.b16 %v325
    %v1931 = vunpack.c.h.b16 %v325
    %v1932 = vunpack.c.l.b16 %v326
    %v1933 = vunpack.c.h.b16 %v326
    %v1934 = vunpack.c.l.b16 %v327
    %v1935 = vunpack.c.h.b16 %v327
    %v1936 = vunpack.c.l.b16 %v328
    %v1937 = vunpack.c.h.b16 %v328
    %v1938 = vunpack.c.l.b16 %v329
    %v1939 = vunpack.c.h.b16 %v329
    %v1940 = vunpack.c.l.b16 %v330
    %v1941 = vunpack.c.h.b16 %v330
    %v1942 = vunpack.c.l.b16 %v331
    %v1943 = vunpack.c.h.b16 %v331
    %v1944 = vunpack.c.l.b16 %v332
    %v1945 = vunpack.c.h.b16 %v332
    %v1946 = vunpack.c.l.b16 %v333
    %v1947 = vunpack.c.h.b16 %v333
    %v1948 = vunpack.c.l.b16 %v334
    %v1949 = vunpack.c.h.b16 %v334
    %v1950 = vunpack.c.l.b16 %v335
    %v1951 = vunpack.c.h.b16 %v335
    %v1952 = vpack.c.b16 %v1700, %v1696
    %v1953 = vpack.c.b16 %v1701, %v1697
    %v1954 = vpack.c.b16 %v1702, %v1698
    %v1955 = vpack.c.b16 %v1703, %v1699
    %v1956 = vpack.c.b16 %v1708, %v1704
    %v1957 = vpack.c.b16 %v1709, %v1705
    %v1958 = vpack.c.b16 %v1710, %v1706
    %v1959 = vpack.c.b16 %v1711, %v1707
    %v1960 = vpack.c.b16 %v1716, %v1712
    %v1961 = vpack.c.b16 %v1717, %v1713
    %v1962 = vpack.c.b16 %v1718, %v1714
    %v1963 = vpack.c.b16 %v1719, %v1715
    %v1964 = vpack.c.b16 %v1724, %v1720
    %v1965 = vpack.c.b16 %v1725, %v1721
    %v1966 = vpack.c.b16 %v1726, %v1722
    %v1967 = vpack.c.b16 %v1727, %v1723
    %v1968 = vpack.c.b16 %v1732, %v1728
    %v1969 = vpack.c.b16 %v1733, %v1729
    %v1970 = vpack.c.b16 %v1734, %v1730
    %v1971 = vpack.c.b16 %v1735, %v1731
    %v1972 = vpack.c.b16 %v1740, %v1736
    %v1973 = vpack.c.b16 %v1741, %v1737
    %v1974 = vpack.c.b16 %v1742, %v1738
    %v1975 = vpack.c.b16 %v1743, %v1739
    %v1976 = vpack.c.b16 %v1748, %v1744
    %v1977 = vpack.c.b16 %v1749, %v1745
    %v1978 = vpack.c.b16 %v1750, %v1746
    %v1979 = vpack.c.b16 %v1751, %v1747
    %v1980 = vpack.c.b16 %v1756, %v1752
    %v1981 = vpack.c.b16 %v1757, %v1753
    %v1982 = vpack.c.b16 %v1758, %v1754
    %v1983 = vpack.c.b16 %v1759, %v1755
    %v1984 = vpack.c.b16 %v1764, %v1760
    %v1985 = vpack.c.b16 %v1765, %v1761
    %v1986 = vpack.c.b16 %v1766, %v1762
    %v1987 = vpack.c.b16 %v1767, %v1763
    %v1988 = vpack.c.b16 %v1772, %v1768
    %v1989 = vpack.c.b16 %v1773, %v1769
    %v1990 = vpack.c.b16 %v1774, %v1770
    %v1991 = vpack.c.b16 %v1775, %v1771
    %v1992 = vpack.c.b16 %v1780, %v1776
    %v1993 = vpack.c.b16 %v1781, %v1777
    %v1994 = vpack.c.b16 %v1782, %v1778
    %v1995 = vpack.c.b16 %v1783, %v1779
    %v1996 = vpack.c.b16 %v1788, %v1784
    %v1997 = vpack.c.b16 %v1789, %v1785
    %v1998 = vpack.c.b16 %v1790, %v1786
    %v1999 = vpack.c.b16 %v1791, %v1787
    %v2000 = vpack.c.b16 %v1796, %v1792
    %v2001 = vpack.c.b16 %v1797, %v1793
    %v2002 = vpack.c.b16 %v1798, %v1794
    %v2003 = vpack.c.b16 %v1799, %v1795
    %v2004 = vpack.c.b16 %v1804, %v1800
    %v2005 = vpack.c.b16 %v1805, %v1801
    %v2006 = vpack.c.b16 %v1806, %v1802
    %v2007 = vpack.c.b16 %v1807, %v1803
    %v2008 = vpack.c.b16 %v1812, %v1808
    %v2009 = vpack.c.b16 %v1813, %v1809
    %v2010 = vpack.c.b16 %v1814, %v1810
    %v2011 = vpack.c.b16 %v1815, %v1811
    %v2012 = vpack.c.b16 %v1820, %v1816
    %v2013 = vpack.c.b16 %v1821, %v1817
    %v2014 = vpack.c.b16 %v1822, %v1818
    %v2015 = vpack.c.b16 %v1823, %v1819
    %v2016 = vpack.c.b16 %v1828, %v1824
    %v2017 = vpack.c.b16 %v1829, %v1825
    %v2018 = vpack.c.b16 %v1830, %v1826
    %v2019 = vpack.c.b16 %v1831, %v1827
    %v2020 = vpack.c.b16 %v1836, %v1832
    %v2021 = vpack.c.b16 %v1837, %v1833
    %v2022 = vpack.c.b16 %v1838, %v1834
    %v2023 = vpack.c.b16 %v1839, %v1835
    %v2024 = vpack.c.b16 %v1844, %v1840
    %v2025 = vpack.c.b16 %v1845, %v1841
    %v2026 = vpack.c.b16 %v1846, %v1842
    %v2027 = vpack.c.b16 %v1847, %v1843
    %v2028 = vpack.c.b16 %v1852, %v1848
    %v2029 = vpack.c.b16 %v1853, %v1849
    %v2030 = vpack.c.b16 %v1854, %v1850
    %v2031 = vpack.c.b16 %v1855, %v1851
    %v2032 = vpack.c.b16 %v1860, %v1856
    %v2033 = vpack.c.b16 %v1861, %v1857
    %v2034 = vpack.c.b16 %v1862, %v1858
    %v2035 = vpack.c.b16 %v1863, %v1859
    %v2036 = vpack.c.b16 %v1868, %v1864
    %v2037 = vpack.c.b16 %v1869, %v1865
    %v2038 = vpack.c.b16 %v1870, %v1866
    %v2039 = vpack.c.b16 %v1871, %v1867
    %v2040 = vpack.c.b16 %v1876, %v1872
    %v2041 = vpack.c.b16 %v1877, %v1873
    %v2042 = vpack.c.b16 %v1878, %v1874
    %v2043 = vpack.c.b16 %v1879, %v1875
    %v2044 = vpack.c.b16 %v1884, %v1880
    %v2045 = vpack.c.b16 %v1885, %v1881
    %v2046 = vpack.c.b16 %v1886, %v1882
    %v2047 = vpack.c.b16 %v1887, %v1883
    %v2048 = vpack.c.b16 %v1892, %v1888
    %v2049 = vpack.c.b16 %v1893, %v1889
    %v2050 = vpack.c.b16 %v1894, %v1890
    %v2051 = vpack.c.b16 %v1895, %v1891
    %v2052 = vpack.c.b16 %v1900, %v1896
    %v2053 = vpack.c.b16 %v1901, %v1897
    %v2054 = vpack.c.b16 %v1902, %v1898
    %v2055 = vpack.c.b16 %v1903, %v1899
    %v2056 = vpack.c.b16 %v1908, %v1904
    %v2057 = vpack.c.b16 %v1909, %v1905
    %v2058 = vpack.c.b16 %v1910, %v1906
    %v2059 = vpack.c.b16 %v1911, %v1907
    %v2060 = vpack.c.b16 %v1916, %v1912
    %v2061 = vpack.c.b16 %v1917, %v1913
    %v2062 = vpack.c.b16 %v1918, %v1914
    %v2063 = vpack.c.b16 %v1919, %v1915
    %v2064 = vpack.c.b16 %v1924, %v1920
    %v2065 = vpack.c.b16 %v1925, %v1921
    %v2066 = vpack.c.b16 %v1926, %v1922
    %v2067 = vpack.c.b16 %v1927, %v1923
    %v2068 = vpack.c.b16 %v1932, %v1928
    %v2069 = vpack.c.b16 %v1933, %v1929
    %v2070 = vpack.c.b16 %v1934, %v1930
    %v2071 = vpack.c.b16 %v1935, %v1931
    %v2072 = vpack.c.b16 %v1940, %v1936
    %v2073 = vpack.c.b16 %v1941, %v1937
    %v2074 = vpack.c.b16 %v1942, %v1938
    %v2075 = vpack.c.b16 %v1943, %v1939
    %v2076 = vpack.c.b16 %v1948, %v1944
    %v2077 = vpack.c.b16 %v1949, %v1945
    %v2078 = vpack.c.b16 %v1950, %v1946
    %v2079 = vpack.c.b16 %v1951, %v1947
    %2208 = vmatprep.subr.bf16.mxu0 %v1953
    %2209 = vmatpush1.bf16.msra.mxu0 %v1952
    %2210 = vmatprep.subr.bf16.mxu0 %v1957
    %2211 = vmatpush1.bf16.msra.mxu0 %v1956
    %2212 = vmatprep.subr.bf16.mxu0 %v1961
    %2213 = vmatpush1.bf16.msra.mxu0 %v1960
    %2214 = vmatprep.subr.bf16.mxu0 %v1965
    %2215 = vmatpush1.bf16.msra.mxu0 %v1964
    %2216 = vmatprep.subr.bf16.mxu0 %v1969
    %2217 = vmatpush1.bf16.msra.mxu0 %v1968
    %2218 = vmatprep.subr.bf16.mxu0 %v1973
    %2219 = vmatpush1.bf16.msra.mxu0 %v1972
    %2220 = vmatprep.subr.bf16.mxu0 %v1977
    %2221 = vmatpush1.bf16.msra.mxu0 %v1976
    %2222 = vmatprep.subr.bf16.mxu0 %v1981
    %2223 = vmatpush1.bf16.msra.mxu0 %v1980
    %2224 = vmatprep.subr.bf16.mxu0 %v1985
    %2225 = vmatpush1.bf16.msra.mxu0 %v1984
    %2226 = vmatprep.subr.bf16.mxu0 %v1989
    %2227 = vmatpush1.bf16.msra.mxu0 %v1988
    %2228 = vmatprep.subr.bf16.mxu0 %v1993
    %2229 = vmatpush1.bf16.msra.mxu0 %v1992
    %2230 = vmatprep.subr.bf16.mxu0 %v1997
    %2231 = vmatpush1.bf16.msra.mxu0 %v1996
    %2232 = vmatprep.subr.bf16.mxu0 %v2001
    %2233 = vmatpush1.bf16.msra.mxu0 %v2000
    %2234 = vmatprep.subr.bf16.mxu0 %v2005
    %2235 = vmatpush1.bf16.msra.mxu0 %v2004
    %2236 = vmatprep.subr.bf16.mxu0 %v2009
    %2237 = vmatpush1.bf16.msra.mxu0 %v2008
    %2238 = vmatprep.subr.bf16.mxu0 %v2013
    %2239 = vmatpush1.bf16.msra.mxu0 %v2012
    %2240 = vmatprep.mubr.bf16.mxu0 %v701
    %2241 = vmatmul.mubr.bf16.gmra.mrb[0].mxu0 %v700
    %v2242 = vpop.f32.mrb[0].mxu0
    %v2243 = vadd.f32 %v1444, %v2242
    %v2244 = vpop.f32.mrb[0].mxu0
    %v2245 = vadd.f32 %v1446, %v2244
    %v2246 = vpop.f32.mrb[0].mxu0
    %v2247 = vadd.f32 %v1448, %v2246
    %v2248 = vpop.f32.mrb[0].mxu0
    %v2249 = vadd.f32 %v1450, %v2248
    %2250 = vmatprep.mubr.bf16.mxu0 %v705
    %2251 = vmatmul.mubr.bf16.gmra.mrb[0].mxu0 %v704
    %v2252 = vpop.f32.mrb[0].mxu0
    %v2253 = vadd.f32 %v1454, %v2252
    %v2254 = vpop.f32.mrb[0].mxu0
    %v2255 = vadd.f32 %v1456, %v2254
    %v2256 = vpop.f32.mrb[0].mxu0
    %v2257 = vadd.f32 %v1458, %v2256
    %v2258 = vpop.f32.mrb[0].mxu0
    %v2259 = vadd.f32 %v1460, %v2258
    %2260 = vdwg.mxu0
    %2261 = vmatprep.subr.bf16.mxu0 %v2017
    %2262 = vmatpush1.bf16.msra.mxu0 %v2016
    %2263 = vmatprep.subr.bf16.mxu0 %v2021
    %2264 = vmatpush1.bf16.msra.mxu0 %v2020
    %2265 = vmatprep.subr.bf16.mxu0 %v2025
    %2266 = vmatpush1.bf16.msra.mxu0 %v2024
    %2267 = vmatprep.subr.bf16.mxu0 %v2029
    %2268 = vmatpush1.bf16.msra.mxu0 %v2028
    %2269 = vmatprep.subr.bf16.mxu0 %v2033
    %2270 = vmatpush1.bf16.msra.mxu0 %v2032
    %2271 = vmatprep.subr.bf16.mxu0 %v2037
    %2272 = vmatpush1.bf16.msra.mxu0 %v2036
    %2273 = vmatprep.subr.bf16.mxu0 %v2041
    %2274 = vmatpush1.bf16.msra.mxu0 %v2040
    %2275 = vmatprep.subr.bf16.mxu0 %v2045
    %2276 = vmatpush1.bf16.msra.mxu0 %v2044
    %2277 = vmatprep.subr.bf16.mxu0 %v2049
    %2278 = vmatpush1.bf16.msra.mxu0 %v2048
    %2279 = vmatprep.subr.bf16.mxu0 %v2053
    %2280 = vmatpush1.bf16.msra.mxu0 %v2052
    %2281 = vmatprep.subr.bf16.mxu0 %v2057
    %2282 = vmatpush1.bf16.msra.mxu0 %v2056
    %2283 = vmatprep.subr.bf16.mxu0 %v2061
    %2284 = vmatpush1.bf16.msra.mxu0 %v2060
    %2285 = vmatprep.subr.bf16.mxu0 %v2065
    %2286 = vmatpush1.bf16.msra.mxu0 %v2064
    %2287 = vmatprep.subr.bf16.mxu0 %v2069
    %2288 = vmatpush1.bf16.msra.mxu0 %v2068
    %2289 = vmatprep.subr.bf16.mxu0 %v2073
    %2290 = vmatpush1.bf16.msra.mxu0 %v2072
    %2291 = vmatprep.subr.bf16.mxu0 %v2077
    %2292 = vmatpush1.bf16.msra.mxu0 %v2076
    %2293 = vmatprep.mubr.bf16.mxu0 %v703
    %2294 = vmatmul.mubr.bf16.gmra.mrb[0].mxu0 %v702
    %v2295 = vpop.f32.mrb[0].mxu0
    %v2296 = vadd.f32 %v2243, %v2295
    %v2297 = vpop.f32.mrb[0].mxu0
    %v2298 = vadd.f32 %v2245, %v2297
    %v2299 = vpop.f32.mrb[0].mxu0
    %v2300 = vadd.f32 %v2247, %v2299
    %v2301 = vpop.f32.mrb[0].mxu0
    %v2302 = vadd.f32 %v2249, %v2301
    %2303 = vmatprep.mubr.bf16.mxu0 %v707
    %2304 = vmatmul.mubr.bf16.gmra.mrb[0].mxu0 %v706
    %v2305 = vpop.f32.mrb[0].mxu0
    %v2306 = vadd.f32 %v2253, %v2305
    %v2307 = vpop.f32.mrb[0].mxu0
    %v2308 = vadd.f32 %v2255, %v2307
    %v2309 = vpop.f32.mrb[0].mxu0
    %v2310 = vadd.f32 %v2257, %v2309
    %v2311 = vpop.f32.mrb[0].mxu0
    %v2312 = vadd.f32 %v2259, %v2311
    %2313 = vdwg.mxu0
    %2314 = vmatprep.subr.bf16.mxu0 %v1955
    %2315 = vmatpush1.bf16.msra.mxu0 %v1954
    %2316 = vmatprep.subr.bf16.mxu0 %v1959
    %2317 = vmatpush1.bf16.msra.mxu0 %v1958
    %2318 = vmatprep.subr.bf16.mxu0 %v1963
    %2319 = vmatpush1.bf16.msra.mxu0 %v1962
    %2320 = vmatprep.subr.bf16.mxu0 %v1967
    %2321 = vmatpush1.bf16.msra.mxu0 %v1966
    %2322 = vmatprep.subr.bf16.mxu0 %v1971
    %2323 = vmatpush1.bf16.msra.mxu0 %v1970
    %2324 = vmatprep.subr.bf16.mxu0 %v1975
    %2325 = vmatpush1.bf16.msra.mxu0 %v1974
    %2326 = vmatprep.subr.bf16.mxu0 %v1979
    %2327 = vmatpush1.bf16.msra.mxu0 %v1978
    %2328 = vmatprep.subr.bf16.mxu0 %v1983
    %2329 = vmatpush1.bf16.msra.mxu0 %v1982
    %2330 = vmatprep.subr.bf16.mxu0 %v1987
    %2331 = vmatpush1.bf16.msra.mxu0 %v1986
    %2332 = vmatprep.subr.bf16.mxu0 %v1991
    %2333 = vmatpush1.bf16.msra.mxu0 %v1990
    %2334 = vmatprep.subr.bf16.mxu0 %v1995
    %2335 = vmatpush1.bf16.msra.mxu0 %v1994
    %2336 = vmatprep.subr.bf16.mxu0 %v1999
    %2337 = vmatpush1.bf16.msra.mxu0 %v1998
    %2338 = vmatprep.subr.bf16.mxu0 %v2003
    %2339 = vmatpush1.bf16.msra.mxu0 %v2002
    %2340 = vmatprep.subr.bf16.mxu0 %v2007
    %2341 = vmatpush1.bf16.msra.mxu0 %v2006
    %2342 = vmatprep.subr.bf16.mxu0 %v2011
    %2343 = vmatpush1.bf16.msra.mxu0 %v2010
    %2344 = vmatprep.subr.bf16.mxu0 %v2015
    %2345 = vmatpush1.bf16.msra.mxu0 %v2014
    %2346 = vmatprep.mubr.bf16.mxu0 %v701
    %2347 = vmatmul.mubr.bf16.gmra.mrb[0].mxu0 %v700
    %v2348 = vpop.f32.mrb[0].mxu0
    %v2349 = vadd.f32 %v1550, %v2348
    %v2350 = vpop.f32.mrb[0].mxu0
    %v2351 = vadd.f32 %v1552, %v2350
    %v2352 = vpop.f32.mrb[0].mxu0
    %v2353 = vadd.f32 %v1554, %v2352
    %v2354 = vpop.f32.mrb[0].mxu0
    %v2355 = vadd.f32 %v1556, %v2354
    %2356 = vmatprep.mubr.bf16.mxu0 %v705
    %2357 = vmatmul.mubr.bf16.gmra.mrb[0].mxu0 %v704
    %v2358 = vpop.f32.mrb[0].mxu0
    %v2359 = vadd.f32 %v1560, %v2358
    %v2360 = vpop.f32.mrb[0].mxu0
    %v2361 = vadd.f32 %v1562, %v2360
    %v2362 = vpop.f32.mrb[0].mxu0
    %v2363 = vadd.f32 %v1564, %v2362
    %v2364 = vpop.f32.mrb[0].mxu0
    %v2365 = vadd.f32 %v1566, %v2364
    %2366 = vdwg.mxu0
    %2367 = vmatprep.subr.bf16.mxu0 %v2019
    %2368 = vmatpush1.bf16.msra.mxu0 %v2018
    %2369 = vmatprep.subr.bf16.mxu0 %v2023
    %2370 = vmatpush1.bf16.msra.mxu0 %v2022
    %2371 = vmatprep.subr.bf16.mxu0 %v2027
    %2372 = vmatpush1.bf16.msra.mxu0 %v2026
    %2373 = vmatprep.subr.bf16.mxu0 %v2031
    %2374 = vmatpush1.bf16.msra.mxu0 %v2030
    %2375 = vmatprep.subr.bf16.mxu0 %v2035
    %2376 = vmatpush1.bf16.msra.mxu0 %v2034
    %2377 = vmatprep.subr.bf16.mxu0 %v2039
    %2378 = vmatpush1.bf16.msra.mxu0 %v2038
    %2379 = vmatprep.subr.bf16.mxu0 %v2043
    %2380 = vmatpush1.bf16.msra.mxu0 %v2042
    %2381 = vmatprep.subr.bf16.mxu0 %v2047
    %2382 = vmatpush1.bf16.msra.mxu0 %v2046
    %2383 = vmatprep.subr.bf16.mxu0 %v2051
    %2384 = vmatpush1.bf16.msra.mxu0 %v2050
    %2385 = vmatprep.subr.bf16.mxu0 %v2055
    %2386 = vmatpush1.bf16.msra.mxu0 %v2054
    %2387 = vmatprep.subr.bf16.mxu0 %v2059
    %2388 = vmatpush1.bf16.msra.mxu0 %v2058
    %2389 = vmatprep.subr.bf16.mxu0 %v2063
    %2390 = vmatpush1.bf16.msra.mxu0 %v2062
    %2391 = vmatprep.subr.bf16.mxu0 %v2067
    %2392 = vmatpush1.bf16.msra.mxu0 %v2066
    %2393 = vmatprep.subr.bf16.mxu0 %v2071
    %2394 = vmatpush1.bf16.msra.mxu0 %v2070
    %2395 = vmatprep.subr.bf16.mxu0 %v2075
    %2396 = vmatpush1.bf16.msra.mxu0 %v2074
    %2397 = vmatprep.subr.bf16.mxu0 %v2079
    %2398 = vmatpush1.bf16.msra.mxu0 %v2078
    %2399 = vmatprep.mubr.bf16.mxu0 %v703
    %2400 = vmatmul.mubr.bf16.gmra.mrb[0].mxu0 %v702
    %v2401 = vpop.f32.mrb[0].mxu0
    %v2402 = vadd.f32 %v2349, %v2401
    %v2403 = vpop.f32.mrb[0].mxu0
    %v2404 = vadd.f32 %v2351, %v2403
    %v2405 = vpop.f32.mrb[0].mxu0
    %v2406 = vadd.f32 %v2353, %v2405
    %v2407 = vpop.f32.mrb[0].mxu0
    %v2408 = vadd.f32 %v2355, %v2407
    %2409 = vmatprep.mubr.bf16.mxu0 %v707
    %2410 = vmatmul.mubr.bf16.gmra.mrb[0].mxu0 %v706
    %v2411 = vpop.f32.mrb[0].mxu0
    %v2412 = vadd.f32 %v2359, %v2411
    %v2413 = vpop.f32.mrb[0].mxu0
    %v2414 = vadd.f32 %v2361, %v2413
    %v2415 = vpop.f32.mrb[0].mxu0
    %v2416 = vadd.f32 %v2363, %v2415
    %v2417 = vpop.f32.mrb[0].mxu0
    %v2418 = vadd.f32 %v2365, %v2417
    %2419 = vdwg.mxu0
    %v2421 = vlaneseq
    %v2422 = vshrl.u32 %v2421, 7
    %v2423 = vsub.s32 0, %v2422
    %v2424 = vrot.slane %v464, %v2423
    %v2425 = vlaneseq
    %v2426 = vshrl.u32 %v2425, 7
    %v2427 = vsub.s32 1, %v2426
    %v2428 = vrot.slane %v464, %v2427
    %v2429 = vlaneseq
    %v2430 = vshrl.u32 %v2429, 7
    %v2431 = vsub.s32 2, %v2430
    %v2432 = vrot.slane %v464, %v2431
    %v2433 = vlaneseq
    %v2434 = vshrl.u32 %v2433, 7
    %v2435 = vsub.s32 3, %v2434
    %v2436 = vrot.slane %v464, %v2435
    %v2441 = vadd.f32 %v2296, %v2424
    %v2442 = vadd.f32 %v2298, %v2428
    %v2443 = vadd.f32 %v2402, %v2432
    %v2444 = vadd.f32 %v2404, %v2436
    %v2445 = vadd.f32 %v2300, %v2424
    %v2446 = vadd.f32 %v2302, %v2428
    %v2447 = vadd.f32 %v2406, %v2432
    %v2448 = vadd.f32 %v2408, %v2436
    %v2449 = vadd.f32 %v2306, %v2424
    %v2450 = vadd.f32 %v2308, %v2428
    %v2451 = vadd.f32 %v2412, %v2432
    %v2452 = vadd.f32 %v2414, %v2436
    %v2453 = vadd.f32 %v2310, %v2424
    %v2454 = vadd.f32 %v2312, %v2428
    %v2455 = vadd.f32 %v2416, %v2432
    %v2456 = vadd.f32 %v2418, %v2436
    %v2457 = vtanh.pop %v2441
    %v2458 = vtanh.pop %v2442
    %v2459 = vtanh.pop %v2443
    %v2460 = vtanh.pop %v2444
    %v2461 = vtanh.pop %v2445
    %v2462 = vtanh.pop %v2446
    %v2463 = vtanh.pop %v2447
    %v2464 = vtanh.pop %v2448
    %v2465 = vtanh.pop %v2449
    %v2466 = vtanh.pop %v2450
    %v2467 = vtanh.pop %v2451
    %v2468 = vtanh.pop %v2452
    %v2469 = vtanh.pop %v2453
    %v2470 = vtanh.pop %v2454
    %v2471 = vtanh.pop %v2455
    %v2472 = vtanh.pop %v2456
    %2473 = vst [vmem:[#allocation2 + $0x100] sm:$0xff] %v2457
    %2474 = vst [vmem:[#allocation2 + $0x108] sm:$0xff] %v2458
    %2475 = vst [vmem:[#allocation2 + $0x110] sm:$0xff] %v2459
    %2476 = vst [vmem:[#allocation2 + $0x118] sm:$0xff] %v2460
    %2477 = vst [vmem:[#allocation2 + $0x120] sm:$0xff] %v2461
    %2478 = vst [vmem:[#allocation2 + $0x128] sm:$0xff] %v2462
    %2479 = vst [vmem:[#allocation2 + $0x130] sm:$0xff] %v2463
    %2480 = vst [vmem:[#allocation2 + $0x138] sm:$0xff] %v2464
    %2481 = vst [vmem:[#allocation2 + $0x140] sm:$0xff] %v2465
    %2482 = vst [vmem:[#allocation2 + $0x148] sm:$0xff] %v2466
    %2483 = vst [vmem:[#allocation2 + $0x150] sm:$0xff] %v2467
    %2484 = vst [vmem:[#allocation2 + $0x158] sm:$0xff] %v2468
    %2485 = vst [vmem:[#allocation2 + $0x160] sm:$0xff] %v2469
    %2486 = vst [vmem:[#allocation2 + $0x168] sm:$0xff] %v2470
    %2487 = vst [vmem:[#allocation2 + $0x170] sm:$0xff] %v2471
    %2488 = vst [vmem:[#allocation2 + $0x178] sm:$0xff] %v2472
    %v2489 = vld [vmem:[#allocation2] sm:$0xff]
    %v2490 = vld [vmem:[#allocation2 + $0x8] sm:$0xff]
    %v2491 = vld [vmem:[#allocation2 + $0x10] sm:$0xff]
    %v2492 = vld [vmem:[#allocation2 + $0x18] sm:$0xff]
    %v2493 = vld [vmem:[#allocation2 + $0x20] sm:$0xff]
    %v2494 = vld [vmem:[#allocation2 + $0x28] sm:$0xff]
    %v2495 = vld [vmem:[#allocation2 + $0x30] sm:$0xff]
    %v2496 = vld [vmem:[#allocation2 + $0x38] sm:$0xff]
    %v2497 = vld [vmem:[#allocation2 + $0x40] sm:$0xff]
    %v2498 = vld [vmem:[#allocation2 + $0x48] sm:$0xff]
    %v2499 = vld [vmem:[#allocation2 + $0x50] sm:$0xff]
    %v2500 = vld [vmem:[#allocation2 + $0x58] sm:$0xff]
    %v2501 = vld [vmem:[#allocation2 + $0x60] sm:$0xff]
    %v2502 = vld [vmem:[#allocation2 + $0x68] sm:$0xff]
    %v2503 = vld [vmem:[#allocation2 + $0x70] sm:$0xff]
    %v2504 = vld [vmem:[#allocation2 + $0x78] sm:$0xff]
    %v2505 = vld [vmem:[#allocation2 + $0x80] sm:$0xff]
    %v2506 = vld [vmem:[#allocation2 + $0x88] sm:$0xff]
    %v2507 = vld [vmem:[#allocation2 + $0x90] sm:$0xff]
    %v2508 = vld [vmem:[#allocation2 + $0x98] sm:$0xff]
    %v2509 = vld [vmem:[#allocation2 + $0xa0] sm:$0xff]
    %v2510 = vld [vmem:[#allocation2 + $0xa8] sm:$0xff]
    %v2511 = vld [vmem:[#allocation2 + $0xb0] sm:$0xff]
    %v2512 = vld [vmem:[#allocation2 + $0xb8] sm:$0xff]
    %v2513 = vld [vmem:[#allocation2 + $0xc0] sm:$0xff]
    %v2514 = vld [vmem:[#allocation2 + $0xc8] sm:$0xff]
    %v2515 = vld [vmem:[#allocation2 + $0xd0] sm:$0xff]
    %v2516 = vld [vmem:[#allocation2 + $0xd8] sm:$0xff]
    %v2517 = vld [vmem:[#allocation2 + $0xe0] sm:$0xff]
    %v2518 = vld [vmem:[#allocation2 + $0xe8] sm:$0xff]
    %v2519 = vld [vmem:[#allocation2 + $0xf0] sm:$0xff]
    %v2520 = vld [vmem:[#allocation2 + $0xf8] sm:$0xff]
    %v2521 = vld [vmem:[#allocation2 + $0x100] sm:$0xff]
    %v2522 = vld [vmem:[#allocation2 + $0x108] sm:$0xff]
    %v2523 = vld [vmem:[#allocation2 + $0x110] sm:$0xff]
    %v2524 = vld [vmem:[#allocation2 + $0x118] sm:$0xff]
    %v2525 = vld [vmem:[#allocation2 + $0x120] sm:$0xff]
    %v2526 = vld [vmem:[#allocation2 + $0x128] sm:$0xff]
    %v2527 = vld [vmem:[#allocation2 + $0x130] sm:$0xff]
    %v2528 = vld [vmem:[#allocation2 + $0x138] sm:$0xff]
    %v2529 = vld [vmem:[#allocation2 + $0x140] sm:$0xff]
    %v2530 = vld [vmem:[#allocation2 + $0x148] sm:$0xff]
    %v2531 = vld [vmem:[#allocation2 + $0x150] sm:$0xff]
    %v2532 = vld [vmem:[#allocation2 + $0x158] sm:$0xff]
    %v2533 = vld [vmem:[#allocation2 + $0x160] sm:$0xff]
    %v2534 = vld [vmem:[#allocation2 + $0x168] sm:$0xff]
    %v2535 = vld [vmem:[#allocation2 + $0x170] sm:$0xff]
    %v2536 = vld [vmem:[#allocation2 + $0x178] sm:$0xff]
    %v2537 = vpack.c.bf16 %v2493, %v2489
    %v2538 = vpack.c.bf16 %v2494, %v2490
    %v2539 = vpack.c.bf16 %v2495, %v2491
    %v2540 = vpack.c.bf16 %v2496, %v2492
    %v2541 = vpack.c.bf16 %v2501, %v2497
    %v2542 = vpack.c.bf16 %v2502, %v2498
    %v2543 = vpack.c.bf16 %v2503, %v2499
    %v2544 = vpack.c.bf16 %v2504, %v2500
    %v2545 = vpack.c.bf16 %v2509, %v2505
    %v2546 = vpack.c.bf16 %v2510, %v2506
    %v2547 = vpack.c.bf16 %v2511, %v2507
    %v2548 = vpack.c.bf16 %v2512, %v2508
    %v2549 = vpack.c.bf16 %v2517, %v2513
    %v2550 = vpack.c.bf16 %v2518, %v2514
    %v2551 = vpack.c.bf16 %v2519, %v2515
    %v2552 = vpack.c.bf16 %v2520, %v2516
    %v2553 = vpack.c.bf16 %v2525, %v2521
    %v2554 = vpack.c.bf16 %v2526, %v2522
    %v2555 = vpack.c.bf16 %v2527, %v2523
    %v2556 = vpack.c.bf16 %v2528, %v2524
    %v2557 = vpack.c.bf16 %v2533, %v2529
    %v2558 = vpack.c.bf16 %v2534, %v2530
    %v2559 = vpack.c.bf16 %v2535, %v2531
    %v2560 = vpack.c.bf16 %v2536, %v2532
    %v2561 = vld [vmem:[%s5] sm:$0xf]
    %v2562 = vld [vmem:[%s5 + $0x4] sm:$0xf]
    %v2563 = vld [vmem:[%s5 + $0x8] sm:$0xf]
    %v2564 = vld [vmem:[%s5 + $0xc] sm:$0xf]
    %v2569 = vunpack.c.l.b16 %v2561
    %v2570 = vunpack.c.l.b16 %v2562
    %v2571 = vunpack.c.l.b16 %v2563
    %v2572 = vunpack.c.l.b16 %v2564
    %v2573 = vpack.c.b16 %v2570, %v2569
    %v2574 = vpack.c.b16 %v2572, %v2571
    %vm2575 = vcmask 785408
    %v2577 = vsel %vm2575, %v2573, 0
    %v2580 = vsel %vm2575, %v2574, 0
    %2582 = vmatprep.subr.bf16.mxu0 %v2538
    %2583 = vmatpush1.bf16.msra.mxu0 %v2537
    %2584 = vmatprep.subr.bf16.mxu0 %v2542
    %2585 = vmatpush1.bf16.msra.mxu0 %v2541
    %2586 = vmatprep.subr.bf16.mxu0 %v2546
    %2587 = vmatpush1.bf16.msra.mxu0 %v2545
    %2588 = vmatprep.subr.bf16.mxu0 %v2550
    %2589 = vmatpush1.bf16.msra.mxu0 %v2549
    %2590 = vmatprep.subr.bf16.mxu0 %v2554
    %2591 = vmatpush1.bf16.msra.mxu0 %v2553
    %2592 = vmatprep.subr.bf16.mxu0 %v2558
    %2593 = vmatpush1.bf16.msra.mxu0 %v2557
    %2594 = vmatprep.subr.bf16.mxu0 0
    %2595 = vmatpush1.bf16.msra.mxu0 0
    %2596 = vmatprep.subr.bf16.mxu0 0
    %2597 = vmatpush1.bf16.msra.mxu0 0
    %2598 = vmatprep.subr.bf16.mxu0 0
    %2599 = vmatpush1.bf16.msra.mxu0 0
    %2600 = vmatprep.subr.bf16.mxu0 0
    %2601 = vmatpush1.bf16.msra.mxu0 0
    %2602 = vmatprep.subr.bf16.mxu0 0
    %2603 = vmatpush1.bf16.msra.mxu0 0
    %2604 = vmatprep.subr.bf16.mxu0 0
    %2605 = vmatpush1.bf16.msra.mxu0 0
    %2606 = vmatprep.subr.bf16.mxu0 0
    %2607 = vmatpush1.bf16.msra.mxu0 0
    %2608 = vmatprep.subr.bf16.mxu0 0
    %2609 = vmatpush1.bf16.msra.mxu0 0
    %2610 = vmatprep.subr.bf16.mxu0 0
    %2611 = vmatpush1.bf16.msra.mxu0 0
    %2612 = vmatprep.subr.bf16.mxu0 0
    %2613 = vmatpush1.bf16.msra.mxu0 0
    %2614 = vmatprep.mubr.bf16.mxu0 0
    %2615 = vmatmul.mubr.bf16.gmra.mrb[0].mxu0 %v2577
    %v2616 = vpop.f32.mrb[0].mxu0
    %v2617 = vadd.f32 0.0, %v2616
    %v2618 = vpop.f32.mrb[0].mxu0
    %v2619 = vadd.f32 0.0, %v2618
    %v2620 = vpop.f32.mrb[0].mxu0
    %v2621 = vadd.f32 0.0, %v2620
    %v2622 = vpop.f32.mrb[0].mxu0
    %v2623 = vadd.f32 0.0, %v2622
    %2624 = vmatprep.mubr.bf16.mxu0 0
    %2625 = vmatmul.mubr.bf16.gmra.mrb[0].mxu0 %v2580
    %v2626 = vpop.f32.mrb[0].mxu0
    %v2627 = vadd.f32 0.0, %v2626
    %v2628 = vpop.f32.mrb[0].mxu0
    %v2629 = vadd.f32 0.0, %v2628
    %v2630 = vpop.f32.mrb[0].mxu0
    %v2631 = vadd.f32 0.0, %v2630
    %v2632 = vpop.f32.mrb[0].mxu0
    %v2633 = vadd.f32 0.0, %v2632
    %2634 = vdwg.mxu0
    %2635 = vmatprep.subr.bf16.mxu0 %v2540
    %2636 = vmatpush1.bf16.msra.mxu0 %v2539
    %2637 = vmatprep.subr.bf16.mxu0 %v2544
    %2638 = vmatpush1.bf16.msra.mxu0 %v2543
    %2639 = vmatprep.subr.bf16.mxu0 %v2548
    %2640 = vmatpush1.bf16.msra.mxu0 %v2547
    %2641 = vmatprep.subr.bf16.mxu0 %v2552
    %2642 = vmatpush1.bf16.msra.mxu0 %v2551
    %2643 = vmatprep.subr.bf16.mxu0 %v2556
    %2644 = vmatpush1.bf16.msra.mxu0 %v2555
    %2645 = vmatprep.subr.bf16.mxu0 %v2560
    %2646 = vmatpush1.bf16.msra.mxu0 %v2559
    %2647 = vmatprep.subr.bf16.mxu0 0
    %2648 = vmatpush1.bf16.msra.mxu0 0
    %2649 = vmatprep.subr.bf16.mxu0 0
    %2650 = vmatpush1.bf16.msra.mxu0 0
    %2651 = vmatprep.subr.bf16.mxu0 0
    %2652 = vmatpush1.bf16.msra.mxu0 0
    %2653 = vmatprep.subr.bf16.mxu0 0
    %2654 = vmatpush1.bf16.msra.mxu0 0
    %2655 = vmatprep.subr.bf16.mxu0 0
    %2656 = vmatpush1.bf16.msra.mxu0 0
    %2657 = vmatprep.subr.bf16.mxu0 0
    %2658 = vmatpush1.bf16.msra.mxu0 0
    %2659 = vmatprep.subr.bf16.mxu0 0
    %2660 = vmatpush1.bf16.msra.mxu0 0
    %2661 = vmatprep.subr.bf16.mxu0 0
    %2662 = vmatpush1.bf16.msra.mxu0 0
    %2663 = vmatprep.subr.bf16.mxu0 0
    %2664 = vmatpush1.bf16.msra.mxu0 0
    %2665 = vmatprep.subr.bf16.mxu0 0
    %2666 = vmatpush1.bf16.msra.mxu0 0
    %2667 = vmatprep.mubr.bf16.mxu0 0
    %2668 = vmatmul.mubr.bf16.gmra.mrb[0].mxu0 %v2577
    %v2669 = vpop.f32.mrb[0].mxu0
    %v2670 = vadd.f32 0.0, %v2669
    %v2671 = vpop.f32.mrb[0].mxu0
    %v2672 = vadd.f32 0.0, %v2671
    %v2673 = vpop.f32.mrb[0].mxu0
    %v2674 = vadd.f32 0.0, %v2673
    %v2675 = vpop.f32.mrb[0].mxu0
    %v2676 = vadd.f32 0.0, %v2675
    %2677 = vmatprep.mubr.bf16.mxu0 0
    %2678 = vmatmul.mubr.bf16.gmra.mrb[0].mxu0 %v2580
    %v2679 = vpop.f32.mrb[0].mxu0
    %v2680 = vadd.f32 0.0, %v2679
    %v2681 = vpop.f32.mrb[0].mxu0
    %v2682 = vadd.f32 0.0, %v2681
    %v2683 = vpop.f32.mrb[0].mxu0
    %v2684 = vadd.f32 0.0, %v2683
    %v2685 = vpop.f32.mrb[0].mxu0
    %v2686 = vadd.f32 0.0, %v2685
    %2687 = vdwg.mxu0
    %v2688 = vpack.c.bf16 %v2621, %v2617
    %v2689 = vpack.c.bf16 %v2623, %v2619
    %v2690 = vpack.c.bf16 %v2674, %v2670
    %v2691 = vpack.c.bf16 %v2676, %v2672
    %v2692 = vpack.c.bf16 %v2631, %v2627
    %v2693 = vpack.c.bf16 %v2633, %v2629
    %v2694 = vpack.c.bf16 %v2684, %v2680
    %v2695 = vpack.c.bf16 %v2686, %v2682
    %2696 = vmatprep.subr.bf16.mxu0 %v1101
    %2697 = vmatpush1.bf16.msra.mxu0 %v1100
    %2698 = vmatprep.subr.bf16.mxu0 %v1105
    %2699 = vmatpush1.bf16.msra.mxu0 %v1104
    %2700 = vmatprep.subr.bf16.mxu0 %v1109
    %2701 = vmatpush1.bf16.msra.mxu0 %v1108
    %2702 = vmatprep.subr.bf16.mxu0 %v1113
    %2703 = vmatpush1.bf16.msra.mxu0 %v1112
    %2704 = vmatprep.subr.bf16.mxu0 %v1117
    %2705 = vmatpush1.bf16.msra.mxu0 %v1116
    %2706 = vmatprep.subr.bf16.mxu0 %v1121
    %2707 = vmatpush1.bf16.msra.mxu0 %v1120
    %2708 = vmatprep.subr.bf16.mxu0 %v1125
    %2709 = vmatpush1.bf16.msra.mxu0 %v1124
    %2710 = vmatprep.subr.bf16.mxu0 %v1129
    %2711 = vmatpush1.bf16.msra.mxu0 %v1128
    %2712 = vmatprep.subr.bf16.mxu0 %v1133
    %2713 = vmatpush1.bf16.msra.mxu0 %v1132
    %2714 = vmatprep.subr.bf16.mxu0 %v1137
    %2715 = vmatpush1.bf16.msra.mxu0 %v1136
    %2716 = vmatprep.subr.bf16.mxu0 %v1141
    %2717 = vmatpush1.bf16.msra.mxu0 %v1140
    %2718 = vmatprep.subr.bf16.mxu0 %v1145
    %2719 = vmatpush1.bf16.msra.mxu0 %v1144
    %2720 = vmatprep.subr.bf16.mxu0 %v1149
    %2721 = vmatpush1.bf16.msra.mxu0 %v1148
    %2722 = vmatprep.subr.bf16.mxu0 %v1153
    %2723 = vmatpush1.bf16.msra.mxu0 %v1152
    %2724 = vmatprep.subr.bf16.mxu0 %v1157
    %2725 = vmatpush1.bf16.msra.mxu0 %v1156
    %2726 = vmatprep.subr.bf16.mxu0 %v1161
    %2727 = vmatpush1.bf16.msra.mxu0 %v1160
    %2728 = vmatprep.mubr.bf16.mxu0 %v2693
    %2729 = vmatmul.mubr.bf16.gmra.mrb[0].mxu0 %v2692
    %v2730 = vpop.f32.mrb[0].mxu0
    %v2731 = vadd.f32 0.0, %v2730
    %v2732 = vpop.f32.mrb[0].mxu0
    %v2733 = vadd.f32 0.0, %v2732
    %v2734 = vpop.f32.mrb[0].mxu0
    %v2735 = vadd.f32 0.0, %v2734
    %v2736 = vpop.f32.mrb[0].mxu0
    %v2737 = vadd.f32 0.0, %v2736
    %2738 = vdwg.mxu0
    %2739 = vmatprep.subr.bf16.mxu0 %v1165
    %2740 = vmatpush1.bf16.msra.mxu0 %v1164
    %2741 = vmatprep.subr.bf16.mxu0 %v1169
    %2742 = vmatpush1.bf16.msra.mxu0 %v1168
    %2743 = vmatprep.subr.bf16.mxu0 %v1173
    %2744 = vmatpush1.bf16.msra.mxu0 %v1172
    %2745 = vmatprep.subr.bf16.mxu0 %v1177
    %2746 = vmatpush1.bf16.msra.mxu0 %v1176
    %2747 = vmatprep.subr.bf16.mxu0 %v1181
    %2748 = vmatpush1.bf16.msra.mxu0 %v1180
    %2749 = vmatprep.subr.bf16.mxu0 %v1185
    %2750 = vmatpush1.bf16.msra.mxu0 %v1184
    %2751 = vmatprep.subr.bf16.mxu0 %v1189
    %2752 = vmatpush1.bf16.msra.mxu0 %v1188
    %2753 = vmatprep.subr.bf16.mxu0 %v1193
    %2754 = vmatpush1.bf16.msra.mxu0 %v1192
    %2755 = vmatprep.subr.bf16.mxu0 %v1197
    %2756 = vmatpush1.bf16.msra.mxu0 %v1196
    %2757 = vmatprep.subr.bf16.mxu0 %v1201
    %2758 = vmatpush1.bf16.msra.mxu0 %v1200
    %2759 = vmatprep.subr.bf16.mxu0 %v1205
    %2760 = vmatpush1.bf16.msra.mxu0 %v1204
    %2761 = vmatprep.subr.bf16.mxu0 %v1209
    %2762 = vmatpush1.bf16.msra.mxu0 %v1208
    %2763 = vmatprep.subr.bf16.mxu0 %v1213
    %2764 = vmatpush1.bf16.msra.mxu0 %v1212
    %2765 = vmatprep.subr.bf16.mxu0 %v1217
    %2766 = vmatpush1.bf16.msra.mxu0 %v1216
    %2767 = vmatprep.subr.bf16.mxu0 %v1221
    %2768 = vmatpush1.bf16.msra.mxu0 %v1220
    %2769 = vmatprep.subr.bf16.mxu0 %v1225
    %2770 = vmatpush1.bf16.msra.mxu0 %v1224
    %2771 = vmatprep.mubr.bf16.mxu0 %v2695
    %2772 = vmatmul.mubr.bf16.gmra.mrb[0].mxu0 %v2694
    %v2773 = vpop.f32.mrb[0].mxu0
    %v2774 = vadd.f32 %v2731, %v2773
    %v2775 = vpop.f32.mrb[0].mxu0
    %v2776 = vadd.f32 %v2733, %v2775
    %v2777 = vpop.f32.mrb[0].mxu0
    %v2778 = vadd.f32 %v2735, %v2777
    %v2779 = vpop.f32.mrb[0].mxu0
    %v2780 = vadd.f32 %v2737, %v2779
    %2781 = vdwg.mxu0
    %2782 = vmatprep.subr.bf16.mxu0 %v1103
    %2783 = vmatpush1.bf16.msra.mxu0 %v1102
    %2784 = vmatprep.subr.bf16.mxu0 %v1107
    %2785 = vmatpush1.bf16.msra.mxu0 %v1106
    %2786 = vmatprep.subr.bf16.mxu0 %v1111
    %2787 = vmatpush1.bf16.msra.mxu0 %v1110
    %2788 = vmatprep.subr.bf16.mxu0 %v1115
    %2789 = vmatpush1.bf16.msra.mxu0 %v1114
    %2790 = vmatprep.subr.bf16.mxu0 %v1119
    %2791 = vmatpush1.bf16.msra.mxu0 %v1118
    %2792 = vmatprep.subr.bf16.mxu0 %v1123
    %2793 = vmatpush1.bf16.msra.mxu0 %v1122
    %2794 = vmatprep.subr.bf16.mxu0 %v1127
    %2795 = vmatpush1.bf16.msra.mxu0 %v1126
    %2796 = vmatprep.subr.bf16.mxu0 %v1131
    %2797 = vmatpush1.bf16.msra.mxu0 %v1130
    %2798 = vmatprep.subr.bf16.mxu0 %v1135
    %2799 = vmatpush1.bf16.msra.mxu0 %v1134
    %2800 = vmatprep.subr.bf16.mxu0 %v1139
    %2801 = vmatpush1.bf16.msra.mxu0 %v1138
    %2802 = vmatprep.subr.bf16.mxu0 %v1143
    %2803 = vmatpush1.bf16.msra.mxu0 %v1142
    %2804 = vmatprep.subr.bf16.mxu0 %v1147
    %2805 = vmatpush1.bf16.msra.mxu0 %v1146
    %2806 = vmatprep.subr.bf16.mxu0 %v1151
    %2807 = vmatpush1.bf16.msra.mxu0 %v1150
    %2808 = vmatprep.subr.bf16.mxu0 %v1155
    %2809 = vmatpush1.bf16.msra.mxu0 %v1154
    %2810 = vmatprep.subr.bf16.mxu0 %v1159
    %2811 = vmatpush1.bf16.msra.mxu0 %v1158
    %2812 = vmatprep.subr.bf16.mxu0 %v1163
    %2813 = vmatpush1.bf16.msra.mxu0 %v1162
    %2814 = vmatprep.mubr.bf16.mxu0 %v2693
    %2815 = vmatmul.mubr.bf16.gmra.mrb[0].mxu0 %v2692
    %v2816 = vpop.f32.mrb[0].mxu0
    %v2817 = vadd.f32 0.0, %v2816
    %v2818 = vpop.f32.mrb[0].mxu0
    %v2819 = vadd.f32 0.0, %v2818
    %v2820 = vpop.f32.mrb[0].mxu0
    %v2821 = vadd.f32 0.0, %v2820
    %v2822 = vpop.f32.mrb[0].mxu0
    %v2823 = vadd.f32 0.0, %v2822
    %2824 = vdwg.mxu0
    %2825 = vmatprep.subr.bf16.mxu0 %v1167
    %2826 = vmatpush1.bf16.msra.mxu0 %v1166
    %2827 = vmatprep.subr.bf16.mxu0 %v1171
    %2828 = vmatpush1.bf16.msra.mxu0 %v1170
    %2829 = vmatprep.subr.bf16.mxu0 %v1175
    %2830 = vmatpush1.bf16.msra.mxu0 %v1174
    %2831 = vmatprep.subr.bf16.mxu0 %v1179
    %2832 = vmatpush1.bf16.msra.mxu0 %v1178
    %2833 = vmatprep.subr.bf16.mxu0 %v1183
    %2834 = vmatpush1.bf16.msra.mxu0 %v1182
    %2835 = vmatprep.subr.bf16.mxu0 %v1187
    %2836 = vmatpush1.bf16.msra.mxu0 %v1186
    %2837 = vmatprep.subr.bf16.mxu0 %v1191
    %2838 = vmatpush1.bf16.msra.mxu0 %v1190
    %2839 = vmatprep.subr.bf16.mxu0 %v1195
    %2840 = vmatpush1.bf16.msra.mxu0 %v1194
    %2841 = vmatprep.subr.bf16.mxu0 %v1199
    %2842 = vmatpush1.bf16.msra.mxu0 %v1198
    %2843 = vmatprep.subr.bf16.mxu0 %v1203
    %2844 = vmatpush1.bf16.msra.mxu0 %v1202
    %2845 = vmatprep.subr.bf16.mxu0 %v1207
    %2846 = vmatpush1.bf16.msra.mxu0 %v1206
    %2847 = vmatprep.subr.bf16.mxu0 %v1211
    %2848 = vmatpush1.bf16.msra.mxu0 %v1210
    %2849 = vmatprep.subr.bf16.mxu0 %v1215
    %2850 = vmatpush1.bf16.msra.mxu0 %v1214
    %2851 = vmatprep.subr.bf16.mxu0 %v1219
    %2852 = vmatpush1.bf16.msra.mxu0 %v1218
    %2853 = vmatprep.subr.bf16.mxu0 %v1223
    %2854 = vmatpush1.bf16.msra.mxu0 %v1222
    %2855 = vmatprep.subr.bf16.mxu0 %v1227
    %2856 = vmatpush1.bf16.msra.mxu0 %v1226
    %2857 = vmatprep.mubr.bf16.mxu0 %v2695
    %2858 = vmatmul.mubr.bf16.gmra.mrb[0].mxu0 %v2694
    %v2859 = vpop.f32.mrb[0].mxu0
    %v2860 = vadd.f32 %v2817, %v2859
    %v2861 = vpop.f32.mrb[0].mxu0
    %v2862 = vadd.f32 %v2819, %v2861
    %v2863 = vpop.f32.mrb[0].mxu0
    %v2864 = vadd.f32 %v2821, %v2863
    %v2865 = vpop.f32.mrb[0].mxu0
    %v2866 = vadd.f32 %v2823, %v2865
    %2867 = vdwg.mxu0
    %2868 = vmatprep.subr.bf16.mxu0 %v1953
    %2869 = vmatpush1.bf16.msra.mxu0 %v1952
    %2870 = vmatprep.subr.bf16.mxu0 %v1957
    %2871 = vmatpush1.bf16.msra.mxu0 %v1956
    %2872 = vmatprep.subr.bf16.mxu0 %v1961
    %2873 = vmatpush1.bf16.msra.mxu0 %v1960
    %2874 = vmatprep.subr.bf16.mxu0 %v1965
    %2875 = vmatpush1.bf16.msra.mxu0 %v1964
    %2876 = vmatprep.subr.bf16.mxu0 %v1969
    %2877 = vmatpush1.bf16.msra.mxu0 %v1968
    %2878 = vmatprep.subr.bf16.mxu0 %v1973
    %2879 = vmatpush1.bf16.msra.mxu0 %v1972
    %2880 = vmatprep.subr.bf16.mxu0 %v1977
    %2881 = vmatpush1.bf16.msra.mxu0 %v1976
    %2882 = vmatprep.subr.bf16.mxu0 %v1981
    %2883 = vmatpush1.bf16.msra.mxu0 %v1980
    %2884 = vmatprep.subr.bf16.mxu0 %v1985
    %2885 = vmatpush1.bf16.msra.mxu0 %v1984
    %2886 = vmatprep.subr.bf16.mxu0 %v1989
    %2887 = vmatpush1.bf16.msra.mxu0 %v1988
    %2888 = vmatprep.subr.bf16.mxu0 %v1993
    %2889 = vmatpush1.bf16.msra.mxu0 %v1992
    %2890 = vmatprep.subr.bf16.mxu0 %v1997
    %2891 = vmatpush1.bf16.msra.mxu0 %v1996
    %2892 = vmatprep.subr.bf16.mxu0 %v2001
    %2893 = vmatpush1.bf16.msra.mxu0 %v2000
    %2894 = vmatprep.subr.bf16.mxu0 %v2005
    %2895 = vmatpush1.bf16.msra.mxu0 %v2004
    %2896 = vmatprep.subr.bf16.mxu0 %v2009
    %2897 = vmatpush1.bf16.msra.mxu0 %v2008
    %2898 = vmatprep.subr.bf16.mxu0 %v2013
    %2899 = vmatpush1.bf16.msra.mxu0 %v2012
    %2900 = vmatprep.mubr.bf16.mxu0 %v2689
    %2901 = vmatmul.mubr.bf16.gmra.mrb[0].mxu0 %v2688
    %v2902 = vpop.f32.mrb[0].mxu0
    %v2903 = vadd.f32 %v2774, %v2902
    %v2904 = vpop.f32.mrb[0].mxu0
    %v2905 = vadd.f32 %v2776, %v2904
    %v2906 = vpop.f32.mrb[0].mxu0
    %v2907 = vadd.f32 %v2778, %v2906
    %v2908 = vpop.f32.mrb[0].mxu0
    %v2909 = vadd.f32 %v2780, %v2908
    %2910 = vdwg.mxu0
    %2911 = vmatprep.subr.bf16.mxu0 %v2017
    %2912 = vmatpush1.bf16.msra.mxu0 %v2016
    %2913 = vmatprep.subr.bf16.mxu0 %v2021
    %2914 = vmatpush1.bf16.msra.mxu0 %v2020
    %2915 = vmatprep.subr.bf16.mxu0 %v2025
    %2916 = vmatpush1.bf16.msra.mxu0 %v2024
    %2917 = vmatprep.subr.bf16.mxu0 %v2029
    %2918 = vmatpush1.bf16.msra.mxu0 %v2028
    %2919 = vmatprep.subr.bf16.mxu0 %v2033
    %2920 = vmatpush1.bf16.msra.mxu0 %v2032
    %2921 = vmatprep.subr.bf16.mxu0 %v2037
    %2922 = vmatpush1.bf16.msra.mxu0 %v2036
    %2923 = vmatprep.subr.bf16.mxu0 %v2041
    %2924 = vmatpush1.bf16.msra.mxu0 %v2040
    %2925 = vmatprep.subr.bf16.mxu0 %v2045
    %2926 = vmatpush1.bf16.msra.mxu0 %v2044
    %2927 = vmatprep.subr.bf16.mxu0 %v2049
    %2928 = vmatpush1.bf16.msra.mxu0 %v2048
    %2929 = vmatprep.subr.bf16.mxu0 %v2053
    %2930 = vmatpush1.bf16.msra.mxu0 %v2052
    %2931 = vmatprep.subr.bf16.mxu0 %v2057
    %2932 = vmatpush1.bf16.msra.mxu0 %v2056
    %2933 = vmatprep.subr.bf16.mxu0 %v2061
    %2934 = vmatpush1.bf16.msra.mxu0 %v2060
    %2935 = vmatprep.subr.bf16.mxu0 %v2065
    %2936 = vmatpush1.bf16.msra.mxu0 %v2064
    %2937 = vmatprep.subr.bf16.mxu0 %v2069
    %2938 = vmatpush1.bf16.msra.mxu0 %v2068
    %2939 = vmatprep.subr.bf16.mxu0 %v2073
    %2940 = vmatpush1.bf16.msra.mxu0 %v2072
    %2941 = vmatprep.subr.bf16.mxu0 %v2077
    %2942 = vmatpush1.bf16.msra.mxu0 %v2076
    %2943 = vmatprep.mubr.bf16.mxu0 %v2691
    %2944 = vmatmul.mubr.bf16.gmra.mrb[0].mxu0 %v2690
    %v2945 = vpop.f32.mrb[0].mxu0
    %v2946 = vadd.f32 %v2903, %v2945
    %v2947 = vpop.f32.mrb[0].mxu0
    %v2948 = vadd.f32 %v2905, %v2947
    %v2949 = vpop.f32.mrb[0].mxu0
    %v2950 = vadd.f32 %v2907, %v2949
    %v2951 = vpop.f32.mrb[0].mxu0
    %v2952 = vadd.f32 %v2909, %v2951
    %2953 = vdwg.mxu0
    %2954 = vmatprep.subr.bf16.mxu0 %v1955
    %2955 = vmatpush1.bf16.msra.mxu0 %v1954
    %2956 = vmatprep.subr.bf16.mxu0 %v1959
    %2957 = vmatpush1.bf16.msra.mxu0 %v1958
    %2958 = vmatprep.subr.bf16.mxu0 %v1963
    %2959 = vmatpush1.bf16.msra.mxu0 %v1962
    %2960 = vmatprep.subr.bf16.mxu0 %v1967
    %2961 = vmatpush1.bf16.msra.mxu0 %v1966
    %2962 = vmatprep.subr.bf16.mxu0 %v1971
    %2963 = vmatpush1.bf16.msra.mxu0 %v1970
    %2964 = vmatprep.subr.bf16.mxu0 %v1975
    %2965 = vmatpush1.bf16.msra.mxu0 %v1974
    %2966 = vmatprep.subr.bf16.mxu0 %v1979
    %2967 = vmatpush1.bf16.msra.mxu0 %v1978
    %2968 = vmatprep.subr.bf16.mxu0 %v1983
    %2969 = vmatpush1.bf16.msra.mxu0 %v1982
    %2970 = vmatprep.subr.bf16.mxu0 %v1987
    %2971 = vmatpush1.bf16.msra.mxu0 %v1986
    %2972 = vmatprep.subr.bf16.mxu0 %v1991
    %2973 = vmatpush1.bf16.msra.mxu0 %v1990
    %2974 = vmatprep.subr.bf16.mxu0 %v1995
    %2975 = vmatpush1.bf16.msra.mxu0 %v1994
    %2976 = vmatprep.subr.bf16.mxu0 %v1999
    %2977 = vmatpush1.bf16.msra.mxu0 %v1998
    %2978 = vmatprep.subr.bf16.mxu0 %v2003
    %2979 = vmatpush1.bf16.msra.mxu0 %v2002
    %2980 = vmatprep.subr.bf16.mxu0 %v2007
    %2981 = vmatpush1.bf16.msra.mxu0 %v2006
    %2982 = vmatprep.subr.bf16.mxu0 %v2011
    %2983 = vmatpush1.bf16.msra.mxu0 %v2010
    %2984 = vmatprep.subr.bf16.mxu0 %v2015
    %2985 = vmatpush1.bf16.msra.mxu0 %v2014
    %2986 = vmatprep.mubr.bf16.mxu0 %v2689
    %2987 = vmatmul.mubr.bf16.gmra.mrb[0].mxu0 %v2688
    %v2988 = vpop.f32.mrb[0].mxu0
    %v2989 = vadd.f32 %v2860, %v2988
    %v2990 = vpop.f32.mrb[0].mxu0
    %v2991 = vadd.f32 %v2862, %v2990
    %v2992 = vpop.f32.mrb[0].mxu0
    %v2993 = vadd.f32 %v2864, %v2992
    %v2994 = vpop.f32.mrb[0].mxu0
    %v2995 = vadd.f32 %v2866, %v2994
    %2996 = vdwg.mxu0
    %2997 = vmatprep.subr.bf16.mxu0 %v2019
    %2998 = vmatpush1.bf16.msra.mxu0 %v2018
    %2999 = vmatprep.subr.bf16.mxu0 %v2023
    %3000 = vmatpush1.bf16.msra.mxu0 %v2022
    %3001 = vmatprep.subr.bf16.mxu0 %v2027
    %3002 = vmatpush1.bf16.msra.mxu0 %v2026
    %3003 = vmatprep.subr.bf16.mxu0 %v2031
    %3004 = vmatpush1.bf16.msra.mxu0 %v2030
    %3005 = vmatprep.subr.bf16.mxu0 %v2035
    %3006 = vmatpush1.bf16.msra.mxu0 %v2034
    %3007 = vmatprep.subr.bf16.mxu0 %v2039
    %3008 = vmatpush1.bf16.msra.mxu0 %v2038
    %3009 = vmatprep.subr.bf16.mxu0 %v2043
    %3010 = vmatpush1.bf16.msra.mxu0 %v2042
    %3011 = vmatprep.subr.bf16.mxu0 %v2047
    %3012 = vmatpush1.bf16.msra.mxu0 %v2046
    %3013 = vmatprep.subr.bf16.mxu0 %v2051
    %3014 = vmatpush1.bf16.msra.mxu0 %v2050
    %3015 = vmatprep.subr.bf16.mxu0 %v2055
    %3016 = vmatpush1.bf16.msra.mxu0 %v2054
    %3017 = vmatprep.subr.bf16.mxu0 %v2059
    %3018 = vmatpush1.bf16.msra.mxu0 %v2058
    %3019 = vmatprep.subr.bf16.mxu0 %v2063
    %3020 = vmatpush1.bf16.msra.mxu0 %v2062
    %3021 = vmatprep.subr.bf16.mxu0 %v2067
    %3022 = vmatpush1.bf16.msra.mxu0 %v2066
    %3023 = vmatprep.subr.bf16.mxu0 %v2071
    %3024 = vmatpush1.bf16.msra.mxu0 %v2070
    %3025 = vmatprep.subr.bf16.mxu0 %v2075
    %3026 = vmatpush1.bf16.msra.mxu0 %v2074
    %3027 = vmatprep.subr.bf16.mxu0 %v2079
    %3028 = vmatpush1.bf16.msra.mxu0 %v2078
    %3029 = vmatprep.mubr.bf16.mxu0 %v2691
    %3030 = vmatmul.mubr.bf16.gmra.mrb[0].mxu0 %v2690
    %v3031 = vpop.f32.mrb[0].mxu0
    %v3032 = vadd.f32 %v2989, %v3031
    %v3033 = vpop.f32.mrb[0].mxu0
    %v3034 = vadd.f32 %v2991, %v3033
    %v3035 = vpop.f32.mrb[0].mxu0
    %v3036 = vadd.f32 %v2993, %v3035
    %v3037 = vpop.f32.mrb[0].mxu0
    %v3038 = vadd.f32 %v2995, %v3037
    %3039 = vdwg.mxu0
    %v3040 = vadd.f32 %v2946, %v2424
    %v3041 = vadd.f32 %v2948, %v2428
    %v3042 = vadd.f32 %v3032, %v2432
    %v3043 = vadd.f32 %v3034, %v2436
    %v3044 = vadd.f32 %v2950, %v2424
    %v3045 = vadd.f32 %v2952, %v2428
    %v3046 = vadd.f32 %v3036, %v2432
    %v3047 = vadd.f32 %v3038, %v2436
    %v3048 = vtanh.pop %v3040
    %v3049 = vtanh.pop %v3041
    %v3050 = vtanh.pop %v3042
    %v3051 = vtanh.pop %v3043
    %v3052 = vtanh.pop %v3044
    %v3053 = vtanh.pop %v3045
    %v3054 = vtanh.pop %v3046
    %v3055 = vtanh.pop %v3047
    %3056 = vst [vmem:[#allocation2 + $0x180] sm:$0xff] %v3048
    %3057 = vst [vmem:[#allocation2 + $0x188] sm:$0xff] %v3049
    %3058 = vst [vmem:[#allocation2 + $0x190] sm:$0xff] %v3050
    %3059 = vst [vmem:[#allocation2 + $0x198] sm:$0xff] %v3051
    %3060 = vst [vmem:[#allocation2 + $0x1a0] sm:$0xff] %v3052
    %3061 = vst [vmem:[#allocation2 + $0x1a8] sm:$0xff] %v3053
    %3062 = vst [vmem:[#allocation2 + $0x1b0] sm:$0xff] %v3054
    %3063 = vst [vmem:[#allocation2 + $0x1b8] sm:$0xff] %v3055
    %v3064 = vld [vmem:[#allocation2] sm:$0xff]
    %v3065 = vld [vmem:[#allocation2 + $0x8] sm:$0xff]
    %v3066 = vld [vmem:[#allocation2 + $0x10] sm:$0xff]
    %v3067 = vld [vmem:[#allocation2 + $0x18] sm:$0xff]
    %v3068 = vld [vmem:[#allocation2 + $0x20] sm:$0xff]
    %v3069 = vld [vmem:[#allocation2 + $0x28] sm:$0xff]
    %v3070 = vld [vmem:[#allocation2 + $0x30] sm:$0xff]
    %v3071 = vld [vmem:[#allocation2 + $0x38] sm:$0xff]
    %v3072 = vld [vmem:[#allocation2 + $0x40] sm:$0xff]
    %v3073 = vld [vmem:[#allocation2 + $0x48] sm:$0xff]
    %v3074 = vld [vmem:[#allocation2 + $0x50] sm:$0xff]
    %v3075 = vld [vmem:[#allocation2 + $0x58] sm:$0xff]
    %v3076 = vld [vmem:[#allocation2 + $0x60] sm:$0xff]
    %v3077 = vld [vmem:[#allocation2 + $0x68] sm:$0xff]
    %v3078 = vld [vmem:[#allocation2 + $0x70] sm:$0xff]
    %v3079 = vld [vmem:[#allocation2 + $0x78] sm:$0xff]
    %v3080 = vld [vmem:[#allocation2 + $0x80] sm:$0xff]
    %v3081 = vld [vmem:[#allocation2 + $0x88] sm:$0xff]
    %v3082 = vld [vmem:[#allocation2 + $0x90] sm:$0xff]
    %v3083 = vld [vmem:[#allocation2 + $0x98] sm:$0xff]
    %v3084 = vld [vmem:[#allocation2 + $0xa0] sm:$0xff]
    %v3085 = vld [vmem:[#allocation2 + $0xa8] sm:$0xff]
    %v3086 = vld [vmem:[#allocation2 + $0xb0] sm:$0xff]
    %v3087 = vld [vmem:[#allocation2 + $0xb8] sm:$0xff]
    %v3088 = vld [vmem:[#allocation2 + $0xc0] sm:$0xff]
    %v3089 = vld [vmem:[#allocation2 + $0xc8] sm:$0xff]
    %v3090 = vld [vmem:[#allocation2 + $0xd0] sm:$0xff]
    %v3091 = vld [vmem:[#allocation2 + $0xd8] sm:$0xff]
    %v3092 = vld [vmem:[#allocation2 + $0xe0] sm:$0xff]
    %v3093 = vld [vmem:[#allocation2 + $0xe8] sm:$0xff]
    %v3094 = vld [vmem:[#allocation2 + $0xf0] sm:$0xff]
    %v3095 = vld [vmem:[#allocation2 + $0xf8] sm:$0xff]
    %v3096 = vld [vmem:[#allocation2 + $0x100] sm:$0xff]
    %v3097 = vld [vmem:[#allocation2 + $0x108] sm:$0xff]
    %v3098 = vld [vmem:[#allocation2 + $0x110] sm:$0xff]
    %v3099 = vld [vmem:[#allocation2 + $0x118] sm:$0xff]
    %v3100 = vld [vmem:[#allocation2 + $0x120] sm:$0xff]
    %v3101 = vld [vmem:[#allocation2 + $0x128] sm:$0xff]
    %v3102 = vld [vmem:[#allocation2 + $0x130] sm:$0xff]
    %v3103 = vld [vmem:[#allocation2 + $0x138] sm:$0xff]
    %v3104 = vld [vmem:[#allocation2 + $0x140] sm:$0xff]
    %v3105 = vld [vmem:[#allocation2 + $0x148] sm:$0xff]
    %v3106 = vld [vmem:[#allocation2 + $0x150] sm:$0xff]
    %v3107 = vld [vmem:[#allocation2 + $0x158] sm:$0xff]
    %v3108 = vld [vmem:[#allocation2 + $0x160] sm:$0xff]
    %v3109 = vld [vmem:[#allocation2 + $0x168] sm:$0xff]
    %v3110 = vld [vmem:[#allocation2 + $0x170] sm:$0xff]
    %v3111 = vld [vmem:[#allocation2 + $0x178] sm:$0xff]
    %v3112 = vld [vmem:[#allocation2 + $0x180] sm:$0xff]
    %v3113 = vld [vmem:[#allocation2 + $0x188] sm:$0xff]
    %v3114 = vld [vmem:[#allocation2 + $0x190] sm:$0xff]
    %v3115 = vld [vmem:[#allocation2 + $0x198] sm:$0xff]
    %v3116 = vld [vmem:[#allocation2 + $0x1a0] sm:$0xff]
    %v3117 = vld [vmem:[#allocation2 + $0x1a8] sm:$0xff]
    %v3118 = vld [vmem:[#allocation2 + $0x1b0] sm:$0xff]
    %v3119 = vld [vmem:[#allocation2 + $0x1b8] sm:$0xff]
    %v3120 = vpack.c.bf16 %v3068, %v3064
    %v3121 = vpack.c.bf16 %v3069, %v3065
    %v3122 = vpack.c.bf16 %v3070, %v3066
    %v3123 = vpack.c.bf16 %v3071, %v3067
    %v3124 = vpack.c.bf16 %v3076, %v3072
    %v3125 = vpack.c.bf16 %v3077, %v3073
    %v3126 = vpack.c.bf16 %v3078, %v3074
    %v3127 = vpack.c.bf16 %v3079, %v3075
    %v3128 = vpack.c.bf16 %v3084, %v3080
    %v3129 = vpack.c.bf16 %v3085, %v3081
    %v3130 = vpack.c.bf16 %v3086, %v3082
    %v3131 = vpack.c.bf16 %v3087, %v3083
    %v3132 = vpack.c.bf16 %v3092, %v3088
    %v3133 = vpack.c.bf16 %v3093, %v3089
    %v3134 = vpack.c.bf16 %v3094, %v3090
    %v3135 = vpack.c.bf16 %v3095, %v3091
    %v3136 = vpack.c.bf16 %v3100, %v3096
    %v3137 = vpack.c.bf16 %v3101, %v3097
    %v3138 = vpack.c.bf16 %v3102, %v3098
    %v3139 = vpack.c.bf16 %v3103, %v3099
    %v3140 = vpack.c.bf16 %v3108, %v3104
    %v3141 = vpack.c.bf16 %v3109, %v3105
    %v3142 = vpack.c.bf16 %v3110, %v3106
    %v3143 = vpack.c.bf16 %v3111, %v3107
    %v3144 = vpack.c.bf16 %v3116, %v3112
    %v3145 = vpack.c.bf16 %v3117, %v3113
    %v3146 = vpack.c.bf16 %v3118, %v3114
    %v3147 = vpack.c.bf16 %v3119, %v3115
    %v3148 = vld [vmem:[#allocation12] sm:$0xf]
    %v3149 = vld [vmem:[#allocation12 + $0x4] sm:$0xf]
    %v3152 = vunpack.c.l.b16 %v3148
    %v3153 = vunpack.c.l.b16 %v3149
    %v3154 = vpack.c.b16 %v3153, %v3152
    %vm3155 = vcmask 916480
    %v3157 = vsel %vm3155, %v3154, 0
    %3159 = vmatprep.subr.bf16.mxu0 %v3121
    %3160 = vmatpush1.bf16.msra.mxu0 %v3120
    %3161 = vmatprep.subr.bf16.mxu0 %v3125
    %3162 = vmatpush1.bf16.msra.mxu0 %v3124
    %3163 = vmatprep.subr.bf16.mxu0 %v3129
    %3164 = vmatpush1.bf16.msra.mxu0 %v3128
    %3165 = vmatprep.subr.bf16.mxu0 %v3133
    %3166 = vmatpush1.bf16.msra.mxu0 %v3132
    %3167 = vmatprep.subr.bf16.mxu0 %v3137
    %3168 = vmatpush1.bf16.msra.mxu0 %v3136
    %3169 = vmatprep.subr.bf16.mxu0 %v3141
    %3170 = vmatpush1.bf16.msra.mxu0 %v3140
    %3171 = vmatprep.subr.bf16.mxu0 %v3145
    %3172 = vmatpush1.bf16.msra.mxu0 %v3144
    %3173 = vmatprep.subr.bf16.mxu0 0
    %3174 = vmatpush1.bf16.msra.mxu0 0
    %3175 = vmatprep.subr.bf16.mxu0 0
    %3176 = vmatpush1.bf16.msra.mxu0 0
    %3177 = vmatprep.subr.bf16.mxu0 0
    %3178 = vmatpush1.bf16.msra.mxu0 0
    %3179 = vmatprep.subr.bf16.mxu0 0
    %3180 = vmatpush1.bf16.msra.mxu0 0
    %3181 = vmatprep.subr.bf16.mxu0 0
    %3182 = vmatpush1.bf16.msra.mxu0 0
    %3183 = vmatprep.subr.bf16.mxu0 0
    %3184 = vmatpush1.bf16.msra.mxu0 0
    %3185 = vmatprep.subr.bf16.mxu0 0
    %3186 = vmatpush1.bf16.msra.mxu0 0
    %3187 = vmatprep.subr.bf16.mxu0 0
    %3188 = vmatpush1.bf16.msra.mxu0 0
    %3189 = vmatprep.subr.bf16.mxu0 0
    %3190 = vmatpush1.bf16.msra.mxu0 0
    %3191 = vmatprep.mubr.bf16.mxu0 0
    %3192 = vmatmul.mubr.bf16.gmra.mrb[0].mxu0 %v3157
    %v3193 = vpop.f32.mrb[0].mxu0
    %v3194 = vadd.f32 0.0, %v3193
    %v3195 = vpop.f32.mrb[0].mxu0
    %v3196 = vadd.f32 0.0, %v3195
    %v3197 = vpop.f32.mrb[0].mxu0
    %v3198 = vadd.f32 0.0, %v3197
    %v3199 = vpop.f32.mrb[0].mxu0
    %v3200 = vadd.f32 0.0, %v3199
    %3201 = vdwg.mxu0
    %3202 = vmatprep.subr.bf16.mxu0 %v3123
    %3203 = vmatpush1.bf16.msra.mxu0 %v3122
    %3204 = vmatprep.subr.bf16.mxu0 %v3127
    %3205 = vmatpush1.bf16.msra.mxu0 %v3126
    %3206 = vmatprep.subr.bf16.mxu0 %v3131
    %3207 = vmatpush1.bf16.msra.mxu0 %v3130
    %3208 = vmatprep.subr.bf16.mxu0 %v3135
    %3209 = vmatpush1.bf16.msra.mxu0 %v3134
    %3210 = vmatprep.subr.bf16.mxu0 %v3139
    %3211 = vmatpush1.bf16.msra.mxu0 %v3138
    %3212 = vmatprep.subr.bf16.mxu0 %v3143
    %3213 = vmatpush1.bf16.msra.mxu0 %v3142
    %3214 = vmatprep.subr.bf16.mxu0 %v3147
    %3215 = vmatpush1.bf16.msra.mxu0 %v3146
    %3216 = vmatprep.subr.bf16.mxu0 0
    %3217 = vmatpush1.bf16.msra.mxu0 0
    %3218 = vmatprep.subr.bf16.mxu0 0
    %3219 = vmatpush1.bf16.msra.mxu0 0
    %3220 = vmatprep.subr.bf16.mxu0 0
    %3221 = vmatpush1.bf16.msra.mxu0 0
    %3222 = vmatprep.subr.bf16.mxu0 0
    %3223 = vmatpush1.bf16.msra.mxu0 0
    %3224 = vmatprep.subr.bf16.mxu0 0
    %3225 = vmatpush1.bf16.msra.mxu0 0
    %3226 = vmatprep.subr.bf16.mxu0 0
    %3227 = vmatpush1.bf16.msra.mxu0 0
    %3228 = vmatprep.subr.bf16.mxu0 0
    %3229 = vmatpush1.bf16.msra.mxu0 0
    %3230 = vmatprep.subr.bf16.mxu0 0
    %3231 = vmatpush1.bf16.msra.mxu0 0
    %3232 = vmatprep.subr.bf16.mxu0 0
    %3233 = vmatpush1.bf16.msra.mxu0 0
    %3234 = vmatprep.mubr.bf16.mxu0 0
    %3235 = vmatmul.mubr.bf16.gmra.mrb[0].mxu0 %v3157
    %v3236 = vpop.f32.mrb[0].mxu0
    %v3237 = vadd.f32 0.0, %v3236
    %v3238 = vpop.f32.mrb[0].mxu0
    %v3239 = vadd.f32 0.0, %v3238
    %v3240 = vpop.f32.mrb[0].mxu0
    %v3241 = vadd.f32 0.0, %v3240
    %v3242 = vpop.f32.mrb[0].mxu0
    %v3243 = vadd.f32 0.0, %v3242
    %3244 = vdwg.mxu0
    %v3245 = vpack.c.bf16 %v3194, %v3194
    %v3246 = vpack.c.bf16 %v3196, %v3196
    %v3247 = vpack.c.bf16 %v3237, %v3237
    %v3248 = vpack.c.bf16 %v3239, %v3239
    %v3249 = vpack.c.bf16 %v3198, %v3198
    %v3250 = vpack.c.bf16 %v3200, %v3200
    %v3251 = vpack.c.bf16 %v3241, %v3241
    %v3252 = vpack.c.bf16 %v3243, %v3243
    %3253 = vmatprep.subr.bf16.mxu0 %v1101
    %3254 = vmatpush1.bf16.msra.mxu0 %v1100
    %3255 = vmatprep.subr.bf16.mxu0 %v1105
    %3256 = vmatpush1.bf16.msra.mxu0 %v1104
    %3257 = vmatprep.subr.bf16.mxu0 %v1109
    %3258 = vmatpush1.bf16.msra.mxu0 %v1108
    %3259 = vmatprep.subr.bf16.mxu0 %v1113
    %3260 = vmatpush1.bf16.msra.mxu0 %v1112
    %3261 = vmatprep.subr.bf16.mxu0 %v1117
    %3262 = vmatpush1.bf16.msra.mxu0 %v1116
    %3263 = vmatprep.subr.bf16.mxu0 %v1121
    %3264 = vmatpush1.bf16.msra.mxu0 %v1120
    %3265 = vmatprep.subr.bf16.mxu0 %v1125
    %3266 = vmatpush1.bf16.msra.mxu0 %v1124
    %3267 = vmatprep.subr.bf16.mxu0 %v1129
    %3268 = vmatpush1.bf16.msra.mxu0 %v1128
    %3269 = vmatprep.subr.bf16.mxu0 %v1133
    %3270 = vmatpush1.bf16.msra.mxu0 %v1132
    %3271 = vmatprep.subr.bf16.mxu0 %v1137
    %3272 = vmatpush1.bf16.msra.mxu0 %v1136
    %3273 = vmatprep.subr.bf16.mxu0 %v1141
    %3274 = vmatpush1.bf16.msra.mxu0 %v1140
    %3275 = vmatprep.subr.bf16.mxu0 %v1145
    %3276 = vmatpush1.bf16.msra.mxu0 %v1144
    %3277 = vmatprep.subr.bf16.mxu0 %v1149
    %3278 = vmatpush1.bf16.msra.mxu0 %v1148
    %3279 = vmatprep.subr.bf16.mxu0 %v1153
    %3280 = vmatpush1.bf16.msra.mxu0 %v1152
    %3281 = vmatprep.subr.bf16.mxu0 %v1157
    %3282 = vmatpush1.bf16.msra.mxu0 %v1156
    %3283 = vmatprep.subr.bf16.mxu0 %v1161
    %3284 = vmatpush1.bf16.msra.mxu0 %v1160
    %3285 = vmatprep.mubr.bf16.mxu0 %v3250
    %3286 = vmatmul.mubr.bf16.gmra.mrb[0].mxu0 %v3249
    %v3287 = vpop.f32.mrb[0].mxu0
    %v3288 = vadd.f32 0.0, %v3287
    %v3289 = vpop.f32.mrb[0].mxu0
    %v3290 = vadd.f32 0.0, %v3289
    %v3291 = vpop.f32.mrb[0].mxu0
    %v3292 = vpop.f32.mrb[0].mxu0
    %3293 = vdwg.mxu0
    %3294 = vmatprep.subr.bf16.mxu0 %v1165
    %3295 = vmatpush1.bf16.msra.mxu0 %v1164
    %3296 = vmatprep.subr.bf16.mxu0 %v1169
    %3297 = vmatpush1.bf16.msra.mxu0 %v1168
    %3298 = vmatprep.subr.bf16.mxu0 %v1173
    %3299 = vmatpush1.bf16.msra.mxu0 %v1172
    %3300 = vmatprep.subr.bf16.mxu0 %v1177
    %3301 = vmatpush1.bf16.msra.mxu0 %v1176
    %3302 = vmatprep.subr.bf16.mxu0 %v1181
    %3303 = vmatpush1.bf16.msra.mxu0 %v1180
    %3304 = vmatprep.subr.bf16.mxu0 %v1185
    %3305 = vmatpush1.bf16.msra.mxu0 %v1184
    %3306 = vmatprep.subr.bf16.mxu0 %v1189
    %3307 = vmatpush1.bf16.msra.mxu0 %v1188
    %3308 = vmatprep.subr.bf16.mxu0 %v1193
    %3309 = vmatpush1.bf16.msra.mxu0 %v1192
    %3310 = vmatprep.subr.bf16.mxu0 %v1197
    %3311 = vmatpush1.bf16.msra.mxu0 %v1196
    %3312 = vmatprep.subr.bf16.mxu0 %v1201
    %3313 = vmatpush1.bf16.msra.mxu0 %v1200
    %3314 = vmatprep.subr.bf16.mxu0 %v1205
    %3315 = vmatpush1.bf16.msra.mxu0 %v1204
    %3316 = vmatprep.subr.bf16.mxu0 %v1209
    %3317 = vmatpush1.bf16.msra.mxu0 %v1208
    %3318 = vmatprep.subr.bf16.mxu0 %v1213
    %3319 = vmatpush1.bf16.msra.mxu0 %v1212
    %3320 = vmatprep.subr.bf16.mxu0 %v1217
    %3321 = vmatpush1.bf16.msra.mxu0 %v1216
    %3322 = vmatprep.subr.bf16.mxu0 %v1221
    %3323 = vmatpush1.bf16.msra.mxu0 %v1220
    %3324 = vmatprep.subr.bf16.mxu0 %v1225
    %3325 = vmatpush1.bf16.msra.mxu0 %v1224
    %3326 = vmatprep.mubr.bf16.mxu0 %v3252
    %3327 = vmatmul.mubr.bf16.gmra.mrb[0].mxu0 %v3251
    %v3328 = vpop.f32.mrb[0].mxu0
    %v3329 = vadd.f32 %v3288, %v3328
    %v3330 = vpop.f32.mrb[0].mxu0
    %v3331 = vadd.f32 %v3290, %v3330
    %v3332 = vpop.f32.mrb[0].mxu0
    %v3333 = vpop.f32.mrb[0].mxu0
    %3334 = vdwg.mxu0
    %3335 = vmatprep.subr.bf16.mxu0 %v1103
    %3336 = vmatpush1.bf16.msra.mxu0 %v1102
    %3337 = vmatprep.subr.bf16.mxu0 %v1107
    %3338 = vmatpush1.bf16.msra.mxu0 %v1106
    %3339 = vmatprep.subr.bf16.mxu0 %v1111
    %3340 = vmatpush1.bf16.msra.mxu0 %v1110
    %3341 = vmatprep.subr.bf16.mxu0 %v1115
    %3342 = vmatpush1.bf16.msra.mxu0 %v1114
    %3343 = vmatprep.subr.bf16.mxu0 %v1119
    %3344 = vmatpush1.bf16.msra.mxu0 %v1118
    %3345 = vmatprep.subr.bf16.mxu0 %v1123
    %3346 = vmatpush1.bf16.msra.mxu0 %v1122
    %3347 = vmatprep.subr.bf16.mxu0 %v1127
    %3348 = vmatpush1.bf16.msra.mxu0 %v1126
    %3349 = vmatprep.subr.bf16.mxu0 %v1131
    %3350 = vmatpush1.bf16.msra.mxu0 %v1130
    %3351 = vmatprep.subr.bf16.mxu0 %v1135
    %3352 = vmatpush1.bf16.msra.mxu0 %v1134
    %3353 = vmatprep.subr.bf16.mxu0 %v1139
    %3354 = vmatpush1.bf16.msra.mxu0 %v1138
    %3355 = vmatprep.subr.bf16.mxu0 %v1143
    %3356 = vmatpush1.bf16.msra.mxu0 %v1142
    %3357 = vmatprep.subr.bf16.mxu0 %v1147
    %3358 = vmatpush1.bf16.msra.mxu0 %v1146
    %3359 = vmatprep.subr.bf16.mxu0 %v1151
    %3360 = vmatpush1.bf16.msra.mxu0 %v1150
    %3361 = vmatprep.subr.bf16.mxu0 %v1155
    %3362 = vmatpush1.bf16.msra.mxu0 %v1154
    %3363 = vmatprep.subr.bf16.mxu0 %v1159
    %3364 = vmatpush1.bf16.msra.mxu0 %v1158
    %3365 = vmatprep.subr.bf16.mxu0 %v1163
    %3366 = vmatpush1.bf16.msra.mxu0 %v1162
    %3367 = vmatprep.mubr.bf16.mxu0 %v3250
    %3368 = vmatmul.mubr.bf16.gmra.mrb[0].mxu0 %v3249
    %v3369 = vpop.f32.mrb[0].mxu0
    %v3370 = vadd.f32 0.0, %v3369
    %v3371 = vpop.f32.mrb[0].mxu0
    %v3372 = vadd.f32 0.0, %v3371
    %v3373 = vpop.f32.mrb[0].mxu0
    %v3374 = vpop.f32.mrb[0].mxu0
    %3375 = vdwg.mxu0
    %3376 = vmatprep.subr.bf16.mxu0 %v1167
    %3377 = vmatpush1.bf16.msra.mxu0 %v1166
    %3378 = vmatprep.subr.bf16.mxu0 %v1171
    %3379 = vmatpush1.bf16.msra.mxu0 %v1170
    %3380 = vmatprep.subr.bf16.mxu0 %v1175
    %3381 = vmatpush1.bf16.msra.mxu0 %v1174
    %3382 = vmatprep.subr.bf16.mxu0 %v1179
    %3383 = vmatpush1.bf16.msra.mxu0 %v1178
    %3384 = vmatprep.subr.bf16.mxu0 %v1183
    %3385 = vmatpush1.bf16.msra.mxu0 %v1182
    %3386 = vmatprep.subr.bf16.mxu0 %v1187
    %3387 = vmatpush1.bf16.msra.mxu0 %v1186
    %3388 = vmatprep.subr.bf16.mxu0 %v1191
    %3389 = vmatpush1.bf16.msra.mxu0 %v1190
    %3390 = vmatprep.subr.bf16.mxu0 %v1195
    %3391 = vmatpush1.bf16.msra.mxu0 %v1194
    %3392 = vmatprep.subr.bf16.mxu0 %v1199
    %3393 = vmatpush1.bf16.msra.mxu0 %v1198
    %3394 = vmatprep.subr.bf16.mxu0 %v1203
    %3395 = vmatpush1.bf16.msra.mxu0 %v1202
    %3396 = vmatprep.subr.bf16.mxu0 %v1207
    %3397 = vmatpush1.bf16.msra.mxu0 %v1206
    %3398 = vmatprep.subr.bf16.mxu0 %v1211
    %3399 = vmatpush1.bf16.msra.mxu0 %v1210
    %3400 = vmatprep.subr.bf16.mxu0 %v1215
    %3401 = vmatpush1.bf16.msra.mxu0 %v1214
    %3402 = vmatprep.subr.bf16.mxu0 %v1219
    %3403 = vmatpush1.bf16.msra.mxu0 %v1218
    %3404 = vmatprep.subr.bf16.mxu0 %v1223
    %3405 = vmatpush1.bf16.msra.mxu0 %v1222
    %3406 = vmatprep.subr.bf16.mxu0 %v1227
    %3407 = vmatpush1.bf16.msra.mxu0 %v1226
    %3408 = vmatprep.mubr.bf16.mxu0 %v3252
    %3409 = vmatmul.mubr.bf16.gmra.mrb[0].mxu0 %v3251
    %v3410 = vpop.f32.mrb[0].mxu0
    %v3411 = vadd.f32 %v3370, %v3410
    %v3412 = vpop.f32.mrb[0].mxu0
    %v3413 = vadd.f32 %v3372, %v3412
    %v3414 = vpop.f32.mrb[0].mxu0
    %v3415 = vpop.f32.mrb[0].mxu0
    %3416 = vdwg.mxu0
    %3417 = vmatprep.subr.bf16.mxu0 %v1953
    %3418 = vmatpush1.bf16.msra.mxu0 %v1952
    %3419 = vmatprep.subr.bf16.mxu0 %v1957
    %3420 = vmatpush1.bf16.msra.mxu0 %v1956
    %3421 = vmatprep.subr.bf16.mxu0 %v1961
    %3422 = vmatpush1.bf16.msra.mxu0 %v1960
    %3423 = vmatprep.subr.bf16.mxu0 %v1965
    %3424 = vmatpush1.bf16.msra.mxu0 %v1964
    %3425 = vmatprep.subr.bf16.mxu0 %v1969
    %3426 = vmatpush1.bf16.msra.mxu0 %v1968
    %3427 = vmatprep.subr.bf16.mxu0 %v1973
    %3428 = vmatpush1.bf16.msra.mxu0 %v1972
    %3429 = vmatprep.subr.bf16.mxu0 %v1977
    %3430 = vmatpush1.bf16.msra.mxu0 %v1976
    %3431 = vmatprep.subr.bf16.mxu0 %v1981
    %3432 = vmatpush1.bf16.msra.mxu0 %v1980
    %3433 = vmatprep.subr.bf16.mxu0 %v1985
    %3434 = vmatpush1.bf16.msra.mxu0 %v1984
    %3435 = vmatprep.subr.bf16.mxu0 %v1989
    %3436 = vmatpush1.bf16.msra.mxu0 %v1988
    %3437 = vmatprep.subr.bf16.mxu0 %v1993
    %3438 = vmatpush1.bf16.msra.mxu0 %v1992
    %3439 = vmatprep.subr.bf16.mxu0 %v1997
    %3440 = vmatpush1.bf16.msra.mxu0 %v1996
    %3441 = vmatprep.subr.bf16.mxu0 %v2001
    %3442 = vmatpush1.bf16.msra.mxu0 %v2000
    %3443 = vmatprep.subr.bf16.mxu0 %v2005
    %3444 = vmatpush1.bf16.msra.mxu0 %v2004
    %3445 = vmatprep.subr.bf16.mxu0 %v2009
    %3446 = vmatpush1.bf16.msra.mxu0 %v2008
    %3447 = vmatprep.subr.bf16.mxu0 %v2013
    %3448 = vmatpush1.bf16.msra.mxu0 %v2012
    %3449 = vmatprep.mubr.bf16.mxu0 %v3246
    %3450 = vmatmul.mubr.bf16.gmra.mrb[0].mxu0 %v3245
    %v3451 = vpop.f32.mrb[0].mxu0
    %v3452 = vadd.f32 %v3329, %v3451
    %v3453 = vpop.f32.mrb[0].mxu0
    %v3454 = vadd.f32 %v3331, %v3453
    %v3455 = vpop.f32.mrb[0].mxu0
    %v3456 = vpop.f32.mrb[0].mxu0
    %3457 = vdwg.mxu0
    %3458 = vmatprep.subr.bf16.mxu0 %v2017
    %3459 = vmatpush1.bf16.msra.mxu0 %v2016
    %3460 = vmatprep.subr.bf16.mxu0 %v2021
    %3461 = vmatpush1.bf16.msra.mxu0 %v2020
    %3462 = vmatprep.subr.bf16.mxu0 %v2025
    %3463 = vmatpush1.bf16.msra.mxu0 %v2024
    %3464 = vmatprep.subr.bf16.mxu0 %v2029
    %3465 = vmatpush1.bf16.msra.mxu0 %v2028
    %3466 = vmatprep.subr.bf16.mxu0 %v2033
    %3467 = vmatpush1.bf16.msra.mxu0 %v2032
    %3468 = vmatprep.subr.bf16.mxu0 %v2037
    %3469 = vmatpush1.bf16.msra.mxu0 %v2036
    %3470 = vmatprep.subr.bf16.mxu0 %v2041
    %3471 = vmatpush1.bf16.msra.mxu0 %v2040
    %3472 = vmatprep.subr.bf16.mxu0 %v2045
    %3473 = vmatpush1.bf16.msra.mxu0 %v2044
    %3474 = vmatprep.subr.bf16.mxu0 %v2049
    %3475 = vmatpush1.bf16.msra.mxu0 %v2048
    %3476 = vmatprep.subr.bf16.mxu0 %v2053
    %3477 = vmatpush1.bf16.msra.mxu0 %v2052
    %3478 = vmatprep.subr.bf16.mxu0 %v2057
    %3479 = vmatpush1.bf16.msra.mxu0 %v2056
    %3480 = vmatprep.subr.bf16.mxu0 %v2061
    %3481 = vmatpush1.bf16.msra.mxu0 %v2060
    %3482 = vmatprep.subr.bf16.mxu0 %v2065
    %3483 = vmatpush1.bf16.msra.mxu0 %v2064
    %3484 = vmatprep.subr.bf16.mxu0 %v2069
    %3485 = vmatpush1.bf16.msra.mxu0 %v2068
    %3486 = vmatprep.subr.bf16.mxu0 %v2073
    %3487 = vmatpush1.bf16.msra.mxu0 %v2072
    %3488 = vmatprep.subr.bf16.mxu0 %v2077
    %3489 = vmatpush1.bf16.msra.mxu0 %v2076
    %3490 = vmatprep.mubr.bf16.mxu0 %v3248
    %3491 = vmatmul.mubr.bf16.gmra.mrb[0].mxu0 %v3247
    %v3492 = vpop.f32.mrb[0].mxu0
    %v3493 = vadd.f32 %v3452, %v3492
    %v3494 = vpop.f32.mrb[0].mxu0
    %v3495 = vadd.f32 %v3454, %v3494
    %v3496 = vpop.f32.mrb[0].mxu0
    %v3497 = vpop.f32.mrb[0].mxu0
    %3498 = vdwg.mxu0
    %3499 = vmatprep.subr.bf16.mxu0 %v1955
    %3500 = vmatpush1.bf16.msra.mxu0 %v1954
    %3501 = vmatprep.subr.bf16.mxu0 %v1959
    %3502 = vmatpush1.bf16.msra.mxu0 %v1958
    %3503 = vmatprep.subr.bf16.mxu0 %v1963
    %3504 = vmatpush1.bf16.msra.mxu0 %v1962
    %3505 = vmatprep.subr.bf16.mxu0 %v1967
    %3506 = vmatpush1.bf16.msra.mxu0 %v1966
    %3507 = vmatprep.subr.bf16.mxu0 %v1971
    %3508 = vmatpush1.bf16.msra.mxu0 %v1970
    %3509 = vmatprep.subr.bf16.mxu0 %v1975
    %3510 = vmatpush1.bf16.msra.mxu0 %v1974
    %3511 = vmatprep.subr.bf16.mxu0 %v1979
    %3512 = vmatpush1.bf16.msra.mxu0 %v1978
    %3513 = vmatprep.subr.bf16.mxu0 %v1983
    %3514 = vmatpush1.bf16.msra.mxu0 %v1982
    %3515 = vmatprep.subr.bf16.mxu0 %v1987
    %3516 = vmatpush1.bf16.msra.mxu0 %v1986
    %3517 = vmatprep.subr.bf16.mxu0 %v1991
    %3518 = vmatpush1.bf16.msra.mxu0 %v1990
    %3519 = vmatprep.subr.bf16.mxu0 %v1995
    %3520 = vmatpush1.bf16.msra.mxu0 %v1994
    %3521 = vmatprep.subr.bf16.mxu0 %v1999
    %3522 = vmatpush1.bf16.msra.mxu0 %v1998
    %3523 = vmatprep.subr.bf16.mxu0 %v2003
    %3524 = vmatpush1.bf16.msra.mxu0 %v2002
    %3525 = vmatprep.subr.bf16.mxu0 %v2007
    %3526 = vmatpush1.bf16.msra.mxu0 %v2006
    %3527 = vmatprep.subr.bf16.mxu0 %v2011
    %3528 = vmatpush1.bf16.msra.mxu0 %v2010
    %3529 = vmatprep.subr.bf16.mxu0 %v2015
    %3530 = vmatpush1.bf16.msra.mxu0 %v2014
    %3531 = vmatprep.mubr.bf16.mxu0 %v3246
    %3532 = vmatmul.mubr.bf16.gmra.mrb[0].mxu0 %v3245
    %v3533 = vpop.f32.mrb[0].mxu0
    %v3534 = vadd.f32 %v3411, %v3533
    %v3535 = vpop.f32.mrb[0].mxu0
    %v3536 = vadd.f32 %v3413, %v3535
    %v3537 = vpop.f32.mrb[0].mxu0
    %v3538 = vpop.f32.mrb[0].mxu0
    %3539 = vdwg.mxu0
    %3540 = vmatprep.subr.bf16.mxu0 %v2019
    %3541 = vmatpush1.bf16.msra.mxu0 %v2018
    %3542 = vmatprep.subr.bf16.mxu0 %v2023
    %3543 = vmatpush1.bf16.msra.mxu0 %v2022
    %3544 = vmatprep.subr.bf16.mxu0 %v2027
    %3545 = vmatpush1.bf16.msra.mxu0 %v2026
    %3546 = vmatprep.subr.bf16.mxu0 %v2031
    %3547 = vmatpush1.bf16.msra.mxu0 %v2030
    %3548 = vmatprep.subr.bf16.mxu0 %v2035
    %3549 = vmatpush1.bf16.msra.mxu0 %v2034
    %3550 = vmatprep.subr.bf16.mxu0 %v2039
    %3551 = vmatpush1.bf16.msra.mxu0 %v2038
    %3552 = vmatprep.subr.bf16.mxu0 %v2043
    %3553 = vmatpush1.bf16.msra.mxu0 %v2042
    %3554 = vmatprep.subr.bf16.mxu0 %v2047
    %3555 = vmatpush1.bf16.msra.mxu0 %v2046
    %3556 = vmatprep.subr.bf16.mxu0 %v2051
    %3557 = vmatpush1.bf16.msra.mxu0 %v2050
    %3558 = vmatprep.subr.bf16.mxu0 %v2055
    %3559 = vmatpush1.bf16.msra.mxu0 %v2054
    %3560 = vmatprep.subr.bf16.mxu0 %v2059
    %3561 = vmatpush1.bf16.msra.mxu0 %v2058
    %3562 = vmatprep.subr.bf16.mxu0 %v2063
    %3563 = vmatpush1.bf16.msra.mxu0 %v2062
    %3564 = vmatprep.subr.bf16.mxu0 %v2067
    %3565 = vmatpush1.bf16.msra.mxu0 %v2066
    %3566 = vmatprep.subr.bf16.mxu0 %v2071
    %3567 = vmatpush1.bf16.msra.mxu0 %v2070
    %3568 = vmatprep.subr.bf16.mxu0 %v2075
    %3569 = vmatpush1.bf16.msra.mxu0 %v2074
    %3570 = vmatprep.subr.bf16.mxu0 %v2079
    %3571 = vmatpush1.bf16.msra.mxu0 %v2078
    %3572 = vmatprep.mubr.bf16.mxu0 %v3248
    %3573 = vmatmul.mubr.bf16.gmra.mrb[0].mxu0 %v3247
    %v3574 = vpop.f32.mrb[0].mxu0
    %v3575 = vadd.f32 %v3534, %v3574
    %v3576 = vpop.f32.mrb[0].mxu0
    %v3577 = vadd.f32 %v3536, %v3576
    %v3578 = vpop.f32.mrb[0].mxu0
    %v3579 = vpop.f32.mrb[0].mxu0
    %3580 = vdwg.mxu0
    %v3581 = vadd.f32 %v3493, %v2424
    %v3582 = vadd.f32 %v3495, %v2428
    %v3583 = vadd.f32 %v3575, %v2432
    %v3584 = vadd.f32 %v3577, %v2436
    %v3585 = vtanh.pop %v3581
    %v3586 = vtanh.pop %v3582
    %v3587 = vtanh.pop %v3583
    %v3588 = vtanh.pop %v3584
    %3589 = vst [vmem:[#allocation2 + $0x1c0] sm:$0xff] %v3585
    %3590 = vst [vmem:[#allocation2 + $0x1c8] sm:$0xff] %v3586
    %3591 = vst [vmem:[#allocation2 + $0x1d0] sm:$0xff] %v3587
    %3592 = vst [vmem:[#allocation2 + $0x1d8] sm:$0xff] %v3588
    %v3593 = vld [vmem:[#allocation2] sm:$0xff]
    %v3594 = vld [vmem:[#allocation2 + $0x8] sm:$0xff]
    %v3595 = vld [vmem:[#allocation2 + $0x10] sm:$0xff]
    %v3596 = vld [vmem:[#allocation2 + $0x18] sm:$0xff]
    %v3597 = vld [vmem:[#allocation2 + $0x20] sm:$0xff]
    %v3598 = vld [vmem:[#allocation2 + $0x28] sm:$0xff]
    %v3599 = vld [vmem:[#allocation2 + $0x30] sm:$0xff]
    %v3600 = vld [vmem:[#allocation2 + $0x38] sm:$0xff]
    %v3601 = vld [vmem:[#allocation2 + $0x40] sm:$0xff]
    %v3602 = vld [vmem:[#allocation2 + $0x48] sm:$0xff]
    %v3603 = vld [vmem:[#allocation2 + $0x50] sm:$0xff]
    %v3604 = vld [vmem:[#allocation2 + $0x58] sm:$0xff]
    %v3605 = vld [vmem:[#allocation2 + $0x60] sm:$0xff]
    %v3606 = vld [vmem:[#allocation2 + $0x68] sm:$0xff]
    %v3607 = vld [vmem:[#allocation2 + $0x70] sm:$0xff]
    %v3608 = vld [vmem:[#allocation2 + $0x78] sm:$0xff]
    %v3609 = vld [vmem:[#allocation2 + $0x80] sm:$0xff]
    %v3610 = vld [vmem:[#allocation2 + $0x88] sm:$0xff]
    %v3611 = vld [vmem:[#allocation2 + $0x90] sm:$0xff]
    %v3612 = vld [vmem:[#allocation2 + $0x98] sm:$0xff]
    %v3613 = vld [vmem:[#allocation2 + $0xa0] sm:$0xff]
    %v3614 = vld [vmem:[#allocation2 + $0xa8] sm:$0xff]
    %v3615 = vld [vmem:[#allocation2 + $0xb0] sm:$0xff]
    %v3616 = vld [vmem:[#allocation2 + $0xb8] sm:$0xff]
    %v3617 = vld [vmem:[#allocation2 + $0xc0] sm:$0xff]
    %v3618 = vld [vmem:[#allocation2 + $0xc8] sm:$0xff]
    %v3619 = vld [vmem:[#allocation2 + $0xd0] sm:$0xff]
    %v3620 = vld [vmem:[#allocation2 + $0xd8] sm:$0xff]
    %v3621 = vld [vmem:[#allocation2 + $0xe0] sm:$0xff]
    %v3622 = vld [vmem:[#allocation2 + $0xe8] sm:$0xff]
    %v3623 = vld [vmem:[#allocation2 + $0xf0] sm:$0xff]
    %v3624 = vld [vmem:[#allocation2 + $0xf8] sm:$0xff]
    %v3625 = vld [vmem:[#allocation2 + $0x100] sm:$0xff]
    %v3626 = vld [vmem:[#allocation2 + $0x108] sm:$0xff]
    %v3627 = vld [vmem:[#allocation2 + $0x110] sm:$0xff]
    %v3628 = vld [vmem:[#allocation2 + $0x118] sm:$0xff]
    %v3629 = vld [vmem:[#allocation2 + $0x120] sm:$0xff]
    %v3630 = vld [vmem:[#allocation2 + $0x128] sm:$0xff]
    %v3631 = vld [vmem:[#allocation2 + $0x130] sm:$0xff]
    %v3632 = vld [vmem:[#allocation2 + $0x138] sm:$0xff]
    %v3633 = vld [vmem:[#allocation2 + $0x140] sm:$0xff]
    %v3634 = vld [vmem:[#allocation2 + $0x148] sm:$0xff]
    %v3635 = vld [vmem:[#allocation2 + $0x150] sm:$0xff]
    %v3636 = vld [vmem:[#allocation2 + $0x158] sm:$0xff]
    %v3637 = vld [vmem:[#allocation2 + $0x160] sm:$0xff]
    %v3638 = vld [vmem:[#allocation2 + $0x168] sm:$0xff]
    %v3639 = vld [vmem:[#allocation2 + $0x170] sm:$0xff]
    %v3640 = vld [vmem:[#allocation2 + $0x178] sm:$0xff]
    %v3641 = vld [vmem:[#allocation2 + $0x180] sm:$0xff]
    %v3642 = vld [vmem:[#allocation2 + $0x188] sm:$0xff]
    %v3643 = vld [vmem:[#allocation2 + $0x190] sm:$0xff]
    %v3644 = vld [vmem:[#allocation2 + $0x198] sm:$0xff]
    %v3645 = vld [vmem:[#allocation2 + $0x1a0] sm:$0xff]
    %v3646 = vld [vmem:[#allocation2 + $0x1a8] sm:$0xff]
    %v3647 = vld [vmem:[#allocation2 + $0x1b0] sm:$0xff]
    %v3648 = vld [vmem:[#allocation2 + $0x1b8] sm:$0xff]
    %v3649 = vld [vmem:[#allocation2 + $0x1c0] sm:$0xff]
    %v3650 = vld [vmem:[#allocation2 + $0x1c8] sm:$0xff]
    %v3651 = vld [vmem:[#allocation2 + $0x1d0] sm:$0xff]
    %v3652 = vld [vmem:[#allocation2 + $0x1d8] sm:$0xff]
    %v3653 = vpack.c.bf16 %v3597, %v3593
    %v3654 = vpack.c.bf16 %v3598, %v3594
    %v3655 = vpack.c.bf16 %v3599, %v3595
    %v3656 = vpack.c.bf16 %v3600, %v3596
    %v3657 = vpack.c.bf16 %v3605, %v3601
    %v3658 = vpack.c.bf16 %v3606, %v3602
    %v3659 = vpack.c.bf16 %v3607, %v3603
    %v3660 = vpack.c.bf16 %v3608, %v3604
    %v3661 = vpack.c.bf16 %v3613, %v3609
    %v3662 = vpack.c.bf16 %v3614, %v3610
    %v3663 = vpack.c.bf16 %v3615, %v3611
    %v3664 = vpack.c.bf16 %v3616, %v3612
    %v3665 = vpack.c.bf16 %v3621, %v3617
    %v3666 = vpack.c.bf16 %v3622, %v3618
    %v3667 = vpack.c.bf16 %v3623, %v3619
    %v3668 = vpack.c.bf16 %v3624, %v3620
    %v3669 = vpack.c.bf16 %v3629, %v3625
    %v3670 = vpack.c.bf16 %v3630, %v3626
    %v3671 = vpack.c.bf16 %v3631, %v3627
    %v3672 = vpack.c.bf16 %v3632, %v3628
    %v3673 = vpack.c.bf16 %v3637, %v3633
    %v3674 = vpack.c.bf16 %v3638, %v3634
    %v3675 = vpack.c.bf16 %v3639, %v3635
    %v3676 = vpack.c.bf16 %v3640, %v3636
    %v3677 = vpack.c.bf16 %v3645, %v3641
    %v3678 = vpack.c.bf16 %v3646, %v3642
    %v3679 = vpack.c.bf16 %v3647, %v3643
    %v3680 = vpack.c.bf16 %v3648, %v3644
    %v3681 = vpack.c.bf16 %v3649, %v3649
    %v3682 = vpack.c.bf16 %v3650, %v3650
    %v3683 = vpack.c.bf16 %v3651, %v3651
    %v3684 = vpack.c.bf16 %v3652, %v3652
    %v3685 = vld [vmem:[#allocation14] sm:$0xf]
    %v3686 = vld [vmem:[#allocation14 + $0x4] sm:$0xf]
    %v3689 = vunpack.c.l.b16 %v3685
    %v3690 = vunpack.c.l.b16 %v3686
    %v3691 = vpack.c.b16 %v3690, %v3689
    %vm3692 = vcmask 982016
    %v3694 = vsel %vm3692, %v3691, 0
    %vm3696 = vcmask 1043456
    %v3698 = vsel %vm3696, %v3681, 0
    %v3701 = vsel %vm3696, %v3682, 0
    %v3704 = vsel %vm3696, %v3683, 0
    %v3707 = vsel %vm3696, %v3684, 0
    %3709 = vmatprep.subr.bf16.mxu0 %v3654
    %3710 = vmatpush1.bf16.msra.mxu0 %v3653
    %3711 = vmatprep.subr.bf16.mxu0 %v3658
    %3712 = vmatpush1.bf16.msra.mxu0 %v3657
    %3713 = vmatprep.subr.bf16.mxu0 %v3662
    %3714 = vmatpush1.bf16.msra.mxu0 %v3661
    %3715 = vmatprep.subr.bf16.mxu0 %v3666
    %3716 = vmatpush1.bf16.msra.mxu0 %v3665
    %3717 = vmatprep.subr.bf16.mxu0 %v3670
    %3718 = vmatpush1.bf16.msra.mxu0 %v3669
    %3719 = vmatprep.subr.bf16.mxu0 %v3674
    %3720 = vmatpush1.bf16.msra.mxu0 %v3673
    %3721 = vmatprep.subr.bf16.mxu0 %v3678
    %3722 = vmatpush1.bf16.msra.mxu0 %v3677
    %3723 = vmatprep.subr.bf16.mxu0 %v3701
    %3724 = vmatpush1.bf16.msra.mxu0 %v3698
    %3725 = vmatprep.subr.bf16.mxu0 0
    %3726 = vmatpush1.bf16.msra.mxu0 0
    %3727 = vmatprep.subr.bf16.mxu0 0
    %3728 = vmatpush1.bf16.msra.mxu0 0
    %3729 = vmatprep.subr.bf16.mxu0 0
    %3730 = vmatpush1.bf16.msra.mxu0 0
    %3731 = vmatprep.subr.bf16.mxu0 0
    %3732 = vmatpush1.bf16.msra.mxu0 0
    %3733 = vmatprep.subr.bf16.mxu0 0
    %3734 = vmatpush1.bf16.msra.mxu0 0
    %3735 = vmatprep.subr.bf16.mxu0 0
    %3736 = vmatpush1.bf16.msra.mxu0 0
    %3737 = vmatprep.subr.bf16.mxu0 0
    %3738 = vmatpush1.bf16.msra.mxu0 0
    %3739 = vmatprep.subr.bf16.mxu0 0
    %3740 = vmatpush1.bf16.msra.mxu0 0
    %3741 = vmatprep.mubr.bf16.mxu0 0
    %3742 = vmatmul.mubr.bf16.gmra.mrb[0].mxu0 %v3694
    %v3743 = vpop.f32.mrb[0].mxu0
    %v3744 = vadd.f32 0.0, %v3743
    %v3745 = vpop.f32.mrb[0].mxu0
    %v3746 = vadd.f32 0.0, %v3745
    %v3747 = vpop.f32.mrb[0].mxu0
    %v3748 = vadd.f32 0.0, %v3747
    %v3749 = vpop.f32.mrb[0].mxu0
    %v3750 = vadd.f32 0.0, %v3749
    %3751 = vdwg.mxu0
    %3752 = vmatprep.subr.bf16.mxu0 %v3656
    %3753 = vmatpush1.bf16.msra.mxu0 %v3655
    %3754 = vmatprep.subr.bf16.mxu0 %v3660
    %3755 = vmatpush1.bf16.msra.mxu0 %v3659
    %3756 = vmatprep.subr.bf16.mxu0 %v3664
    %3757 = vmatpush1.bf16.msra.mxu0 %v3663
    %3758 = vmatprep.subr.bf16.mxu0 %v3668
    %3759 = vmatpush1.bf16.msra.mxu0 %v3667
    %3760 = vmatprep.subr.bf16.mxu0 %v3672
    %3761 = vmatpush1.bf16.msra.mxu0 %v3671
    %3762 = vmatprep.subr.bf16.mxu0 %v3676
    %3763 = vmatpush1.bf16.msra.mxu0 %v3675
    %3764 = vmatprep.subr.bf16.mxu0 %v3680
    %3765 = vmatpush1.bf16.msra.mxu0 %v3679
    %3766 = vmatprep.subr.bf16.mxu0 %v3707
    %3767 = vmatpush1.bf16.msra.mxu0 %v3704
    %3768 = vmatprep.subr.bf16.mxu0 0
    %3769 = vmatpush1.bf16.msra.mxu0 0
    %3770 = vmatprep.subr.bf16.mxu0 0
    %3771 = vmatpush1.bf16.msra.mxu0 0
    %3772 = vmatprep.subr.bf16.mxu0 0
    %3773 = vmatpush1.bf16.msra.mxu0 0
    %3774 = vmatprep.subr.bf16.mxu0 0
    %3775 = vmatpush1.bf16.msra.mxu0 0
    %3776 = vmatprep.subr.bf16.mxu0 0
    %3777 = vmatpush1.bf16.msra.mxu0 0
    %3778 = vmatprep.subr.bf16.mxu0 0
    %3779 = vmatpush1.bf16.msra.mxu0 0
    %3780 = vmatprep.subr.bf16.mxu0 0
    %3781 = vmatpush1.bf16.msra.mxu0 0
    %3782 = vmatprep.subr.bf16.mxu0 0
    %3783 = vmatpush1.bf16.msra.mxu0 0
    %3784 = vmatprep.mubr.bf16.mxu0 0
    %3785 = vmatmul.mubr.bf16.gmra.mrb[0].mxu0 %v3694
    %v3786 = vpop.f32.mrb[0].mxu0
    %v3787 = vadd.f32 0.0, %v3786
    %v3788 = vpop.f32.mrb[0].mxu0
    %v3789 = vadd.f32 0.0, %v3788
    %v3790 = vpop.f32.mrb[0].mxu0
    %v3791 = vadd.f32 0.0, %v3790
    %v3792 = vpop.f32.mrb[0].mxu0
    %v3793 = vadd.f32 0.0, %v3792
    %3794 = vdwg.mxu0
    %v3795 = vpack.c.bf16 %v3744, %v3744
    %v3796 = vpack.c.bf16 %v3746, %v3746
    %v3797 = vpack.c.bf16 %v3787, %v3787
    %v3798 = vpack.c.bf16 %v3789, %v3789
    %v3799 = vpack.c.bf16 %v3748, %v3748
    %v3800 = vpack.c.bf16 %v3750, %v3750
    %v3801 = vpack.c.bf16 %v3791, %v3791
    %v3802 = vpack.c.bf16 %v3793, %v3793
    %3803 = vmatprep.subr.bf16.mxu0 %v1101
    %3804 = vmatpush1.bf16.msra.mxu0 %v1100
    %3805 = vmatprep.subr.bf16.mxu0 %v1105
    %3806 = vmatpush1.bf16.msra.mxu0 %v1104
    %3807 = vmatprep.subr.bf16.mxu0 %v1109
    %3808 = vmatpush1.bf16.msra.mxu0 %v1108
    %3809 = vmatprep.subr.bf16.mxu0 %v1113
    %3810 = vmatpush1.bf16.msra.mxu0 %v1112
    %3811 = vmatprep.subr.bf16.mxu0 %v1117
    %3812 = vmatpush1.bf16.msra.mxu0 %v1116
    %3813 = vmatprep.subr.bf16.mxu0 %v1121
    %3814 = vmatpush1.bf16.msra.mxu0 %v1120
    %3815 = vmatprep.subr.bf16.mxu0 %v1125
    %3816 = vmatpush1.bf16.msra.mxu0 %v1124
    %3817 = vmatprep.subr.bf16.mxu0 %v1129
    %3818 = vmatpush1.bf16.msra.mxu0 %v1128
    %3819 = vmatprep.subr.bf16.mxu0 %v1133
    %3820 = vmatpush1.bf16.msra.mxu0 %v1132
    %3821 = vmatprep.subr.bf16.mxu0 %v1137
    %3822 = vmatpush1.bf16.msra.mxu0 %v1136
    %3823 = vmatprep.subr.bf16.mxu0 %v1141
    %3824 = vmatpush1.bf16.msra.mxu0 %v1140
    %3825 = vmatprep.subr.bf16.mxu0 %v1145
    %3826 = vmatpush1.bf16.msra.mxu0 %v1144
    %3827 = vmatprep.subr.bf16.mxu0 %v1149
    %3828 = vmatpush1.bf16.msra.mxu0 %v1148
    %3829 = vmatprep.subr.bf16.mxu0 %v1153
    %3830 = vmatpush1.bf16.msra.mxu0 %v1152
    %3831 = vmatprep.subr.bf16.mxu0 %v1157
    %3832 = vmatpush1.bf16.msra.mxu0 %v1156
    %3833 = vmatprep.subr.bf16.mxu0 %v1161
    %3834 = vmatpush1.bf16.msra.mxu0 %v1160
    %3835 = vmatprep.mubr.bf16.mxu0 %v3800
    %3836 = vmatmul.mubr.bf16.gmra.mrb[0].mxu0 %v3799
    %v3837 = vpop.f32.mrb[0].mxu0
    %v3838 = vadd.f32 0.0, %v3837
    %v3839 = vpop.f32.mrb[0].mxu0
    %v3840 = vadd.f32 0.0, %v3839
    %v3841 = vpop.f32.mrb[0].mxu0
    %v3842 = vpop.f32.mrb[0].mxu0
    %3843 = vdwg.mxu0
    %3844 = vmatprep.subr.bf16.mxu0 %v1165
    %3845 = vmatpush1.bf16.msra.mxu0 %v1164
    %3846 = vmatprep.subr.bf16.mxu0 %v1169
    %3847 = vmatpush1.bf16.msra.mxu0 %v1168
    %3848 = vmatprep.subr.bf16.mxu0 %v1173
    %3849 = vmatpush1.bf16.msra.mxu0 %v1172
    %3850 = vmatprep.subr.bf16.mxu0 %v1177
    %3851 = vmatpush1.bf16.msra.mxu0 %v1176
    %3852 = vmatprep.subr.bf16.mxu0 %v1181
    %3853 = vmatpush1.bf16.msra.mxu0 %v1180
    %3854 = vmatprep.subr.bf16.mxu0 %v1185
    %3855 = vmatpush1.bf16.msra.mxu0 %v1184
    %3856 = vmatprep.subr.bf16.mxu0 %v1189
    %3857 = vmatpush1.bf16.msra.mxu0 %v1188
    %3858 = vmatprep.subr.bf16.mxu0 %v1193
    %3859 = vmatpush1.bf16.msra.mxu0 %v1192
    %3860 = vmatprep.subr.bf16.mxu0 %v1197
    %3861 = vmatpush1.bf16.msra.mxu0 %v1196
    %3862 = vmatprep.subr.bf16.mxu0 %v1201
    %3863 = vmatpush1.bf16.msra.mxu0 %v1200
    %3864 = vmatprep.subr.bf16.mxu0 %v1205
    %3865 = vmatpush1.bf16.msra.mxu0 %v1204
    %3866 = vmatprep.subr.bf16.mxu0 %v1209
    %3867 = vmatpush1.bf16.msra.mxu0 %v1208
    %3868 = vmatprep.subr.bf16.mxu0 %v1213
    %3869 = vmatpush1.bf16.msra.mxu0 %v1212
    %3870 = vmatprep.subr.bf16.mxu0 %v1217
    %3871 = vmatpush1.bf16.msra.mxu0 %v1216
    %3872 = vmatprep.subr.bf16.mxu0 %v1221
    %3873 = vmatpush1.bf16.msra.mxu0 %v1220
    %3874 = vmatprep.subr.bf16.mxu0 %v1225
    %3875 = vmatpush1.bf16.msra.mxu0 %v1224
    %3876 = vmatprep.mubr.bf16.mxu0 %v3802
    %3877 = vmatmul.mubr.bf16.gmra.mrb[0].mxu0 %v3801
    %v3878 = vpop.f32.mrb[0].mxu0
    %v3879 = vadd.f32 %v3838, %v3878
    %v3880 = vpop.f32.mrb[0].mxu0
    %v3881 = vadd.f32 %v3840, %v3880
    %v3882 = vpop.f32.mrb[0].mxu0
    %v3883 = vpop.f32.mrb[0].mxu0
    %3884 = vdwg.mxu0
    %3885 = vmatprep.subr.bf16.mxu0 %v1103
    %3886 = vmatpush1.bf16.msra.mxu0 %v1102
    %3887 = vmatprep.subr.bf16.mxu0 %v1107
    %3888 = vmatpush1.bf16.msra.mxu0 %v1106
    %3889 = vmatprep.subr.bf16.mxu0 %v1111
    %3890 = vmatpush1.bf16.msra.mxu0 %v1110
    %3891 = vmatprep.subr.bf16.mxu0 %v1115
    %3892 = vmatpush1.bf16.msra.mxu0 %v1114
    %3893 = vmatprep.subr.bf16.mxu0 %v1119
    %3894 = vmatpush1.bf16.msra.mxu0 %v1118
    %3895 = vmatprep.subr.bf16.mxu0 %v1123
    %3896 = vmatpush1.bf16.msra.mxu0 %v1122
    %3897 = vmatprep.subr.bf16.mxu0 %v1127
    %3898 = vmatpush1.bf16.msra.mxu0 %v1126
    %3899 = vmatprep.subr.bf16.mxu0 %v1131
    %3900 = vmatpush1.bf16.msra.mxu0 %v1130
    %3901 = vmatprep.subr.bf16.mxu0 %v1135
    %3902 = vmatpush1.bf16.msra.mxu0 %v1134
    %3903 = vmatprep.subr.bf16.mxu0 %v1139
    %3904 = vmatpush1.bf16.msra.mxu0 %v1138
    %3905 = vmatprep.subr.bf16.mxu0 %v1143
    %3906 = vmatpush1.bf16.msra.mxu0 %v1142
    %3907 = vmatprep.subr.bf16.mxu0 %v1147
    %3908 = vmatpush1.bf16.msra.mxu0 %v1146
    %3909 = vmatprep.subr.bf16.mxu0 %v1151
    %3910 = vmatpush1.bf16.msra.mxu0 %v1150
    %3911 = vmatprep.subr.bf16.mxu0 %v1155
    %3912 = vmatpush1.bf16.msra.mxu0 %v1154
    %3913 = vmatprep.subr.bf16.mxu0 %v1159
    %3914 = vmatpush1.bf16.msra.mxu0 %v1158
    %3915 = vmatprep.subr.bf16.mxu0 %v1163
    %3916 = vmatpush1.bf16.msra.mxu0 %v1162
    %3917 = vmatprep.mubr.bf16.mxu0 %v3800
    %3918 = vmatmul.mubr.bf16.gmra.mrb[0].mxu0 %v3799
    %v3919 = vpop.f32.mrb[0].mxu0
    %v3920 = vadd.f32 0.0, %v3919
    %v3921 = vpop.f32.mrb[0].mxu0
    %v3922 = vadd.f32 0.0, %v3921
    %v3923 = vpop.f32.mrb[0].mxu0
    %v3924 = vpop.f32.mrb[0].mxu0
    %3925 = vdwg.mxu0
    %3926 = vmatprep.subr.bf16.mxu0 %v1167
    %3927 = vmatpush1.bf16.msra.mxu0 %v1166
    %3928 = vmatprep.subr.bf16.mxu0 %v1171
    %3929 = vmatpush1.bf16.msra.mxu0 %v1170
    %3930 = vmatprep.subr.bf16.mxu0 %v1175
    %3931 = vmatpush1.bf16.msra.mxu0 %v1174
    %3932 = vmatprep.subr.bf16.mxu0 %v1179
    %3933 = vmatpush1.bf16.msra.mxu0 %v1178
    %3934 = vmatprep.subr.bf16.mxu0 %v1183
    %3935 = vmatpush1.bf16.msra.mxu0 %v1182
    %3936 = vmatprep.subr.bf16.mxu0 %v1187
    %3937 = vmatpush1.bf16.msra.mxu0 %v1186
    %3938 = vmatprep.subr.bf16.mxu0 %v1191
    %3939 = vmatpush1.bf16.msra.mxu0 %v1190
    %3940 = vmatprep.subr.bf16.mxu0 %v1195
    %3941 = vmatpush1.bf16.msra.mxu0 %v1194
    %3942 = vmatprep.subr.bf16.mxu0 %v1199
    %3943 = vmatpush1.bf16.msra.mxu0 %v1198
    %3944 = vmatprep.subr.bf16.mxu0 %v1203
    %3945 = vmatpush1.bf16.msra.mxu0 %v1202
    %3946 = vmatprep.subr.bf16.mxu0 %v1207
    %3947 = vmatpush1.bf16.msra.mxu0 %v1206
    %3948 = vmatprep.subr.bf16.mxu0 %v1211
    %3949 = vmatpush1.bf16.msra.mxu0 %v1210
    %3950 = vmatprep.subr.bf16.mxu0 %v1215
    %3951 = vmatpush1.bf16.msra.mxu0 %v1214
    %3952 = vmatprep.subr.bf16.mxu0 %v1219
    %3953 = vmatpush1.bf16.msra.mxu0 %v1218
    %3954 = vmatprep.subr.bf16.mxu0 %v1223
    %3955 = vmatpush1.bf16.msra.mxu0 %v1222
    %3956 = vmatprep.subr.bf16.mxu0 %v1227
    %3957 = vmatpush1.bf16.msra.mxu0 %v1226
    %3958 = vmatprep.mubr.bf16.mxu0 %v3802
    %3959 = vmatmul.mubr.bf16.gmra.mrb[0].mxu0 %v3801
    %v3960 = vpop.f32.mrb[0].mxu0
    %v3961 = vadd.f32 %v3920, %v3960
    %v3962 = vpop.f32.mrb[0].mxu0
    %v3963 = vadd.f32 %v3922, %v3962
    %v3964 = vpop.f32.mrb[0].mxu0
    %v3965 = vpop.f32.mrb[0].mxu0
    %3966 = vdwg.mxu0
    %3967 = vmatprep.subr.bf16.mxu0 %v1953
    %3968 = vmatpush1.bf16.msra.mxu0 %v1952
    %3969 = vmatprep.subr.bf16.mxu0 %v1957
    %3970 = vmatpush1.bf16.msra.mxu0 %v1956
    %3971 = vmatprep.subr.bf16.mxu0 %v1961
    %3972 = vmatpush1.bf16.msra.mxu0 %v1960
    %3973 = vmatprep.subr.bf16.mxu0 %v1965
    %3974 = vmatpush1.bf16.msra.mxu0 %v1964
    %3975 = vmatprep.subr.bf16.mxu0 %v1969
    %3976 = vmatpush1.bf16.msra.mxu0 %v1968
    %3977 = vmatprep.subr.bf16.mxu0 %v1973
    %3978 = vmatpush1.bf16.msra.mxu0 %v1972
    %3979 = vmatprep.subr.bf16.mxu0 %v1977
    %3980 = vmatpush1.bf16.msra.mxu0 %v1976
    %3981 = vmatprep.subr.bf16.mxu0 %v1981
    %3982 = vmatpush1.bf16.msra.mxu0 %v1980
    %3983 = vmatprep.subr.bf16.mxu0 %v1985
    %3984 = vmatpush1.bf16.msra.mxu0 %v1984
    %3985 = vmatprep.subr.bf16.mxu0 %v1989
    %3986 = vmatpush1.bf16.msra.mxu0 %v1988
    %3987 = vmatprep.subr.bf16.mxu0 %v1993
    %3988 = vmatpush1.bf16.msra.mxu0 %v1992
    %3989 = vmatprep.subr.bf16.mxu0 %v1997
    %3990 = vmatpush1.bf16.msra.mxu0 %v1996
    %3991 = vmatprep.subr.bf16.mxu0 %v2001
    %3992 = vmatpush1.bf16.msra.mxu0 %v2000
    %3993 = vmatprep.subr.bf16.mxu0 %v2005
    %3994 = vmatpush1.bf16.msra.mxu0 %v2004
    %3995 = vmatprep.subr.bf16.mxu0 %v2009
    %3996 = vmatpush1.bf16.msra.mxu0 %v2008
    %3997 = vmatprep.subr.bf16.mxu0 %v2013
    %3998 = vmatpush1.bf16.msra.mxu0 %v2012
    %3999 = vmatprep.mubr.bf16.mxu0 %v3796
    %4000 = vmatmul.mubr.bf16.gmra.mrb[0].mxu0 %v3795
    %v4001 = vpop.f32.mrb[0].mxu0
    %v4002 = vadd.f32 %v3879, %v4001
    %v4003 = vpop.f32.mrb[0].mxu0
    %v4004 = vadd.f32 %v3881, %v4003
    %v4005 = vpop.f32.mrb[0].mxu0
    %v4006 = vpop.f32.mrb[0].mxu0
    %4007 = vdwg.mxu0
    %4008 = vmatprep.subr.bf16.mxu0 %v2017
    %4009 = vmatpush1.bf16.msra.mxu0 %v2016
    %4010 = vmatprep.subr.bf16.mxu0 %v2021
    %4011 = vmatpush1.bf16.msra.mxu0 %v2020
    %4012 = vmatprep.subr.bf16.mxu0 %v2025
    %4013 = vmatpush1.bf16.msra.mxu0 %v2024
    %4014 = vmatprep.subr.bf16.mxu0 %v2029
    %4015 = vmatpush1.bf16.msra.mxu0 %v2028
    %4016 = vmatprep.subr.bf16.mxu0 %v2033
    %4017 = vmatpush1.bf16.msra.mxu0 %v2032
    %4018 = vmatprep.subr.bf16.mxu0 %v2037
    %4019 = vmatpush1.bf16.msra.mxu0 %v2036
    %4020 = vmatprep.subr.bf16.mxu0 %v2041
    %4021 = vmatpush1.bf16.msra.mxu0 %v2040
    %4022 = vmatprep.subr.bf16.mxu0 %v2045
    %4023 = vmatpush1.bf16.msra.mxu0 %v2044
    %4024 = vmatprep.subr.bf16.mxu0 %v2049
    %4025 = vmatpush1.bf16.msra.mxu0 %v2048
    %4026 = vmatprep.subr.bf16.mxu0 %v2053
    %4027 = vmatpush1.bf16.msra.mxu0 %v2052
    %4028 = vmatprep.subr.bf16.mxu0 %v2057
    %4029 = vmatpush1.bf16.msra.mxu0 %v2056
    %4030 = vmatprep.subr.bf16.mxu0 %v2061
    %4031 = vmatpush1.bf16.msra.mxu0 %v2060
    %4032 = vmatprep.subr.bf16.mxu0 %v2065
    %4033 = vmatpush1.bf16.msra.mxu0 %v2064
    %4034 = vmatprep.subr.bf16.mxu0 %v2069
    %4035 = vmatpush1.bf16.msra.mxu0 %v2068
    %4036 = vmatprep.subr.bf16.mxu0 %v2073
    %4037 = vmatpush1.bf16.msra.mxu0 %v2072
    %4038 = vmatprep.subr.bf16.mxu0 %v2077
    %4039 = vmatpush1.bf16.msra.mxu0 %v2076
    %4040 = vmatprep.mubr.bf16.mxu0 %v3798
    %4041 = vmatmul.mubr.bf16.gmra.mrb[0].mxu0 %v3797
    %v4042 = vpop.f32.mrb[0].mxu0
    %v4043 = vadd.f32 %v4002, %v4042
    %v4044 = vpop.f32.mrb[0].mxu0
    %v4045 = vadd.f32 %v4004, %v4044
    %v4046 = vpop.f32.mrb[0].mxu0
    %v4047 = vpop.f32.mrb[0].mxu0
    %4048 = vdwg.mxu0
    %4049 = vmatprep.subr.bf16.mxu0 %v1955
    %4050 = vmatpush1.bf16.msra.mxu0 %v1954
    %4051 = vmatprep.subr.bf16.mxu0 %v1959
    %4052 = vmatpush1.bf16.msra.mxu0 %v1958
    %4053 = vmatprep.subr.bf16.mxu0 %v1963
    %4054 = vmatpush1.bf16.msra.mxu0 %v1962
    %4055 = vmatprep.subr.bf16.mxu0 %v1967
    %4056 = vmatpush1.bf16.msra.mxu0 %v1966
    %4057 = vmatprep.subr.bf16.mxu0 %v1971
    %4058 = vmatpush1.bf16.msra.mxu0 %v1970
    %4059 = vmatprep.subr.bf16.mxu0 %v1975
    %4060 = vmatpush1.bf16.msra.mxu0 %v1974
    %4061 = vmatprep.subr.bf16.mxu0 %v1979
    %4062 = vmatpush1.bf16.msra.mxu0 %v1978
    %4063 = vmatprep.subr.bf16.mxu0 %v1983
    %4064 = vmatpush1.bf16.msra.mxu0 %v1982
    %4065 = vmatprep.subr.bf16.mxu0 %v1987
    %4066 = vmatpush1.bf16.msra.mxu0 %v1986
    %4067 = vmatprep.subr.bf16.mxu0 %v1991
    %4068 = vmatpush1.bf16.msra.mxu0 %v1990
    %4069 = vmatprep.subr.bf16.mxu0 %v1995
    %4070 = vmatpush1.bf16.msra.mxu0 %v1994
    %4071 = vmatprep.subr.bf16.mxu0 %v1999
    %4072 = vmatpush1.bf16.msra.mxu0 %v1998
    %4073 = vmatprep.subr.bf16.mxu0 %v2003
    %4074 = vmatpush1.bf16.msra.mxu0 %v2002
    %4075 = vmatprep.subr.bf16.mxu0 %v2007
    %4076 = vmatpush1.bf16.msra.mxu0 %v2006
    %4077 = vmatprep.subr.bf16.mxu0 %v2011
    %4078 = vmatpush1.bf16.msra.mxu0 %v2010
    %4079 = vmatprep.subr.bf16.mxu0 %v2015
    %4080 = vmatpush1.bf16.msra.mxu0 %v2014
    %4081 = vmatprep.mubr.bf16.mxu0 %v3796
    %4082 = vmatmul.mubr.bf16.gmra.mrb[0].mxu0 %v3795
    %v4083 = vpop.f32.mrb[0].mxu0
    %v4084 = vadd.f32 %v3961, %v4083
    %v4085 = vpop.f32.mrb[0].mxu0
    %v4086 = vadd.f32 %v3963, %v4085
    %v4087 = vpop.f32.mrb[0].mxu0
    %v4088 = vpop.f32.mrb[0].mxu0
    %4089 = vdwg.mxu0
    %4090 = vmatprep.subr.bf16.mxu0 %v2019
    %4091 = vmatpush1.bf16.msra.mxu0 %v2018
    %4092 = vmatprep.subr.bf16.mxu0 %v2023
    %4093 = vmatpush1.bf16.msra.mxu0 %v2022
    %4094 = vmatprep.subr.bf16.mxu0 %v2027
    %4095 = vmatpush1.bf16.msra.mxu0 %v2026
    %4096 = vmatprep.subr.bf16.mxu0 %v2031
    %4097 = vmatpush1.bf16.msra.mxu0 %v2030
    %4098 = vmatprep.subr.bf16.mxu0 %v2035
    %4099 = vmatpush1.bf16.msra.mxu0 %v2034
    %4100 = vmatprep.subr.bf16.mxu0 %v2039
    %4101 = vmatpush1.bf16.msra.mxu0 %v2038
    %4102 = vmatprep.subr.bf16.mxu0 %v2043
    %4103 = vmatpush1.bf16.msra.mxu0 %v2042
    %4104 = vmatprep.subr.bf16.mxu0 %v2047
    %4105 = vmatpush1.bf16.msra.mxu0 %v2046
    %4106 = vmatprep.subr.bf16.mxu0 %v2051
    %4107 = vmatpush1.bf16.msra.mxu0 %v2050
    %4108 = vmatprep.subr.bf16.mxu0 %v2055
    %4109 = vmatpush1.bf16.msra.mxu0 %v2054
    %4110 = vmatprep.subr.bf16.mxu0 %v2059
    %4111 = vmatpush1.bf16.msra.mxu0 %v2058
    %4112 = vmatprep.subr.bf16.mxu0 %v2063
    %4113 = vmatpush1.bf16.msra.mxu0 %v2062
    %4114 = vmatprep.subr.bf16.mxu0 %v2067
    %4115 = vmatpush1.bf16.msra.mxu0 %v2066
    %4116 = vmatprep.subr.bf16.mxu0 %v2071
    %4117 = vmatpush1.bf16.msra.mxu0 %v2070
    %4118 = vmatprep.subr.bf16.mxu0 %v2075
    %4119 = vmatpush1.bf16.msra.mxu0 %v2074
    %4120 = vmatprep.subr.bf16.mxu0 %v2079
    %4121 = vmatpush1.bf16.msra.mxu0 %v2078
    %4122 = vmatprep.mubr.bf16.mxu0 %v3798
    %4123 = vmatmul.mubr.bf16.gmra.mrb[0].mxu0 %v3797
    %v4124 = vpop.f32.mrb[0].mxu0
    %v4125 = vadd.f32 %v4084, %v4124
    %v4126 = vpop.f32.mrb[0].mxu0
    %v4127 = vadd.f32 %v4086, %v4126
    %v4128 = vpop.f32.mrb[0].mxu0
    %v4129 = vpop.f32.mrb[0].mxu0
    %4130 = vdwg.mxu0
    %v4131 = vadd.f32 %v4043, %v2424
    %v4132 = vadd.f32 %v4045, %v2428
    %v4133 = vadd.f32 %v4125, %v2432
    %v4134 = vadd.f32 %v4127, %v2436
    %v4135 = vtanh.pop %v4131
    %v4136 = vtanh.pop %v4132
    %v4137 = vtanh.pop %v4133
    %v4138 = vtanh.pop %v4134
    %4139 = vst [vmem:[#allocation2 + $0x1e0] sm:$0xff] %v4135
    %4140 = vst [vmem:[#allocation2 + $0x1e8] sm:$0xff] %v4136
    %4141 = vst [vmem:[#allocation2 + $0x1f0] sm:$0xff] %v4137
    %4142 = vst [vmem:[#allocation2 + $0x1f8] sm:$0xff] %v4138
    %v4143 = vld [vmem:[#allocation2] sm:$0xff]
    %v4144 = vld [vmem:[#allocation2 + $0x8] sm:$0xff]
    %v4145 = vld [vmem:[#allocation2 + $0x10] sm:$0xff]
    %v4146 = vld [vmem:[#allocation2 + $0x18] sm:$0xff]
    %v4147 = vld [vmem:[#allocation2 + $0x20] sm:$0xff]
    %v4148 = vld [vmem:[#allocation2 + $0x28] sm:$0xff]
    %v4149 = vld [vmem:[#allocation2 + $0x30] sm:$0xff]
    %v4150 = vld [vmem:[#allocation2 + $0x38] sm:$0xff]
    %v4151 = vld [vmem:[#allocation2 + $0x40] sm:$0xff]
    %v4152 = vld [vmem:[#allocation2 + $0x48] sm:$0xff]
    %v4153 = vld [vmem:[#allocation2 + $0x50] sm:$0xff]
    %v4154 = vld [vmem:[#allocation2 + $0x58] sm:$0xff]
    %v4155 = vld [vmem:[#allocation2 + $0x60] sm:$0xff]
    %v4156 = vld [vmem:[#allocation2 + $0x68] sm:$0xff]
    %v4157 = vld [vmem:[#allocation2 + $0x70] sm:$0xff]
    %v4158 = vld [vmem:[#allocation2 + $0x78] sm:$0xff]
    %v4159 = vld [vmem:[#allocation2 + $0x80] sm:$0xff]
    %v4160 = vld [vmem:[#allocation2 + $0x88] sm:$0xff]
    %v4161 = vld [vmem:[#allocation2 + $0x90] sm:$0xff]
    %v4162 = vld [vmem:[#allocation2 + $0x98] sm:$0xff]
    %v4163 = vld [vmem:[#allocation2 + $0xa0] sm:$0xff]
    %v4164 = vld [vmem:[#allocation2 + $0xa8] sm:$0xff]
    %v4165 = vld [vmem:[#allocation2 + $0xb0] sm:$0xff]
    %v4166 = vld [vmem:[#allocation2 + $0xb8] sm:$0xff]
    %v4167 = vld [vmem:[#allocation2 + $0xc0] sm:$0xff]
    %v4168 = vld [vmem:[#allocation2 + $0xc8] sm:$0xff]
    %v4169 = vld [vmem:[#allocation2 + $0xd0] sm:$0xff]
    %v4170 = vld [vmem:[#allocation2 + $0xd8] sm:$0xff]
    %v4171 = vld [vmem:[#allocation2 + $0xe0] sm:$0xff]
    %v4172 = vld [vmem:[#allocation2 + $0xe8] sm:$0xff]
    %v4173 = vld [vmem:[#allocation2 + $0xf0] sm:$0xff]
    %v4174 = vld [vmem:[#allocation2 + $0xf8] sm:$0xff]
    %v4175 = vld [vmem:[#allocation2 + $0x100] sm:$0xff]
    %v4176 = vld [vmem:[#allocation2 + $0x108] sm:$0xff]
    %v4177 = vld [vmem:[#allocation2 + $0x110] sm:$0xff]
    %v4178 = vld [vmem:[#allocation2 + $0x118] sm:$0xff]
    %v4179 = vld [vmem:[#allocation2 + $0x120] sm:$0xff]
    %v4180 = vld [vmem:[#allocation2 + $0x128] sm:$0xff]
    %v4181 = vld [vmem:[#allocation2 + $0x130] sm:$0xff]
    %v4182 = vld [vmem:[#allocation2 + $0x138] sm:$0xff]
    %v4183 = vld [vmem:[#allocation2 + $0x140] sm:$0xff]
    %v4184 = vld [vmem:[#allocation2 + $0x148] sm:$0xff]
    %v4185 = vld [vmem:[#allocation2 + $0x150] sm:$0xff]
    %v4186 = vld [vmem:[#allocation2 + $0x158] sm:$0xff]
    %v4187 = vld [vmem:[#allocation2 + $0x160] sm:$0xff]
    %v4188 = vld [vmem:[#allocation2 + $0x168] sm:$0xff]
    %v4189 = vld [vmem:[#allocation2 + $0x170] sm:$0xff]
    %v4190 = vld [vmem:[#allocation2 + $0x178] sm:$0xff]
    %v4191 = vld [vmem:[#allocation2 + $0x180] sm:$0xff]
    %v4192 = vld [vmem:[#allocation2 + $0x188] sm:$0xff]
    %v4193 = vld [vmem:[#allocation2 + $0x190] sm:$0xff]
    %v4194 = vld [vmem:[#allocation2 + $0x198] sm:$0xff]
    %v4195 = vld [vmem:[#allocation2 + $0x1a0] sm:$0xff]
    %v4196 = vld [vmem:[#allocation2 + $0x1a8] sm:$0xff]
    %v4197 = vld [vmem:[#allocation2 + $0x1b0] sm:$0xff]
    %v4198 = vld [vmem:[#allocation2 + $0x1b8] sm:$0xff]
    %v4199 = vld [vmem:[#allocation2 + $0x1c0] sm:$0xff]
    %v4200 = vld [vmem:[#allocation2 + $0x1c8] sm:$0xff]
    %v4201 = vld [vmem:[#allocation2 + $0x1d0] sm:$0xff]
    %v4202 = vld [vmem:[#allocation2 + $0x1d8] sm:$0xff]
    %v4203 = vld [vmem:[#allocation2 + $0x1e0] sm:$0xff]
    %v4204 = vld [vmem:[#allocation2 + $0x1e8] sm:$0xff]
    %v4205 = vld [vmem:[#allocation2 + $0x1f0] sm:$0xff]
    %v4206 = vld [vmem:[#allocation2 + $0x1f8] sm:$0xff]
    %v4207 = vpack.c.bf16 %v4147, %v4143
    %v4208 = vpack.c.bf16 %v4148, %v4144
    %v4209 = vpack.c.bf16 %v4149, %v4145
    %v4210 = vpack.c.bf16 %v4150, %v4146
    %v4211 = vpack.c.bf16 %v4155, %v4151
    %v4212 = vpack.c.bf16 %v4156, %v4152
    %v4213 = vpack.c.bf16 %v4157, %v4153
    %v4214 = vpack.c.bf16 %v4158, %v4154
    %v4215 = vpack.c.bf16 %v4163, %v4159
    %v4216 = vpack.c.bf16 %v4164, %v4160
    %v4217 = vpack.c.bf16 %v4165, %v4161
    %v4218 = vpack.c.bf16 %v4166, %v4162
    %v4219 = vpack.c.bf16 %v4171, %v4167
    %v4220 = vpack.c.bf16 %v4172, %v4168
    %v4221 = vpack.c.bf16 %v4173, %v4169
    %v4222 = vpack.c.bf16 %v4174, %v4170
    %v4223 = vpack.c.bf16 %v4179, %v4175
    %v4224 = vpack.c.bf16 %v4180, %v4176
    %v4225 = vpack.c.bf16 %v4181, %v4177
    %v4226 = vpack.c.bf16 %v4182, %v4178
    %v4227 = vpack.c.bf16 %v4187, %v4183
    %v4228 = vpack.c.bf16 %v4188, %v4184
    %v4229 = vpack.c.bf16 %v4189, %v4185
    %v4230 = vpack.c.bf16 %v4190, %v4186
    %v4231 = vpack.c.bf16 %v4195, %v4191
    %v4232 = vpack.c.bf16 %v4196, %v4192
    %v4233 = vpack.c.bf16 %v4197, %v4193
    %v4234 = vpack.c.bf16 %v4198, %v4194
    %v4235 = vpack.c.bf16 %v4203, %v4199
    %v4236 = vpack.c.bf16 %v4204, %v4200
    %v4237 = vpack.c.bf16 %v4205, %v4201
    %v4238 = vpack.c.bf16 %v4206, %v4202
    %v4239 = vld [vmem:[#allocation15] sm:$0xf]
    %v4240 = vld [vmem:[#allocation15 + $0x4] sm:$0xf]
    %v4243 = vunpack.c.l.b16 %v4239
    %v4244 = vunpack.c.l.b16 %v4240
    %v4245 = vpack.c.b16 %v4244, %v4243
    %4247 = vmatprep.subr.bf16.mxu0 %v4208
    %4248 = vmatpush1.bf16.msra.mxu0 %v4207
    %4249 = vmatprep.subr.bf16.mxu0 %v4212
    %4250 = vmatpush1.bf16.msra.mxu0 %v4211
    %4251 = vmatprep.subr.bf16.mxu0 %v4216
    %4252 = vmatpush1.bf16.msra.mxu0 %v4215
    %4253 = vmatprep.subr.bf16.mxu0 %v4220
    %4254 = vmatpush1.bf16.msra.mxu0 %v4219
    %4255 = vmatprep.subr.bf16.mxu0 %v4224
    %4256 = vmatpush1.bf16.msra.mxu0 %v4223
    %4257 = vmatprep.subr.bf16.mxu0 %v4228
    %4258 = vmatpush1.bf16.msra.mxu0 %v4227
    %4259 = vmatprep.subr.bf16.mxu0 %v4232
    %4260 = vmatpush1.bf16.msra.mxu0 %v4231
    %4261 = vmatprep.subr.bf16.mxu0 %v4236
    %4262 = vmatpush1.bf16.msra.mxu0 %v4235
    %4263 = vmatprep.subr.bf16.mxu0 0
    %4264 = vmatpush1.bf16.msra.mxu0 0
    %4265 = vmatprep.subr.bf16.mxu0 0
    %4266 = vmatpush1.bf16.msra.mxu0 0
    %4267 = vmatprep.subr.bf16.mxu0 0
    %4268 = vmatpush1.bf16.msra.mxu0 0
    %4269 = vmatprep.subr.bf16.mxu0 0
    %4270 = vmatpush1.bf16.msra.mxu0 0
    %4271 = vmatprep.subr.bf16.mxu0 0
    %4272 = vmatpush1.bf16.msra.mxu0 0
    %4273 = vmatprep.subr.bf16.mxu0 0
    %4274 = vmatpush1.bf16.msra.mxu0 0
    %4275 = vmatprep.subr.bf16.mxu0 0
    %4276 = vmatpush1.bf16.msra.mxu0 0
    %4277 = vmatprep.subr.bf16.mxu0 0
    %4278 = vmatpush1.bf16.msra.mxu0 0
    %4279 = vmatprep.mubr.bf16.mxu0 0
    %4280 = vmatmul.mubr.bf16.gmra.mrb[0].mxu0 %v4245
    %v4281 = vpop.f32.mrb[0].mxu0
    %v4282 = vadd.f32 0.0, %v4281
    %v4283 = vpop.f32.mrb[0].mxu0
    %v4284 = vadd.f32 0.0, %v4283
    %v4285 = vpop.f32.mrb[0].mxu0
    %v4286 = vadd.f32 0.0, %v4285
    %v4287 = vpop.f32.mrb[0].mxu0
    %v4288 = vadd.f32 0.0, %v4287
    %4289 = vdwg.mxu0
    %4290 = vmatprep.subr.bf16.mxu0 %v4210
    %4291 = vmatpush1.bf16.msra.mxu0 %v4209
    %4292 = vmatprep.subr.bf16.mxu0 %v4214
    %4293 = vmatpush1.bf16.msra.mxu0 %v4213
    %4294 = vmatprep.subr.bf16.mxu0 %v4218
    %4295 = vmatpush1.bf16.msra.mxu0 %v4217
    %4296 = vmatprep.subr.bf16.mxu0 %v4222
    %4297 = vmatpush1.bf16.msra.mxu0 %v4221
    %4298 = vmatprep.subr.bf16.mxu0 %v4226
    %4299 = vmatpush1.bf16.msra.mxu0 %v4225
    %4300 = vmatprep.subr.bf16.mxu0 %v4230
    %4301 = vmatpush1.bf16.msra.mxu0 %v4229
    %4302 = vmatprep.subr.bf16.mxu0 %v4234
    %4303 = vmatpush1.bf16.msra.mxu0 %v4233
    %4304 = vmatprep.subr.bf16.mxu0 %v4238
    %4305 = vmatpush1.bf16.msra.mxu0 %v4237
    %4306 = vmatprep.subr.bf16.mxu0 0
    %4307 = vmatpush1.bf16.msra.mxu0 0
    %4308 = vmatprep.subr.bf16.mxu0 0
    %4309 = vmatpush1.bf16.msra.mxu0 0
    %4310 = vmatprep.subr.bf16.mxu0 0
    %4311 = vmatpush1.bf16.msra.mxu0 0
    %4312 = vmatprep.subr.bf16.mxu0 0
    %4313 = vmatpush1.bf16.msra.mxu0 0
    %4314 = vmatprep.subr.bf16.mxu0 0
    %4315 = vmatpush1.bf16.msra.mxu0 0
    %4316 = vmatprep.subr.bf16.mxu0 0
    %4317 = vmatpush1.bf16.msra.mxu0 0
    %4318 = vmatprep.subr.bf16.mxu0 0
    %4319 = vmatpush1.bf16.msra.mxu0 0
    %4320 = vmatprep.subr.bf16.mxu0 0
    %4321 = vmatpush1.bf16.msra.mxu0 0
    %4322 = vmatprep.mubr.bf16.mxu0 0
    %4323 = vmatmul.mubr.bf16.gmra.mrb[0].mxu0 %v4245
    %v4324 = vpop.f32.mrb[0].mxu0
    %v4325 = vadd.f32 0.0, %v4324
    %v4326 = vpop.f32.mrb[0].mxu0
    %v4327 = vadd.f32 0.0, %v4326
    %v4328 = vpop.f32.mrb[0].mxu0
    %v4329 = vadd.f32 0.0, %v4328
    %v4330 = vpop.f32.mrb[0].mxu0
    %v4331 = vadd.f32 0.0, %v4330
    %4332 = vdwg.mxu0
    %v4333 = vpack.c.bf16 %v4282, %v4282
    %v4334 = vpack.c.bf16 %v4284, %v4284
    %v4335 = vpack.c.bf16 %v4325, %v4325
    %v4336 = vpack.c.bf16 %v4327, %v4327
    %v4337 = vpack.c.bf16 %v4286, %v4286
    %v4338 = vpack.c.bf16 %v4288, %v4288
    %v4339 = vpack.c.bf16 %v4329, %v4329
    %v4340 = vpack.c.bf16 %v4331, %v4331
    %4341 = vmatprep.subr.bf16.mxu0 %v1101
    %4342 = vmatpush1.bf16.msra.mxu0 %v1100
    %4343 = vmatprep.subr.bf16.mxu0 %v1105
    %4344 = vmatpush1.bf16.msra.mxu0 %v1104
    %4345 = vmatprep.subr.bf16.mxu0 %v1109
    %4346 = vmatpush1.bf16.msra.mxu0 %v1108
    %4347 = vmatprep.subr.bf16.mxu0 %v1113
    %4348 = vmatpush1.bf16.msra.mxu0 %v1112
    %4349 = vmatprep.subr.bf16.mxu0 %v1117
    %4350 = vmatpush1.bf16.msra.mxu0 %v1116
    %4351 = vmatprep.subr.bf16.mxu0 %v1121
    %4352 = vmatpush1.bf16.msra.mxu0 %v1120
    %4353 = vmatprep.subr.bf16.mxu0 %v1125
    %4354 = vmatpush1.bf16.msra.mxu0 %v1124
    %4355 = vmatprep.subr.bf16.mxu0 %v1129
    %4356 = vmatpush1.bf16.msra.mxu0 %v1128
    %4357 = vmatprep.subr.bf16.mxu0 %v1133
    %4358 = vmatpush1.bf16.msra.mxu0 %v1132
    %4359 = vmatprep.subr.bf16.mxu0 %v1137
    %4360 = vmatpush1.bf16.msra.mxu0 %v1136
    %4361 = vmatprep.subr.bf16.mxu0 %v1141
    %4362 = vmatpush1.bf16.msra.mxu0 %v1140
    %4363 = vmatprep.subr.bf16.mxu0 %v1145
    %4364 = vmatpush1.bf16.msra.mxu0 %v1144
    %4365 = vmatprep.subr.bf16.mxu0 %v1149
    %4366 = vmatpush1.bf16.msra.mxu0 %v1148
    %4367 = vmatprep.subr.bf16.mxu0 %v1153
    %4368 = vmatpush1.bf16.msra.mxu0 %v1152
    %4369 = vmatprep.subr.bf16.mxu0 %v1157
    %4370 = vmatpush1.bf16.msra.mxu0 %v1156
    %4371 = vmatprep.subr.bf16.mxu0 %v1161
    %4372 = vmatpush1.bf16.msra.mxu0 %v1160
    %4373 = vmatprep.mubr.bf16.mxu0 %v4338
    %4374 = vmatmul.mubr.bf16.gmra.mrb[0].mxu0 %v4337
    %v4375 = vpop.f32.mrb[0].mxu0
    %v4376 = vadd.f32 0.0, %v4375
    %v4377 = vpop.f32.mrb[0].mxu0
    %v4378 = vadd.f32 0.0, %v4377
    %v4379 = vpop.f32.mrb[0].mxu0
    %v4380 = vpop.f32.mrb[0].mxu0
    %4381 = vdwg.mxu0
    %4382 = vmatprep.subr.bf16.mxu0 %v1165
    %4383 = vmatpush1.bf16.msra.mxu0 %v1164
    %4384 = vmatprep.subr.bf16.mxu0 %v1169
    %4385 = vmatpush1.bf16.msra.mxu0 %v1168
    %4386 = vmatprep.subr.bf16.mxu0 %v1173
    %4387 = vmatpush1.bf16.msra.mxu0 %v1172
    %4388 = vmatprep.subr.bf16.mxu0 %v1177
    %4389 = vmatpush1.bf16.msra.mxu0 %v1176
    %4390 = vmatprep.subr.bf16.mxu0 %v1181
    %4391 = vmatpush1.bf16.msra.mxu0 %v1180
    %4392 = vmatprep.subr.bf16.mxu0 %v1185
    %4393 = vmatpush1.bf16.msra.mxu0 %v1184
    %4394 = vmatprep.subr.bf16.mxu0 %v1189
    %4395 = vmatpush1.bf16.msra.mxu0 %v1188
    %4396 = vmatprep.subr.bf16.mxu0 %v1193
    %4397 = vmatpush1.bf16.msra.mxu0 %v1192
    %4398 = vmatprep.subr.bf16.mxu0 %v1197
    %4399 = vmatpush1.bf16.msra.mxu0 %v1196
    %4400 = vmatprep.subr.bf16.mxu0 %v1201
    %4401 = vmatpush1.bf16.msra.mxu0 %v1200
    %4402 = vmatprep.subr.bf16.mxu0 %v1205
    %4403 = vmatpush1.bf16.msra.mxu0 %v1204
    %4404 = vmatprep.subr.bf16.mxu0 %v1209
    %4405 = vmatpush1.bf16.msra.mxu0 %v1208
    %4406 = vmatprep.subr.bf16.mxu0 %v1213
    %4407 = vmatpush1.bf16.msra.mxu0 %v1212
    %4408 = vmatprep.subr.bf16.mxu0 %v1217
    %4409 = vmatpush1.bf16.msra.mxu0 %v1216
    %4410 = vmatprep.subr.bf16.mxu0 %v1221
    %4411 = vmatpush1.bf16.msra.mxu0 %v1220
    %4412 = vmatprep.subr.bf16.mxu0 %v1225
    %4413 = vmatpush1.bf16.msra.mxu0 %v1224
    %4414 = vmatprep.mubr.bf16.mxu0 %v4340
    %4415 = vmatmul.mubr.bf16.gmra.mrb[0].mxu0 %v4339
    %v4416 = vpop.f32.mrb[0].mxu0
    %v4417 = vadd.f32 %v4376, %v4416
    %v4418 = vpop.f32.mrb[0].mxu0
    %v4419 = vadd.f32 %v4378, %v4418
    %v4420 = vpop.f32.mrb[0].mxu0
    %v4421 = vpop.f32.mrb[0].mxu0
    %4422 = vdwg.mxu0
    %4423 = vmatprep.subr.bf16.mxu0 %v1103
    %4424 = vmatpush1.bf16.msra.mxu0 %v1102
    %4425 = vmatprep.subr.bf16.mxu0 %v1107
    %4426 = vmatpush1.bf16.msra.mxu0 %v1106
    %4427 = vmatprep.subr.bf16.mxu0 %v1111
    %4428 = vmatpush1.bf16.msra.mxu0 %v1110
    %4429 = vmatprep.subr.bf16.mxu0 %v1115
    %4430 = vmatpush1.bf16.msra.mxu0 %v1114
    %4431 = vmatprep.subr.bf16.mxu0 %v1119
    %4432 = vmatpush1.bf16.msra.mxu0 %v1118
    %4433 = vmatprep.subr.bf16.mxu0 %v1123
    %4434 = vmatpush1.bf16.msra.mxu0 %v1122
    %4435 = vmatprep.subr.bf16.mxu0 %v1127
    %4436 = vmatpush1.bf16.msra.mxu0 %v1126
    %4437 = vmatprep.subr.bf16.mxu0 %v1131
    %4438 = vmatpush1.bf16.msra.mxu0 %v1130
    %4439 = vmatprep.subr.bf16.mxu0 %v1135
    %4440 = vmatpush1.bf16.msra.mxu0 %v1134
    %4441 = vmatprep.subr.bf16.mxu0 %v1139
    %4442 = vmatpush1.bf16.msra.mxu0 %v1138
    %4443 = vmatprep.subr.bf16.mxu0 %v1143
    %4444 = vmatpush1.bf16.msra.mxu0 %v1142
    %4445 = vmatprep.subr.bf16.mxu0 %v1147
    %4446 = vmatpush1.bf16.msra.mxu0 %v1146
    %4447 = vmatprep.subr.bf16.mxu0 %v1151
    %4448 = vmatpush1.bf16.msra.mxu0 %v1150
    %4449 = vmatprep.subr.bf16.mxu0 %v1155
    %4450 = vmatpush1.bf16.msra.mxu0 %v1154
    %4451 = vmatprep.subr.bf16.mxu0 %v1159
    %4452 = vmatpush1.bf16.msra.mxu0 %v1158
    %4453 = vmatprep.subr.bf16.mxu0 %v1163
    %4454 = vmatpush1.bf16.msra.mxu0 %v1162
    %4455 = vmatprep.mubr.bf16.mxu0 %v4338
    %4456 = vmatmul.mubr.bf16.gmra.mrb[0].mxu0 %v4337
    %v4457 = vpop.f32.mrb[0].mxu0
    %v4458 = vadd.f32 0.0, %v4457
    %v4459 = vpop.f32.mrb[0].mxu0
    %v4460 = vadd.f32 0.0, %v4459
    %v4461 = vpop.f32.mrb[0].mxu0
    %v4462 = vpop.f32.mrb[0].mxu0
    %4463 = vdwg.mxu0
    %4464 = vmatprep.subr.bf16.mxu0 %v1167
    %4465 = vmatpush1.bf16.msra.mxu0 %v1166
    %4466 = vmatprep.subr.bf16.mxu0 %v1171
    %4467 = vmatpush1.bf16.msra.mxu0 %v1170
    %4468 = vmatprep.subr.bf16.mxu0 %v1175
    %4469 = vmatpush1.bf16.msra.mxu0 %v1174
    %4470 = vmatprep.subr.bf16.mxu0 %v1179
    %4471 = vmatpush1.bf16.msra.mxu0 %v1178
    %4472 = vmatprep.subr.bf16.mxu0 %v1183
    %4473 = vmatpush1.bf16.msra.mxu0 %v1182
    %4474 = vmatprep.subr.bf16.mxu0 %v1187
    %4475 = vmatpush1.bf16.msra.mxu0 %v1186
    %4476 = vmatprep.subr.bf16.mxu0 %v1191
    %4477 = vmatpush1.bf16.msra.mxu0 %v1190
    %4478 = vmatprep.subr.bf16.mxu0 %v1195
    %4479 = vmatpush1.bf16.msra.mxu0 %v1194
    %4480 = vmatprep.subr.bf16.mxu0 %v1199
    %4481 = vmatpush1.bf16.msra.mxu0 %v1198
    %4482 = vmatprep.subr.bf16.mxu0 %v1203
    %4483 = vmatpush1.bf16.msra.mxu0 %v1202
    %4484 = vmatprep.subr.bf16.mxu0 %v1207
    %4485 = vmatpush1.bf16.msra.mxu0 %v1206
    %4486 = vmatprep.subr.bf16.mxu0 %v1211
    %4487 = vmatpush1.bf16.msra.mxu0 %v1210
    %4488 = vmatprep.subr.bf16.mxu0 %v1215
    %4489 = vmatpush1.bf16.msra.mxu0 %v1214
    %4490 = vmatprep.subr.bf16.mxu0 %v1219
    %4491 = vmatpush1.bf16.msra.mxu0 %v1218
    %4492 = vmatprep.subr.bf16.mxu0 %v1223
    %4493 = vmatpush1.bf16.msra.mxu0 %v1222
    %4494 = vmatprep.subr.bf16.mxu0 %v1227
    %4495 = vmatpush1.bf16.msra.mxu0 %v1226
    %4496 = vmatprep.mubr.bf16.mxu0 %v4340
    %4497 = vmatmul.mubr.bf16.gmra.mrb[0].mxu0 %v4339
    %v4498 = vpop.f32.mrb[0].mxu0
    %v4499 = vadd.f32 %v4458, %v4498
    %v4500 = vpop.f32.mrb[0].mxu0
    %v4501 = vadd.f32 %v4460, %v4500
    %v4502 = vpop.f32.mrb[0].mxu0
    %v4503 = vpop.f32.mrb[0].mxu0
    %4504 = vdwg.mxu0
    %4505 = vmatprep.subr.bf16.mxu0 %v1953
    %4506 = vmatpush1.bf16.msra.mxu0 %v1952
    %4507 = vmatprep.subr.bf16.mxu0 %v1957
    %4508 = vmatpush1.bf16.msra.mxu0 %v1956
    %4509 = vmatprep.subr.bf16.mxu0 %v1961
    %4510 = vmatpush1.bf16.msra.mxu0 %v1960
    %4511 = vmatprep.subr.bf16.mxu0 %v1965
    %4512 = vmatpush1.bf16.msra.mxu0 %v1964
    %4513 = vmatprep.subr.bf16.mxu0 %v1969
    %4514 = vmatpush1.bf16.msra.mxu0 %v1968
    %4515 = vmatprep.subr.bf16.mxu0 %v1973
    %4516 = vmatpush1.bf16.msra.mxu0 %v1972
    %4517 = vmatprep.subr.bf16.mxu0 %v1977
    %4518 = vmatpush1.bf16.msra.mxu0 %v1976
    %4519 = vmatprep.subr.bf16.mxu0 %v1981
    %4520 = vmatpush1.bf16.msra.mxu0 %v1980
    %4521 = vmatprep.subr.bf16.mxu0 %v1985
    %4522 = vmatpush1.bf16.msra.mxu0 %v1984
    %4523 = vmatprep.subr.bf16.mxu0 %v1989
    %4524 = vmatpush1.bf16.msra.mxu0 %v1988
    %4525 = vmatprep.subr.bf16.mxu0 %v1993
    %4526 = vmatpush1.bf16.msra.mxu0 %v1992
    %4527 = vmatprep.subr.bf16.mxu0 %v1997
    %4528 = vmatpush1.bf16.msra.mxu0 %v1996
    %4529 = vmatprep.subr.bf16.mxu0 %v2001
    %4530 = vmatpush1.bf16.msra.mxu0 %v2000
    %4531 = vmatprep.subr.bf16.mxu0 %v2005
    %4532 = vmatpush1.bf16.msra.mxu0 %v2004
    %4533 = vmatprep.subr.bf16.mxu0 %v2009
    %4534 = vmatpush1.bf16.msra.mxu0 %v2008
    %4535 = vmatprep.subr.bf16.mxu0 %v2013
    %4536 = vmatpush1.bf16.msra.mxu0 %v2012
    %4537 = vmatprep.mubr.bf16.mxu0 %v4334
    %4538 = vmatmul.mubr.bf16.gmra.mrb[0].mxu0 %v4333
    %v4539 = vpop.f32.mrb[0].mxu0
    %v4540 = vadd.f32 %v4417, %v4539
    %v4541 = vpop.f32.mrb[0].mxu0
    %v4542 = vadd.f32 %v4419, %v4541
    %v4543 = vpop.f32.mrb[0].mxu0
    %v4544 = vpop.f32.mrb[0].mxu0
    %4545 = vdwg.mxu0
    %4546 = vmatprep.subr.bf16.mxu0 %v2017
    %4547 = vmatpush1.bf16.msra.mxu0 %v2016
    %4548 = vmatprep.subr.bf16.mxu0 %v2021
    %4549 = vmatpush1.bf16.msra.mxu0 %v2020
    %4550 = vmatprep.subr.bf16.mxu0 %v2025
    %4551 = vmatpush1.bf16.msra.mxu0 %v2024
    %4552 = vmatprep.subr.bf16.mxu0 %v2029
    %4553 = vmatpush1.bf16.msra.mxu0 %v2028
    %4554 = vmatprep.subr.bf16.mxu0 %v2033
    %4555 = vmatpush1.bf16.msra.mxu0 %v2032
    %4556 = vmatprep.subr.bf16.mxu0 %v2037
    %4557 = vmatpush1.bf16.msra.mxu0 %v2036
    %4558 = vmatprep.subr.bf16.mxu0 %v2041
    %4559 = vmatpush1.bf16.msra.mxu0 %v2040
    %4560 = vmatprep.subr.bf16.mxu0 %v2045
    %4561 = vmatpush1.bf16.msra.mxu0 %v2044
    %4562 = vmatprep.subr.bf16.mxu0 %v2049
    %4563 = vmatpush1.bf16.msra.mxu0 %v2048
    %4564 = vmatprep.subr.bf16.mxu0 %v2053
    %4565 = vmatpush1.bf16.msra.mxu0 %v2052
    %4566 = vmatprep.subr.bf16.mxu0 %v2057
    %4567 = vmatpush1.bf16.msra.mxu0 %v2056
    %4568 = vmatprep.subr.bf16.mxu0 %v2061
    %4569 = vmatpush1.bf16.msra.mxu0 %v2060
    %4570 = vmatprep.subr.bf16.mxu0 %v2065
    %4571 = vmatpush1.bf16.msra.mxu0 %v2064
    %4572 = vmatprep.subr.bf16.mxu0 %v2069
    %4573 = vmatpush1.bf16.msra.mxu0 %v2068
    %4574 = vmatprep.subr.bf16.mxu0 %v2073
    %4575 = vmatpush1.bf16.msra.mxu0 %v2072
    %4576 = vmatprep.subr.bf16.mxu0 %v2077
    %4577 = vmatpush1.bf16.msra.mxu0 %v2076
    %4578 = vmatprep.mubr.bf16.mxu0 %v4336
    %4579 = vmatmul.mubr.bf16.gmra.mrb[0].mxu0 %v4335
    %v4580 = vpop.f32.mrb[0].mxu0
    %v4581 = vadd.f32 %v4540, %v4580
    %v4582 = vpop.f32.mrb[0].mxu0
    %v4583 = vadd.f32 %v4542, %v4582
    %v4584 = vpop.f32.mrb[0].mxu0
    %v4585 = vpop.f32.mrb[0].mxu0
    %4586 = vdwg.mxu0
    %4587 = vmatprep.subr.bf16.mxu0 %v1955
    %4588 = vmatpush1.bf16.msra.mxu0 %v1954
    %4589 = vmatprep.subr.bf16.mxu0 %v1959
    %4590 = vmatpush1.bf16.msra.mxu0 %v1958
    %4591 = vmatprep.subr.bf16.mxu0 %v1963
    %4592 = vmatpush1.bf16.msra.mxu0 %v1962
    %4593 = vmatprep.subr.bf16.mxu0 %v1967
    %4594 = vmatpush1.bf16.msra.mxu0 %v1966
    %4595 = vmatprep.subr.bf16.mxu0 %v1971
    %4596 = vmatpush1.bf16.msra.mxu0 %v1970
    %4597 = vmatprep.subr.bf16.mxu0 %v1975
    %4598 = vmatpush1.bf16.msra.mxu0 %v1974
    %4599 = vmatprep.subr.bf16.mxu0 %v1979
    %4600 = vmatpush1.bf16.msra.mxu0 %v1978
    %4601 = vmatprep.subr.bf16.mxu0 %v1983
    %4602 = vmatpush1.bf16.msra.mxu0 %v1982
    %4603 = vmatprep.subr.bf16.mxu0 %v1987
    %4604 = vmatpush1.bf16.msra.mxu0 %v1986
    %4605 = vmatprep.subr.bf16.mxu0 %v1991
    %4606 = vmatpush1.bf16.msra.mxu0 %v1990
    %4607 = vmatprep.subr.bf16.mxu0 %v1995
    %4608 = vmatpush1.bf16.msra.mxu0 %v1994
    %4609 = vmatprep.subr.bf16.mxu0 %v1999
    %4610 = vmatpush1.bf16.msra.mxu0 %v1998
    %4611 = vmatprep.subr.bf16.mxu0 %v2003
    %4612 = vmatpush1.bf16.msra.mxu0 %v2002
    %4613 = vmatprep.subr.bf16.mxu0 %v2007
    %4614 = vmatpush1.bf16.msra.mxu0 %v2006
    %4615 = vmatprep.subr.bf16.mxu0 %v2011
    %4616 = vmatpush1.bf16.msra.mxu0 %v2010
    %4617 = vmatprep.subr.bf16.mxu0 %v2015
    %4618 = vmatpush1.bf16.msra.mxu0 %v2014
    %4619 = vmatprep.mubr.bf16.mxu0 %v4334
    %4620 = vmatmul.mubr.bf16.gmra.mrb[0].mxu0 %v4333
    %v4621 = vpop.f32.mrb[0].mxu0
    %v4622 = vadd.f32 %v4499, %v4621
    %v4623 = vpop.f32.mrb[0].mxu0
    %v4624 = vadd.f32 %v4501, %v4623
    %v4625 = vpop.f32.mrb[0].mxu0
    %v4626 = vpop.f32.mrb[0].mxu0
    %4627 = vdwg.mxu0
    %4628 = vmatprep.subr.bf16.mxu0 %v2019
    %4629 = vmatpush1.bf16.msra.mxu0 %v2018
    %4630 = vmatprep.subr.bf16.mxu0 %v2023
    %4631 = vmatpush1.bf16.msra.mxu0 %v2022
    %4632 = vmatprep.subr.bf16.mxu0 %v2027
    %4633 = vmatpush1.bf16.msra.mxu0 %v2026
    %4634 = vmatprep.subr.bf16.mxu0 %v2031
    %4635 = vmatpush1.bf16.msra.mxu0 %v2030
    %4636 = vmatprep.subr.bf16.mxu0 %v2035
    %4637 = vmatpush1.bf16.msra.mxu0 %v2034
    %4638 = vmatprep.subr.bf16.mxu0 %v2039
    %4639 = vmatpush1.bf16.msra.mxu0 %v2038
    %4640 = vmatprep.subr.bf16.mxu0 %v2043
    %4641 = vmatpush1.bf16.msra.mxu0 %v2042
    %4642 = vmatprep.subr.bf16.mxu0 %v2047
    %4643 = vmatpush1.bf16.msra.mxu0 %v2046
    %4644 = vmatprep.subr.bf16.mxu0 %v2051
    %4645 = vmatpush1.bf16.msra.mxu0 %v2050
    %4646 = vmatprep.subr.bf16.mxu0 %v2055
    %4647 = vmatpush1.bf16.msra.mxu0 %v2054
    %4648 = vmatprep.subr.bf16.mxu0 %v2059
    %4649 = vmatpush1.bf16.msra.mxu0 %v2058
    %4650 = vmatprep.subr.bf16.mxu0 %v2063
    %4651 = vmatpush1.bf16.msra.mxu0 %v2062
    %4652 = vmatprep.subr.bf16.mxu0 %v2067
    %4653 = vmatpush1.bf16.msra.mxu0 %v2066
    %4654 = vmatprep.subr.bf16.mxu0 %v2071
    %4655 = vmatpush1.bf16.msra.mxu0 %v2070
    %4656 = vmatprep.subr.bf16.mxu0 %v2075
    %4657 = vmatpush1.bf16.msra.mxu0 %v2074
    %4658 = vmatprep.subr.bf16.mxu0 %v2079
    %4659 = vmatpush1.bf16.msra.mxu0 %v2078
    %4660 = vmatprep.mubr.bf16.mxu0 %v4336
    %4661 = vmatmul.mubr.bf16.gmra.mrb[0].mxu0 %v4335
    %v4662 = vpop.f32.mrb[0].mxu0
    %v4663 = vadd.f32 %v4622, %v4662
    %v4664 = vpop.f32.mrb[0].mxu0
    %v4665 = vadd.f32 %v4624, %v4664
    %v4666 = vpop.f32.mrb[0].mxu0
    %v4667 = vpop.f32.mrb[0].mxu0
    %4668 = vdwg.mxu0
    %v4669 = vadd.f32 %v4581, %v2424
    %v4670 = vadd.f32 %v4583, %v2428
    %v4671 = vadd.f32 %v4663, %v2432
    %v4672 = vadd.f32 %v4665, %v2436
    %v4673 = vtanh.pop %v4669
    %v4674 = vtanh.pop %v4670
    %v4675 = vtanh.pop %v4671
    %v4676 = vtanh.pop %v4672
    %4677 = vst [vmem:[#allocation2 + $0x200] sm:$0xff] %v4673
    %4678 = vst [vmem:[#allocation2 + $0x208] sm:$0xff] %v4674
    %4679 = vst [vmem:[#allocation2 + $0x210] sm:$0xff] %v4675
    %4680 = vst [vmem:[#allocation2 + $0x218] sm:$0xff] %v4676
    %v4681 = vld [vmem:[#allocation2] sm:$0xff]
    %v4682 = vld [vmem:[#allocation2 + $0x8] sm:$0xff]
    %v4683 = vld [vmem:[#allocation2 + $0x10] sm:$0xff]
    %v4684 = vld [vmem:[#allocation2 + $0x18] sm:$0xff]
    %v4685 = vld [vmem:[#allocation2 + $0x20] sm:$0xff]
    %v4686 = vld [vmem:[#allocation2 + $0x28] sm:$0xff]
    %v4687 = vld [vmem:[#allocation2 + $0x30] sm:$0xff]
    %v4688 = vld [vmem:[#allocation2 + $0x38] sm:$0xff]
    %v4689 = vld [vmem:[#allocation2 + $0x40] sm:$0xff]
    %v4690 = vld [vmem:[#allocation2 + $0x48] sm:$0xff]
    %v4691 = vld [vmem:[#allocation2 + $0x50] sm:$0xff]
    %v4692 = vld [vmem:[#allocation2 + $0x58] sm:$0xff]
    %v4693 = vld [vmem:[#allocation2 + $0x60] sm:$0xff]
    %v4694 = vld [vmem:[#allocation2 + $0x68] sm:$0xff]
    %v4695 = vld [vmem:[#allocation2 + $0x70] sm:$0xff]
    %v4696 = vld [vmem:[#allocation2 + $0x78] sm:$0xff]
    %v4697 = vld [vmem:[#allocation2 + $0x80] sm:$0xff]
    %v4698 = vld [vmem:[#allocation2 + $0x88] sm:$0xff]
    %v4699 = vld [vmem:[#allocation2 + $0x90] sm:$0xff]
    %v4700 = vld [vmem:[#allocation2 + $0x98] sm:$0xff]
    %v4701 = vld [vmem:[#allocation2 + $0xa0] sm:$0xff]
    %v4702 = vld [vmem:[#allocation2 + $0xa8] sm:$0xff]
    %v4703 = vld [vmem:[#allocation2 + $0xb0] sm:$0xff]
    %v4704 = vld [vmem:[#allocation2 + $0xb8] sm:$0xff]
    %v4705 = vld [vmem:[#allocation2 + $0xc0] sm:$0xff]
    %v4706 = vld [vmem:[#allocation2 + $0xc8] sm:$0xff]
    %v4707 = vld [vmem:[#allocation2 + $0xd0] sm:$0xff]
    %v4708 = vld [vmem:[#allocation2 + $0xd8] sm:$0xff]
    %v4709 = vld [vmem:[#allocation2 + $0xe0] sm:$0xff]
    %v4710 = vld [vmem:[#allocation2 + $0xe8] sm:$0xff]
    %v4711 = vld [vmem:[#allocation2 + $0xf0] sm:$0xff]
    %v4712 = vld [vmem:[#allocation2 + $0xf8] sm:$0xff]
    %v4713 = vld [vmem:[#allocation2 + $0x100] sm:$0xff]
    %v4714 = vld [vmem:[#allocation2 + $0x108] sm:$0xff]
    %v4715 = vld [vmem:[#allocation2 + $0x110] sm:$0xff]
    %v4716 = vld [vmem:[#allocation2 + $0x118] sm:$0xff]
    %v4717 = vld [vmem:[#allocation2 + $0x120] sm:$0xff]
    %v4718 = vld [vmem:[#allocation2 + $0x128] sm:$0xff]
    %v4719 = vld [vmem:[#allocation2 + $0x130] sm:$0xff]
    %v4720 = vld [vmem:[#allocation2 + $0x138] sm:$0xff]
    %v4721 = vld [vmem:[#allocation2 + $0x140] sm:$0xff]
    %v4722 = vld [vmem:[#allocation2 + $0x148] sm:$0xff]
    %v4723 = vld [vmem:[#allocation2 + $0x150] sm:$0xff]
    %v4724 = vld [vmem:[#allocation2 + $0x158] sm:$0xff]
    %v4725 = vld [vmem:[#allocation2 + $0x160] sm:$0xff]
    %v4726 = vld [vmem:[#allocation2 + $0x168] sm:$0xff]
    %v4727 = vld [vmem:[#allocation2 + $0x170] sm:$0xff]
    %v4728 = vld [vmem:[#allocation2 + $0x178] sm:$0xff]
    %v4729 = vld [vmem:[#allocation2 + $0x180] sm:$0xff]
    %v4730 = vld [vmem:[#allocation2 + $0x188] sm:$0xff]
    %v4731 = vld [vmem:[#allocation2 + $0x190] sm:$0xff]
    %v4732 = vld [vmem:[#allocation2 + $0x198] sm:$0xff]
    %v4733 = vld [vmem:[#allocation2 + $0x1a0] sm:$0xff]
    %v4734 = vld [vmem:[#allocation2 + $0x1a8] sm:$0xff]
    %v4735 = vld [vmem:[#allocation2 + $0x1b0] sm:$0xff]
    %v4736 = vld [vmem:[#allocation2 + $0x1b8] sm:$0xff]
    %v4737 = vld [vmem:[#allocation2 + $0x1c0] sm:$0xff]
    %v4738 = vld [vmem:[#allocation2 + $0x1c8] sm:$0xff]
    %v4739 = vld [vmem:[#allocation2 + $0x1d0] sm:$0xff]
    %v4740 = vld [vmem:[#allocation2 + $0x1d8] sm:$0xff]
    %v4741 = vld [vmem:[#allocation2 + $0x1e0] sm:$0xff]
    %v4742 = vld [vmem:[#allocation2 + $0x1e8] sm:$0xff]
    %v4743 = vld [vmem:[#allocation2 + $0x1f0] sm:$0xff]
    %v4744 = vld [vmem:[#allocation2 + $0x1f8] sm:$0xff]
    %v4745 = vld [vmem:[#allocation2 + $0x200] sm:$0xff]
    %v4746 = vld [vmem:[#allocation2 + $0x208] sm:$0xff]
    %v4747 = vld [vmem:[#allocation2 + $0x210] sm:$0xff]
    %v4748 = vld [vmem:[#allocation2 + $0x218] sm:$0xff]
    %v4749 = vpack.c.bf16 %v4685, %v4681
    %v4750 = vpack.c.bf16 %v4686, %v4682
    %v4751 = vpack.c.bf16 %v4687, %v4683
    %v4752 = vpack.c.bf16 %v4688, %v4684
    %v4753 = vpack.c.bf16 %v4693, %v4689
    %v4754 = vpack.c.bf16 %v4694, %v4690
    %v4755 = vpack.c.bf16 %v4695, %v4691
    %v4756 = vpack.c.bf16 %v4696, %v4692
    %v4757 = vpack.c.bf16 %v4701, %v4697
    %v4758 = vpack.c.bf16 %v4702, %v4698
    %v4759 = vpack.c.bf16 %v4703, %v4699
    %v4760 = vpack.c.bf16 %v4704, %v4700
    %v4761 = vpack.c.bf16 %v4709, %v4705
    %v4762 = vpack.c.bf16 %v4710, %v4706
    %v4763 = vpack.c.bf16 %v4711, %v4707
    %v4764 = vpack.c.bf16 %v4712, %v4708
    %v4765 = vpack.c.bf16 %v4717, %v4713
    %v4766 = vpack.c.bf16 %v4718, %v4714
    %v4767 = vpack.c.bf16 %v4719, %v4715
    %v4768 = vpack.c.bf16 %v4720, %v4716
    %v4769 = vpack.c.bf16 %v4725, %v4721
    %v4770 = vpack.c.bf16 %v4726, %v4722
    %v4771 = vpack.c.bf16 %v4727, %v4723
    %v4772 = vpack.c.bf16 %v4728, %v4724
    %v4773 = vpack.c.bf16 %v4733, %v4729
    %v4774 = vpack.c.bf16 %v4734, %v4730
    %v4775 = vpack.c.bf16 %v4735, %v4731
    %v4776 = vpack.c.bf16 %v4736, %v4732
    %v4777 = vpack.c.bf16 %v4741, %v4737
    %v4778 = vpack.c.bf16 %v4742, %v4738
    %v4779 = vpack.c.bf16 %v4743, %v4739
    %v4780 = vpack.c.bf16 %v4744, %v4740
    %v4781 = vpack.c.bf16 %v4745, %v4745
    %v4782 = vpack.c.bf16 %v4746, %v4746
    %v4783 = vpack.c.bf16 %v4747, %v4747
    %v4784 = vpack.c.bf16 %v4748, %v4748
    %v4785 = vld [vmem:[%s9] sm:$0xff]
    %v4786 = vld [vmem:[%s9 + $0x8] sm:$0xff]
    %v4789 = vunpack.c.l.b16 %v4785
    %v4790 = vunpack.c.h.b16 %v4785
    %v4791 = vunpack.c.l.b16 %v4786
    %v4792 = vunpack.c.h.b16 %v4786
    %v4793 = vpack.c.b16 %v4791, %v4789
    %v4794 = vpack.c.b16 %v4792, %v4790
    %vm4796 = vcmask 64512
    %v4798 = vsel %vm4796, %v4794, 0
    %v4801 = vsel %vm3696, %v4781, 0
    %v4804 = vsel %vm3696, %v4782, 0
    %v4807 = vsel %vm3696, %v4783, 0
    %v4810 = vsel %vm3696, %v4784, 0
    %4812 = vmatprep.subr.bf16.mxu0 %v4750
    %4813 = vmatpush1.bf16.msra.mxu0 %v4749
    %4814 = vmatprep.subr.bf16.mxu0 %v4754
    %4815 = vmatpush1.bf16.msra.mxu0 %v4753
    %4816 = vmatprep.subr.bf16.mxu0 %v4758
    %4817 = vmatpush1.bf16.msra.mxu0 %v4757
    %4818 = vmatprep.subr.bf16.mxu0 %v4762
    %4819 = vmatpush1.bf16.msra.mxu0 %v4761
    %4820 = vmatprep.subr.bf16.mxu0 %v4766
    %4821 = vmatpush1.bf16.msra.mxu0 %v4765
    %4822 = vmatprep.subr.bf16.mxu0 %v4770
    %4823 = vmatpush1.bf16.msra.mxu0 %v4769
    %4824 = vmatprep.subr.bf16.mxu0 %v4774
    %4825 = vmatpush1.bf16.msra.mxu0 %v4773
    %4826 = vmatprep.subr.bf16.mxu0 %v4778
    %4827 = vmatpush1.bf16.msra.mxu0 %v4777
    %4828 = vmatprep.subr.bf16.mxu0 %v4804
    %4829 = vmatpush1.bf16.msra.mxu0 %v4801
    %4830 = vmatprep.subr.bf16.mxu0 0
    %4831 = vmatpush1.bf16.msra.mxu0 0
    %4832 = vmatprep.subr.bf16.mxu0 0
    %4833 = vmatpush1.bf16.msra.mxu0 0
    %4834 = vmatprep.subr.bf16.mxu0 0
    %4835 = vmatpush1.bf16.msra.mxu0 0
    %4836 = vmatprep.subr.bf16.mxu0 0
    %4837 = vmatpush1.bf16.msra.mxu0 0
    %4838 = vmatprep.subr.bf16.mxu0 0
    %4839 = vmatpush1.bf16.msra.mxu0 0
    %4840 = vmatprep.subr.bf16.mxu0 0
    %4841 = vmatpush1.bf16.msra.mxu0 0
    %4842 = vmatprep.subr.bf16.mxu0 0
    %4843 = vmatpush1.bf16.msra.mxu0 0
    %4844 = vmatprep.mubr.bf16.mxu0 %v4798
    %4845 = vmatmul.mubr.bf16.gmra.mrb[0].mxu0 %v4793
    %v4846 = vpop.f32.mrb[0].mxu0
    %v4847 = vadd.f32 0.0, %v4846
    %v4848 = vpop.f32.mrb[0].mxu0
    %v4849 = vadd.f32 0.0, %v4848
    %v4850 = vpop.f32.mrb[0].mxu0
    %v4851 = vadd.f32 0.0, %v4850
    %v4852 = vpop.f32.mrb[0].mxu0
    %v4853 = vadd.f32 0.0, %v4852
    %4854 = vdwg.mxu0
    %4855 = vmatprep.subr.bf16.mxu0 %v4752
    %4856 = vmatpush1.bf16.msra.mxu0 %v4751
    %4857 = vmatprep.subr.bf16.mxu0 %v4756
    %4858 = vmatpush1.bf16.msra.mxu0 %v4755
    %4859 = vmatprep.subr.bf16.mxu0 %v4760
    %4860 = vmatpush1.bf16.msra.mxu0 %v4759
    %4861 = vmatprep.subr.bf16.mxu0 %v4764
    %4862 = vmatpush1.bf16.msra.mxu0 %v4763
    %4863 = vmatprep.subr.bf16.mxu0 %v4768
    %4864 = vmatpush1.bf16.msra.mxu0 %v4767
    %4865 = vmatprep.subr.bf16.mxu0 %v4772
    %4866 = vmatpush1.bf16.msra.mxu0 %v4771
    %4867 = vmatprep.subr.bf16.mxu0 %v4776
    %4868 = vmatpush1.bf16.msra.mxu0 %v4775
    %4869 = vmatprep.subr.bf16.mxu0 %v4780
    %4870 = vmatpush1.bf16.msra.mxu0 %v4779
    %4871 = vmatprep.subr.bf16.mxu0 %v4810
    %4872 = vmatpush1.bf16.msra.mxu0 %v4807
    %4873 = vmatprep.subr.bf16.mxu0 0
    %4874 = vmatpush1.bf16.msra.mxu0 0
    %4875 = vmatprep.subr.bf16.mxu0 0
    %4876 = vmatpush1.bf16.msra.mxu0 0
    %4877 = vmatprep.subr.bf16.mxu0 0
    %4878 = vmatpush1.bf16.msra.mxu0 0
    %4879 = vmatprep.subr.bf16.mxu0 0
    %4880 = vmatpush1.bf16.msra.mxu0 0
    %4881 = vmatprep.subr.bf16.mxu0 0
    %4882 = vmatpush1.bf16.msra.mxu0 0
    %4883 = vmatprep.subr.bf16.mxu0 0
    %4884 = vmatpush1.bf16.msra.mxu0 0
    %4885 = vmatprep.subr.bf16.mxu0 0
    %4886 = vmatpush1.bf16.msra.mxu0 0
    %4887 = vmatprep.mubr.bf16.mxu0 %v4798
    %4888 = vmatmul.mubr.bf16.gmra.mrb[0].mxu0 %v4793
    %v4889 = vpop.f32.mrb[0].mxu0
    %v4890 = vadd.f32 0.0, %v4889
    %v4891 = vpop.f32.mrb[0].mxu0
    %v4892 = vadd.f32 0.0, %v4891
    %v4893 = vpop.f32.mrb[0].mxu0
    %v4894 = vadd.f32 0.0, %v4893
    %v4895 = vpop.f32.mrb[0].mxu0
    %v4896 = vadd.f32 0.0, %v4895
    %4897 = vdwg.mxu0
    %v4898 = vpack.c.bf16 %v4847, %v4847
    %v4899 = vpack.c.bf16 %v4849, %v4849
    %v4900 = vpack.c.bf16 %v4890, %v4890
    %v4901 = vpack.c.bf16 %v4892, %v4892
    %v4902 = vpack.c.bf16 %v4851, %v4851
    %v4903 = vpack.c.bf16 %v4853, %v4853
    %v4904 = vpack.c.bf16 %v4894, %v4894
    %v4905 = vpack.c.bf16 %v4896, %v4896
    %4906 = vmatprep.subr.bf16.mxu0 %v1101
    %4907 = vmatpush1.bf16.msra.mxu0 %v1100
    %4908 = vmatprep.subr.bf16.mxu0 %v1105
    %4909 = vmatpush1.bf16.msra.mxu0 %v1104
    %4910 = vmatprep.subr.bf16.mxu0 %v1109
    %4911 = vmatpush1.bf16.msra.mxu0 %v1108
    %4912 = vmatprep.subr.bf16.mxu0 %v1113
    %4913 = vmatpush1.bf16.msra.mxu0 %v1112
    %4914 = vmatprep.subr.bf16.mxu0 %v1117
    %4915 = vmatpush1.bf16.msra.mxu0 %v1116
    %4916 = vmatprep.subr.bf16.mxu0 %v1121
    %4917 = vmatpush1.bf16.msra.mxu0 %v1120
    %4918 = vmatprep.subr.bf16.mxu0 %v1125
    %4919 = vmatpush1.bf16.msra.mxu0 %v1124
    %4920 = vmatprep.subr.bf16.mxu0 %v1129
    %4921 = vmatpush1.bf16.msra.mxu0 %v1128
    %4922 = vmatprep.subr.bf16.mxu0 %v1133
    %4923 = vmatpush1.bf16.msra.mxu0 %v1132
    %4924 = vmatprep.subr.bf16.mxu0 %v1137
    %4925 = vmatpush1.bf16.msra.mxu0 %v1136
    %4926 = vmatprep.subr.bf16.mxu0 %v1141
    %4927 = vmatpush1.bf16.msra.mxu0 %v1140
    %4928 = vmatprep.subr.bf16.mxu0 %v1145
    %4929 = vmatpush1.bf16.msra.mxu0 %v1144
    %4930 = vmatprep.subr.bf16.mxu0 %v1149
    %4931 = vmatpush1.bf16.msra.mxu0 %v1148
    %4932 = vmatprep.subr.bf16.mxu0 %v1153
    %4933 = vmatpush1.bf16.msra.mxu0 %v1152
    %4934 = vmatprep.subr.bf16.mxu0 %v1157
    %4935 = vmatpush1.bf16.msra.mxu0 %v1156
    %4936 = vmatprep.subr.bf16.mxu0 %v1161
    %4937 = vmatpush1.bf16.msra.mxu0 %v1160
    %4938 = vmatprep.mubr.bf16.mxu0 %v4903
    %4939 = vmatmul.mubr.bf16.gmra.mrb[0].mxu0 %v4902
    %v4940 = vpop.f32.mrb[0].mxu0
    %v4941 = vadd.f32 0.0, %v4940
    %v4942 = vpop.f32.mrb[0].mxu0
    %v4943 = vadd.f32 0.0, %v4942
    %v4944 = vpop.f32.mrb[0].mxu0
    %v4945 = vpop.f32.mrb[0].mxu0
    %4946 = vdwg.mxu0
    %4947 = vmatprep.subr.bf16.mxu0 %v1165
    %4948 = vmatpush1.bf16.msra.mxu0 %v1164
    %4949 = vmatprep.subr.bf16.mxu0 %v1169
    %4950 = vmatpush1.bf16.msra.mxu0 %v1168
    %4951 = vmatprep.subr.bf16.mxu0 %v1173
    %4952 = vmatpush1.bf16.msra.mxu0 %v1172
    %4953 = vmatprep.subr.bf16.mxu0 %v1177
    %4954 = vmatpush1.bf16.msra.mxu0 %v1176
    %4955 = vmatprep.subr.bf16.mxu0 %v1181
    %4956 = vmatpush1.bf16.msra.mxu0 %v1180
    %4957 = vmatprep.subr.bf16.mxu0 %v1185
    %4958 = vmatpush1.bf16.msra.mxu0 %v1184
    %4959 = vmatprep.subr.bf16.mxu0 %v1189
    %4960 = vmatpush1.bf16.msra.mxu0 %v1188
    %4961 = vmatprep.subr.bf16.mxu0 %v1193
    %4962 = vmatpush1.bf16.msra.mxu0 %v1192
    %4963 = vmatprep.subr.bf16.mxu0 %v1197
    %4964 = vmatpush1.bf16.msra.mxu0 %v1196
    %4965 = vmatprep.subr.bf16.mxu0 %v1201
    %4966 = vmatpush1.bf16.msra.mxu0 %v1200
    %4967 = vmatprep.subr.bf16.mxu0 %v1205
    %4968 = vmatpush1.bf16.msra.mxu0 %v1204
    %4969 = vmatprep.subr.bf16.mxu0 %v1209
    %4970 = vmatpush1.bf16.msra.mxu0 %v1208
    %4971 = vmatprep.subr.bf16.mxu0 %v1213
    %4972 = vmatpush1.bf16.msra.mxu0 %v1212
    %4973 = vmatprep.subr.bf16.mxu0 %v1217
    %4974 = vmatpush1.bf16.msra.mxu0 %v1216
    %4975 = vmatprep.subr.bf16.mxu0 %v1221
    %4976 = vmatpush1.bf16.msra.mxu0 %v1220
    %4977 = vmatprep.subr.bf16.mxu0 %v1225
    %4978 = vmatpush1.bf16.msra.mxu0 %v1224
    %4979 = vmatprep.mubr.bf16.mxu0 %v4905
    %4980 = vmatmul.mubr.bf16.gmra.mrb[0].mxu0 %v4904
    %v4981 = vpop.f32.mrb[0].mxu0
    %v4982 = vadd.f32 %v4941, %v4981
    %v4983 = vpop.f32.mrb[0].mxu0
    %v4984 = vadd.f32 %v4943, %v4983
    %v4985 = vpop.f32.mrb[0].mxu0
    %v4986 = vpop.f32.mrb[0].mxu0
    %4987 = vdwg.mxu0
    %4988 = vmatprep.subr.bf16.mxu0 %v1103
    %4989 = vmatpush1.bf16.msra.mxu0 %v1102
    %4990 = vmatprep.subr.bf16.mxu0 %v1107
    %4991 = vmatpush1.bf16.msra.mxu0 %v1106
    %4992 = vmatprep.subr.bf16.mxu0 %v1111
    %4993 = vmatpush1.bf16.msra.mxu0 %v1110
    %4994 = vmatprep.subr.bf16.mxu0 %v1115
    %4995 = vmatpush1.bf16.msra.mxu0 %v1114
    %4996 = vmatprep.subr.bf16.mxu0 %v1119
    %4997 = vmatpush1.bf16.msra.mxu0 %v1118
    %4998 = vmatprep.subr.bf16.mxu0 %v1123
    %4999 = vmatpush1.bf16.msra.mxu0 %v1122
    %5000 = vmatprep.subr.bf16.mxu0 %v1127
    %5001 = vmatpush1.bf16.msra.mxu0 %v1126
    %5002 = vmatprep.subr.bf16.mxu0 %v1131
    %5003 = vmatpush1.bf16.msra.mxu0 %v1130
    %5004 = vmatprep.subr.bf16.mxu0 %v1135
    %5005 = vmatpush1.bf16.msra.mxu0 %v1134
    %5006 = vmatprep.subr.bf16.mxu0 %v1139
    %5007 = vmatpush1.bf16.msra.mxu0 %v1138
    %5008 = vmatprep.subr.bf16.mxu0 %v1143
    %5009 = vmatpush1.bf16.msra.mxu0 %v1142
    %5010 = vmatprep.subr.bf16.mxu0 %v1147
    %5011 = vmatpush1.bf16.msra.mxu0 %v1146
    %5012 = vmatprep.subr.bf16.mxu0 %v1151
    %5013 = vmatpush1.bf16.msra.mxu0 %v1150
    %5014 = vmatprep.subr.bf16.mxu0 %v1155
    %5015 = vmatpush1.bf16.msra.mxu0 %v1154
    %5016 = vmatprep.subr.bf16.mxu0 %v1159
    %5017 = vmatpush1.bf16.msra.mxu0 %v1158
    %5018 = vmatprep.subr.bf16.mxu0 %v1163
    %5019 = vmatpush1.bf16.msra.mxu0 %v1162
    %5020 = vmatprep.mubr.bf16.mxu0 %v4903
    %5021 = vmatmul.mubr.bf16.gmra.mrb[0].mxu0 %v4902
    %v5022 = vpop.f32.mrb[0].mxu0
    %v5023 = vadd.f32 0.0, %v5022
    %v5024 = vpop.f32.mrb[0].mxu0
    %v5025 = vadd.f32 0.0, %v5024
    %v5026 = vpop.f32.mrb[0].mxu0
    %v5027 = vpop.f32.mrb[0].mxu0
    %5028 = vdwg.mxu0
    %5029 = vmatprep.subr.bf16.mxu0 %v1167
    %5030 = vmatpush1.bf16.msra.mxu0 %v1166
    %5031 = vmatprep.subr.bf16.mxu0 %v1171
    %5032 = vmatpush1.bf16.msra.mxu0 %v1170
    %5033 = vmatprep.subr.bf16.mxu0 %v1175
    %5034 = vmatpush1.bf16.msra.mxu0 %v1174
    %5035 = vmatprep.subr.bf16.mxu0 %v1179
    %5036 = vmatpush1.bf16.msra.mxu0 %v1178
    %5037 = vmatprep.subr.bf16.mxu0 %v1183
    %5038 = vmatpush1.bf16.msra.mxu0 %v1182
    %5039 = vmatprep.subr.bf16.mxu0 %v1187
    %5040 = vmatpush1.bf16.msra.mxu0 %v1186
    %5041 = vmatprep.subr.bf16.mxu0 %v1191
    %5042 = vmatpush1.bf16.msra.mxu0 %v1190
    %5043 = vmatprep.subr.bf16.mxu0 %v1195
    %5044 = vmatpush1.bf16.msra.mxu0 %v1194
    %5045 = vmatprep.subr.bf16.mxu0 %v1199
    %5046 = vmatpush1.bf16.msra.mxu0 %v1198
    %5047 = vmatprep.subr.bf16.mxu0 %v1203
    %5048 = vmatpush1.bf16.msra.mxu0 %v1202
    %5049 = vmatprep.subr.bf16.mxu0 %v1207
    %5050 = vmatpush1.bf16.msra.mxu0 %v1206
    %5051 = vmatprep.subr.bf16.mxu0 %v1211
    %5052 = vmatpush1.bf16.msra.mxu0 %v1210
    %5053 = vmatprep.subr.bf16.mxu0 %v1215
    %5054 = vmatpush1.bf16.msra.mxu0 %v1214
    %5055 = vmatprep.subr.bf16.mxu0 %v1219
    %5056 = vmatpush1.bf16.msra.mxu0 %v1218
    %5057 = vmatprep.subr.bf16.mxu0 %v1223
    %5058 = vmatpush1.bf16.msra.mxu0 %v1222
    %5059 = vmatprep.subr.bf16.mxu0 %v1227
    %5060 = vmatpush1.bf16.msra.mxu0 %v1226
    %5061 = vmatprep.mubr.bf16.mxu0 %v4905
    %5062 = vmatmul.mubr.bf16.gmra.mrb[0].mxu0 %v4904
    %v5063 = vpop.f32.mrb[0].mxu0
    %v5064 = vadd.f32 %v5023, %v5063
    %v5065 = vpop.f32.mrb[0].mxu0
    %v5066 = vadd.f32 %v5025, %v5065
    %v5067 = vpop.f32.mrb[0].mxu0
    %v5068 = vpop.f32.mrb[0].mxu0
    %5069 = vdwg.mxu0
    %5070 = vmatprep.subr.bf16.mxu0 %v1953
    %5071 = vmatpush1.bf16.msra.mxu0 %v1952
    %5072 = vmatprep.subr.bf16.mxu0 %v1957
    %5073 = vmatpush1.bf16.msra.mxu0 %v1956
    %5074 = vmatprep.subr.bf16.mxu0 %v1961
    %5075 = vmatpush1.bf16.msra.mxu0 %v1960
    %5076 = vmatprep.subr.bf16.mxu0 %v1965
    %5077 = vmatpush1.bf16.msra.mxu0 %v1964
    %5078 = vmatprep.subr.bf16.mxu0 %v1969
    %5079 = vmatpush1.bf16.msra.mxu0 %v1968
    %5080 = vmatprep.subr.bf16.mxu0 %v1973
    %5081 = vmatpush1.bf16.msra.mxu0 %v1972
    %5082 = vmatprep.subr.bf16.mxu0 %v1977
    %5083 = vmatpush1.bf16.msra.mxu0 %v1976
    %5084 = vmatprep.subr.bf16.mxu0 %v1981
    %5085 = vmatpush1.bf16.msra.mxu0 %v1980
    %5086 = vmatprep.subr.bf16.mxu0 %v1985
    %5087 = vmatpush1.bf16.msra.mxu0 %v1984
    %5088 = vmatprep.subr.bf16.mxu0 %v1989
    %5089 = vmatpush1.bf16.msra.mxu0 %v1988
    %5090 = vmatprep.subr.bf16.mxu0 %v1993
    %5091 = vmatpush1.bf16.msra.mxu0 %v1992
    %5092 = vmatprep.subr.bf16.mxu0 %v1997
    %5093 = vmatpush1.bf16.msra.mxu0 %v1996
    %5094 = vmatprep.subr.bf16.mxu0 %v2001
    %5095 = vmatpush1.bf16.msra.mxu0 %v2000
    %5096 = vmatprep.subr.bf16.mxu0 %v2005
    %5097 = vmatpush1.bf16.msra.mxu0 %v2004
    %5098 = vmatprep.subr.bf16.mxu0 %v2009
    %5099 = vmatpush1.bf16.msra.mxu0 %v2008
    %5100 = vmatprep.subr.bf16.mxu0 %v2013
    %5101 = vmatpush1.bf16.msra.mxu0 %v2012
    %5102 = vmatprep.mubr.bf16.mxu0 %v4899
    %5103 = vmatmul.mubr.bf16.gmra.mrb[0].mxu0 %v4898
    %v5104 = vpop.f32.mrb[0].mxu0
    %v5105 = vadd.f32 %v4982, %v5104
    %v5106 = vpop.f32.mrb[0].mxu0
    %v5107 = vadd.f32 %v4984, %v5106
    %v5108 = vpop.f32.mrb[0].mxu0
    %v5109 = vpop.f32.mrb[0].mxu0
    %5110 = vdwg.mxu0
    %5111 = vmatprep.subr.bf16.mxu0 %v2017
    %5112 = vmatpush1.bf16.msra.mxu0 %v2016
    %5113 = vmatprep.subr.bf16.mxu0 %v2021
    %5114 = vmatpush1.bf16.msra.mxu0 %v2020
    %5115 = vmatprep.subr.bf16.mxu0 %v2025
    %5116 = vmatpush1.bf16.msra.mxu0 %v2024
    %5117 = vmatprep.subr.bf16.mxu0 %v2029
    %5118 = vmatpush1.bf16.msra.mxu0 %v2028
    %5119 = vmatprep.subr.bf16.mxu0 %v2033
    %5120 = vmatpush1.bf16.msra.mxu0 %v2032
    %5121 = vmatprep.subr.bf16.mxu0 %v2037
    %5122 = vmatpush1.bf16.msra.mxu0 %v2036
    %5123 = vmatprep.subr.bf16.mxu0 %v2041
    %5124 = vmatpush1.bf16.msra.mxu0 %v2040
    %5125 = vmatprep.subr.bf16.mxu0 %v2045
    %5126 = vmatpush1.bf16.msra.mxu0 %v2044
    %5127 = vmatprep.subr.bf16.mxu0 %v2049
    %5128 = vmatpush1.bf16.msra.mxu0 %v2048
    %5129 = vmatprep.subr.bf16.mxu0 %v2053
    %5130 = vmatpush1.bf16.msra.mxu0 %v2052
    %5131 = vmatprep.subr.bf16.mxu0 %v2057
    %5132 = vmatpush1.bf16.msra.mxu0 %v2056
    %5133 = vmatprep.subr.bf16.mxu0 %v2061
    %5134 = vmatpush1.bf16.msra.mxu0 %v2060
    %5135 = vmatprep.subr.bf16.mxu0 %v2065
    %5136 = vmatpush1.bf16.msra.mxu0 %v2064
    %5137 = vmatprep.subr.bf16.mxu0 %v2069
    %5138 = vmatpush1.bf16.msra.mxu0 %v2068
    %5139 = vmatprep.subr.bf16.mxu0 %v2073
    %5140 = vmatpush1.bf16.msra.mxu0 %v2072
    %5141 = vmatprep.subr.bf16.mxu0 %v2077
    %5142 = vmatpush1.bf16.msra.mxu0 %v2076
    %5143 = vmatprep.mubr.bf16.mxu0 %v4901
    %5144 = vmatmul.mubr.bf16.gmra.mrb[0].mxu0 %v4900
    %v5145 = vpop.f32.mrb[0].mxu0
    %v5146 = vadd.f32 %v5105, %v5145
    %v5147 = vpop.f32.mrb[0].mxu0
    %v5148 = vadd.f32 %v5107, %v5147
    %v5149 = vpop.f32.mrb[0].mxu0
    %v5150 = vpop.f32.mrb[0].mxu0
    %5151 = vdwg.mxu0
    %5152 = vmatprep.subr.bf16.mxu0 %v1955
    %5153 = vmatpush1.bf16.msra.mxu0 %v1954
    %5154 = vmatprep.subr.bf16.mxu0 %v1959
    %5155 = vmatpush1.bf16.msra.mxu0 %v1958
    %5156 = vmatprep.subr.bf16.mxu0 %v1963
    %5157 = vmatpush1.bf16.msra.mxu0 %v1962
    %5158 = vmatprep.subr.bf16.mxu0 %v1967
    %5159 = vmatpush1.bf16.msra.mxu0 %v1966
    %5160 = vmatprep.subr.bf16.mxu0 %v1971
    %5161 = vmatpush1.bf16.msra.mxu0 %v1970
    %5162 = vmatprep.subr.bf16.mxu0 %v1975
    %5163 = vmatpush1.bf16.msra.mxu0 %v1974
    %5164 = vmatprep.subr.bf16.mxu0 %v1979
    %5165 = vmatpush1.bf16.msra.mxu0 %v1978
    %5166 = vmatprep.subr.bf16.mxu0 %v1983
    %5167 = vmatpush1.bf16.msra.mxu0 %v1982
    %5168 = vmatprep.subr.bf16.mxu0 %v1987
    %5169 = vmatpush1.bf16.msra.mxu0 %v1986
    %5170 = vmatprep.subr.bf16.mxu0 %v1991
    %5171 = vmatpush1.bf16.msra.mxu0 %v1990
    %5172 = vmatprep.subr.bf16.mxu0 %v1995
    %5173 = vmatpush1.bf16.msra.mxu0 %v1994
    %5174 = vmatprep.subr.bf16.mxu0 %v1999
    %5175 = vmatpush1.bf16.msra.mxu0 %v1998
    %5176 = vmatprep.subr.bf16.mxu0 %v2003
    %5177 = vmatpush1.bf16.msra.mxu0 %v2002
    %5178 = vmatprep.subr.bf16.mxu0 %v2007
    %5179 = vmatpush1.bf16.msra.mxu0 %v2006
    %5180 = vmatprep.subr.bf16.mxu0 %v2011
    %5181 = vmatpush1.bf16.msra.mxu0 %v2010
    %5182 = vmatprep.subr.bf16.mxu0 %v2015
    %5183 = vmatpush1.bf16.msra.mxu0 %v2014
    %5184 = vmatprep.mubr.bf16.mxu0 %v4899
    %5185 = vmatmul.mubr.bf16.gmra.mrb[0].mxu0 %v4898
    %v5186 = vpop.f32.mrb[0].mxu0
    %v5187 = vadd.f32 %v5064, %v5186
    %v5188 = vpop.f32.mrb[0].mxu0
    %v5189 = vadd.f32 %v5066, %v5188
    %v5190 = vpop.f32.mrb[0].mxu0
    %v5191 = vpop.f32.mrb[0].mxu0
    %5192 = vdwg.mxu0
    %5193 = vmatprep.subr.bf16.mxu0 %v2019
    %5194 = vmatpush1.bf16.msra.mxu0 %v2018
    %5195 = vmatprep.subr.bf16.mxu0 %v2023
    %5196 = vmatpush1.bf16.msra.mxu0 %v2022
    %5197 = vmatprep.subr.bf16.mxu0 %v2027
    %5198 = vmatpush1.bf16.msra.mxu0 %v2026
    %5199 = vmatprep.subr.bf16.mxu0 %v2031
    %5200 = vmatpush1.bf16.msra.mxu0 %v2030
    %5201 = vmatprep.subr.bf16.mxu0 %v2035
    %5202 = vmatpush1.bf16.msra.mxu0 %v2034
    %5203 = vmatprep.subr.bf16.mxu0 %v2039
    %5204 = vmatpush1.bf16.msra.mxu0 %v2038
    %5205 = vmatprep.subr.bf16.mxu0 %v2043
    %5206 = vmatpush1.bf16.msra.mxu0 %v2042
    %5207 = vmatprep.subr.bf16.mxu0 %v2047
    %5208 = vmatpush1.bf16.msra.mxu0 %v2046
    %5209 = vmatprep.subr.bf16.mxu0 %v2051
    %5210 = vmatpush1.bf16.msra.mxu0 %v2050
    %5211 = vmatprep.subr.bf16.mxu0 %v2055
    %5212 = vmatpush1.bf16.msra.mxu0 %v2054
    %5213 = vmatprep.subr.bf16.mxu0 %v2059
    %5214 = vmatpush1.bf16.msra.mxu0 %v2058
    %5215 = vmatprep.subr.bf16.mxu0 %v2063
    %5216 = vmatpush1.bf16.msra.mxu0 %v2062
    %5217 = vmatprep.subr.bf16.mxu0 %v2067
    %5218 = vmatpush1.bf16.msra.mxu0 %v2066
    %5219 = vmatprep.subr.bf16.mxu0 %v2071
    %5220 = vmatpush1.bf16.msra.mxu0 %v2070
    %5221 = vmatprep.subr.bf16.mxu0 %v2075
    %5222 = vmatpush1.bf16.msra.mxu0 %v2074
    %5223 = vmatprep.subr.bf16.mxu0 %v2079
    %5224 = vmatpush1.bf16.msra.mxu0 %v2078
    %5225 = vmatprep.mubr.bf16.mxu0 %v4901
    %5226 = vmatmul.mubr.bf16.gmra.mrb[0].mxu0 %v4900
    %v5227 = vpop.f32.mrb[0].mxu0
    %v5228 = vadd.f32 %v5187, %v5227
    %v5229 = vpop.f32.mrb[0].mxu0
    %v5230 = vadd.f32 %v5189, %v5229
    %v5231 = vpop.f32.mrb[0].mxu0
    %v5232 = vpop.f32.mrb[0].mxu0
    %5233 = vdwg.mxu0
    %v5234 = vadd.f32 %v5146, %v2424
    %v5235 = vadd.f32 %v5148, %v2428
    %v5236 = vadd.f32 %v5228, %v2432
    %v5237 = vadd.f32 %v5230, %v2436
    %v5238 = vtanh.pop %v5234
    %v5239 = vtanh.pop %v5235
    %v5240 = vtanh.pop %v5236
    %v5241 = vtanh.pop %v5237
    %v5246 = vcombine.low %v5238, %v5239
    %v5247 = vcombine.low %v5240, %v5241
    %v5249 = vunpack.c.l.s4 1966171168
    %v5250 = vunpack.c.0.s8 %v5249
    %v5251 = vlaneseq
    %v5252 = vshrl.u32 %v5251, 7
    %v5253 = vsub.s32 %v5250, %v5252
    %v5254 = vrot.slane %v5246, %v5253
    %v5256 = vunpack.c.l.s4 1966171168
    %v5257 = vunpack.c.0.s8 %v5256
    %v5258 = vlaneseq
    %v5259 = vshrl.u32 %v5258, 7
    %v5260 = vsub.s32 %v5257, %v5259
    %v5261 = vrot.slane %v5247, %v5260
    %v5262 = vcombine.low %v5254, %v5261
    %v5264 = vunpack.c.l.s4 1966171168
    %v5265 = vunpack.c.0.s8 %v5264
    %v5266 = vlaneseq
    %v5267 = vshrl.u32 %v5266, 7
    %v5268 = vsub.s32 %v5265, %v5267
    %v5269 = vrot.slane %v5262, %v5268
    %v5271 = vlaneseq
    %vm5272 = vcmp.ge.s32.totalorder %v5271, 0
    %vm5273 = vcmp.lt.s32.totalorder %v5271, 512
    %vm5274 = vmand %vm5272, %vm5273
    %5275 = vst.msk [vmem:[#allocation17] sm:$0xf] %vm5274, %v5269
    // Predicated region
    $region74: #{tpu_custom_call.1} parent=1 // pred_check
      _
    $region75: #{tpu_custom_call.1} parent=1 // pred_check_branch
      %5277 = sbr.rel (0) target = $region77
    $region76: #{tpu_custom_call.1} parent=1 // pred_region
      %s5279 = ssub.s32 64, 64
      %5280 = vsyncadd [#allocation5], %s5279
      %s5282 = sshll.u32 [#allocation17], 4
      %s5283 = int_to_ptr.vmem [resolvable:$true] %s5282
      %5285 = dma.vmem_to_hbm [thread:$0]  %s5283, 64, %s10, [#allocation5]
    $region77: #{tpu_custom_call.1} parent=1 // pred_fallthru
      _
    // Predicated region
    $region78: #{tpu_custom_call.1} parent=1 // pred_check
      _
    $region79: #{tpu_custom_call.1} parent=1 // pred_check_branch
      %5287 = sbr.rel (0) target = $region81
    $region80: #{tpu_custom_call.1} parent=1 // pred_region
      %5288 = dma.done [#allocation5], 64
    $region81: #{tpu_custom_call.1} parent=1 // pred_fallthru
      _
    %5289 = vsyncpa [#allocation4], 1
    %5290 = vsyncpa [#allocation7], 1
    %5291 = vsyncpa [#allocation10], 1
    %5292 = vsyncpa [#allocation13], 1
    %5293 = vsyncpa [#allocation16], 1
    %5294 = vsyncpa [#allocation5], 1

</llo_original>
